<compile_context>
chip_gen: v7x
topology: tpu7x:2x2x1
jax: 0.10.0
libtpu: 0.0.40
codegen_flags: <defaults>
</compile_context>

<pallas_src>
import math
from functools import partial

import jax
import jax.numpy as jnp
from jax import lax
from jax.experimental import pallas as pl
from jax.experimental.pallas import tpu as pltpu

BN_EPS = 1e-5
NORM_EPS_SQ = 1e-24                 # clamp on squared L2 norm (guards zero rows)
VMEM_LIMIT_BYTES = 32 * 1024 * 1024  # ~3 MiB actually used; headroom on every gen


def _round_up(x, m):
    return ((x + m - 1) // m) * m


def _pick_tile_rows(batch):
    """Device-aware default batch tile: big single tile on v5e/v6e (one TC),
    an even tile count on v7x (two TCs share the 'parallel' grid axis)."""
    b8 = _round_up(max(batch, 1), 8)
    try:
        kind = jax.devices()[0].device_kind.lower()
    except Exception:  # pragma: no cover - defensive
        kind = ""
    if "v7" in kind or "7x" in kind:
        return min(256, _round_up(pl.cdiv(b8, 2), 16))
    return min(512, b8)


# --------------------------------------------------------------------------- #
# In-kernel helpers
# --------------------------------------------------------------------------- #
def _fold_bn(stats, gamma, beta, batch):
    """Combine per-tile (sum, sum-of-squares) partials -> folded BN scale/shift."""
    s = jnp.sum(stats[:, 0, :], axis=0, keepdims=True)      # (1, d)
    ssq = jnp.sum(stats[:, 1, :], axis=0, keepdims=True)    # (1, d)
    inv_b = 1.0 / batch
    mean = s * inv_b
    var = jnp.maximum(ssq * inv_b - mean * mean, 0.0)
    inv_std = lax.rsqrt(var + BN_EPS)
    scale = gamma * inv_std
    shift = beta - mean * scale
    return scale, shift


def _l2_normalize(h):
    return h * lax.rsqrt(
        jnp.maximum(jnp.sum(h * h, axis=-1, keepdims=True), NORM_EPS_SQ))


# --------------------------------------------------------------------------- #
# Kernels
# --------------------------------------------------------------------------- #
def _encoder_stage_kernel(has_bn, batch, tile_rows, num_tiles, padded):
    """Non-final encoder stage: [BN(from stats) + ReLU ->] Linear -> stats.

    Ref order: [stats_in, gamma, beta,] x, w(bf16), b, y_out(bf16), stats_out.
    """

    def kernel(*refs):
        idx = 0
        if has_bn:
            stats_in = refs[0][...]
            gamma = refs[1][...]
            beta = refs[2][...]
            idx = 3
        h = refs[idx][...]
        w = refs[idx + 1][...]
        b = refs[idx + 2][...]
        y_ref = refs[idx + 3]
        stats_ref = refs[idx + 4]

        if has_bn:
            scale, shift = _fold_bn(stats_in, gamma, beta, batch)
            h = jnp.maximum(h.astype(jnp.float32) * scale + shift, 0.0)

        # bf16 MXU inputs, f32 accumulation.
        y = jnp.dot(h.astype(jnp.bfloat16), w,
                    preferred_element_type=jnp.float32) + b
        y_ref[...] = y.astype(y_ref.dtype)           # bf16 inter-stage activation

        def write_stats(v):
            # Single dense (2, d_out) store (no masked 1-sublane partial stores).
            stats_ref[0] = jnp.concatenate(
                [jnp.sum(v, axis=0, keepdims=True),
                 jnp.sum(v * v, axis=0, keepdims=True)], axis=0)

        if padded:
            last = num_tiles - 1
            n_valid_last = batch - last * tile_rows

            @pl.when(pl.program_id(0) == last)
            def _():
                rows = lax.broadcasted_iota(jnp.int32, (tile_rows, 1), 0)
                write_stats(jnp.where(rows < n_valid_last, y, 0.0))

            @pl.when(pl.program_id(0) != last)
            def _():
                write_stats(y)
        else:
            write_stats(y)

    return kernel


def _bottleneck_decoder_kernel(has_bn, n_dec, batch):
    """Fused tail: [BN + ReLU ->] bottleneck Linear -> L2-norm ->
    Linear -> (ReLU -> Linear)* -> L2-norm.

    Ref order: [stats_in, gamma, beta,] x, w_enc(bf16), b_enc,
               (w_i(bf16), b_i)*n_dec, out.
    """

    def kernel(*refs):
        idx = 0
        if has_bn:
            stats_in = refs[0][...]
            gamma = refs[1][...]
            beta = refs[2][...]
            idx = 3
        h = refs[idx][...]
        w_enc = refs[idx + 1][...]
        b_enc = refs[idx + 2][...]
        dec_refs = refs[idx + 3:-1]
        out_ref = refs[-1]

        if has_bn:
            scale, shift = _fold_bn(stats_in, gamma, beta, batch)
            h = jnp.maximum(h.astype(jnp.float32) * scale + shift, 0.0)

        h = jnp.dot(h.astype(jnp.bfloat16), w_enc,
                    preferred_element_type=jnp.float32) + b_enc
        h = _l2_normalize(h)
        for i in range(n_dec):
            if i > 0:
                h = jnp.maximum(h, 0.0)
            w = dec_refs[2 * i][...]
            b = dec_refs[2 * i + 1][...]
            h = jnp.dot(h.astype(jnp.bfloat16), w,
                        preferred_element_type=jnp.float32) + b
        h = _l2_normalize(h)
        out_ref[...] = h.astype(out_ref.dtype)

    return kernel


# --------------------------------------------------------------------------- #
# Forward wrapper
# --------------------------------------------------------------------------- #
@partial(jax.jit, static_argnames=("tile_rows",))
def autoencoder_forward(x, enc_params, dec_params, *, tile_rows=None):
    B = x.shape[0]

    TB = tile_rows if tile_rows is not None else _pick_tile_rows(B)
    TB = _round_up(max(int(TB), 16), 16)      # bf16 sublane packing: row pairs
    B_pad = _round_up(B, TB)
    num_tiles = B_pad // TB
    padded = B_pad != B

    cparams = pltpu.CompilerParams(
        dimension_semantics=("parallel",),
        vmem_limit_bytes=VMEM_LIMIT_BYTES)

    # Input goes straight into a bf16 matmul -> ship it as bf16 (halves DMA).
    h = x.astype(jnp.bfloat16)
    if padded:
        h = jnp.pad(h, ((0, B_pad - B), (0, 0)))

    n_enc = len(enc_params)
    stats = None

    # ---- non-final encoder stages (each needs full-batch stats for the next BN) ----
    for li in range(n_enc - 1):
        layer = enc_params[li]
        has_bn = li > 0
        if has_bn:
            gamma, beta, w, b = layer
        else:
            w, b = layer
        d_in, d_out = w.shape
        w_bf16 = w.astype(jnp.bfloat16)

        in_specs, inputs = [], []
        if has_bn:
            in_specs += [
                pl.BlockSpec((num_tiles, 2, d_in), lambda g: (0, 0, 0)),  # resident
                pl.BlockSpec((1, d_in), lambda g: (0, 0)),
                pl.BlockSpec((1, d_in), lambda g: (0, 0)),
            ]
            inputs += [stats, gamma, beta]
        in_specs += [
            pl.BlockSpec((TB, d_in), lambda g: (g, 0)),        # stream activations
            pl.BlockSpec((d_in, d_out), lambda g: (0, 0)),     # weights resident
            pl.BlockSpec((1, d_out), lambda g: (0, 0)),
        ]
        inputs += [h, w_bf16, b]

        out_shape = (jax.ShapeDtypeStruct((B_pad, d_out), jnp.bfloat16),
                     jax.ShapeDtypeStruct((num_tiles, 2, d_out), jnp.float32))
        out_specs = (pl.BlockSpec((TB, d_out), lambda g: (g, 0)),
                     pl.BlockSpec((1, 2, d_out), lambda g: (g, 0, 0)))

        cost = pl.CostEstimate(
            flops=2 * B_pad * d_in * d_out + 6 * B_pad * d_out,
            bytes_accessed=(2 * B_pad * (d_in + d_out) + 2 * d_in * d_out
                            + 4 * d_out + 8 * num_tiles * d_out
                            + (8 * num_tiles * d_in + 8 * d_in if has_bn else 0)),
            transcendentals=d_in if has_bn else 0)

        h, stats = pl.pallas_call(
            _encoder_stage_kernel(has_bn, B, TB, num_tiles, padded),
            grid=(num_tiles,),
            in_specs=in_specs,
            out_specs=out_specs,
            out_shape=out_shape,
            compiler_params=cparams,
            cost_estimate=cost,
        )(*inputs)

    # ---- fused final encoder stage + L2-norm + decoder + L2-norm ----
    last_layer = enc_params[-1]
    has_bn = n_enc > 1
    if has_bn:
        gamma, beta, w_enc, b_enc = last_layer
    else:
        w_enc, b_enc = last_layer
    d_in, d_bot = w_enc.shape
    n_dec = len(dec_params)
    d_final = dec_params[-1][0].shape[1]

    in_specs, inputs = [], []
    if has_bn:
        in_specs += [
            pl.BlockSpec((num_tiles, 2, d_in), lambda g: (0, 0, 0)),
            pl.BlockSpec((1, d_in), lambda g: (0, 0)),
            pl.BlockSpec((1, d_in), lambda g: (0, 0)),
        ]
        inputs += [stats, gamma, beta]
    in_specs += [
        pl.BlockSpec((TB, d_in), lambda g: (g, 0)),
        pl.BlockSpec((d_in, d_bot), lambda g: (0, 0)),
        pl.BlockSpec((1, d_bot), lambda g: (0, 0)),
    ]
    inputs += [h, w_enc.astype(jnp.bfloat16), b_enc]

    flops = 2 * B_pad * d_in * d_bot
    bytes_acc = 2 * B_pad * d_in + 4 * B_pad * d_final + 2 * d_in * d_bot + 4 * d_bot
    for w, b in dec_params:
        di, do = w.shape
        in_specs += [pl.BlockSpec((di, do), lambda g: (0, 0)),
                     pl.BlockSpec((1, do), lambda g: (0, 0))]
        inputs += [w.astype(jnp.bfloat16), b]
        flops += 2 * B_pad * di * do
        bytes_acc += 2 * di * do + 4 * do

    out = pl.pallas_call(
        _bottleneck_decoder_kernel(has_bn, n_dec, B),
        grid=(num_tiles,),
        in_specs=in_specs,
        out_specs=pl.BlockSpec((TB, d_final), lambda g: (g, 0)),
        out_shape=jax.ShapeDtypeStruct((B_pad, d_final), jnp.float32),
        compiler_params=cparams,
        cost_estimate=pl.CostEstimate(
            flops=flops, bytes_accessed=bytes_acc,
            transcendentals=2 * B_pad + (d_in if has_bn else 0)),
    )(*inputs)

    return out[:B] if padded else out


# --------------------------------------------------------------------------- #
# Parameter init (PyTorch-style uniform +/- 1/sqrt(fan_in)), weights stored (in, out)
# --------------------------------------------------------------------------- #
def init_autoencoder_params(key, feature_dim, encoder_hidden_dims, decoder_hidden_dims):
    def linear(k, fan_in, fan_out):
        kw, kb = jax.random.split(k)
        bound = 1.0 / math.sqrt(fan_in)
        w = jax.random.uniform(kw, (fan_in, fan_out), jnp.float32, -bound, bound)
        b = jax.random.uniform(kb, (1, fan_out), jnp.float32, -bound, bound)
        return w, b

    keys = jax.random.split(key, len(encoder_hidden_dims) + len(decoder_hidden_dims))
    k_idx = 0

    enc = []
    prev = feature_dim
    for i, d in enumerate(encoder_hidden_dims):
        w, b = linear(keys[k_idx], prev, d)
        k_idx += 1
        if i == 0:
            enc.append((w, b))
        else:
            gamma = jnp.ones((1, prev), jnp.float32)
            beta = jnp.zeros((1, prev), jnp.float32)
            enc.append((gamma, beta, w, b))
        prev = d

    dec = []
    for d in decoder_hidden_dims:
        w, b = linear(keys[k_idx], prev, d)
        k_idx += 1
        dec.append((w, b))
        prev = d

    return enc, dec


# --------------------------------------------------------------------------- #
# Pure-JAX reference mirroring the PyTorch forward (training-mode BatchNorm)
# --------------------------------------------------------------------------- #
def autoencoder_reference(x, enc_params, dec_params, eps=BN_EPS):
    h = x.astype(jnp.float32)
    for i, layer in enumerate(enc_params):
        if i == 0:
            w, b = layer
        else:
            gamma, beta, w, b = layer
            mean = jnp.mean(h, axis=0, keepdims=True)
            var = jnp.mean((h - mean) ** 2, axis=0, keepdims=True)
            h = (h - mean) / jnp.sqrt(var + eps) * gamma + beta
            h = jnp.maximum(h, 0.0)
        h = h @ w + b
    h = h / jnp.linalg.norm(h, axis=-1, keepdims=True)
    for i, (w, b) in enumerate(dec_params):
        if i > 0:
            h = jnp.maximum(h, 0.0)
        h = h @ w + b
    h = h / jnp.linalg.norm(h, axis=-1, keepdims=True)
    return h


if __name__ == "__main__":
    # Module-consistent shapes; batch deliberately not a power-of-two multiple of
    # the tile size so the padding / stat-masking path is exercised.
    batch = 200
    feature_dim = 512
    encoder_hidden_dims = [256, 128]
    decoder_hidden_dims = [256, 512]

    key = jax.random.PRNGKey(0)
    kx, kp = jax.random.split(key)

    x = jax.random.normal(kx, (batch, feature_dim), jnp.float32)
    enc_params, dec_params = init_autoencoder_params(
        kp, feature_dim, encoder_hidden_dims, decoder_hidden_dims)

    ref = autoencoder_reference(x, enc_params, dec_params)

    # 1) Device-aware default tiling (one big tile on v5e/v6e, two tiles on v7x).
    out = jax.block_until_ready(autoencoder_forward(x, enc_params, dec_params))
    assert out.shape == (batch, decoder_hidden_dims[-1])
    assert bool(jnp.all(jnp.isfinite(out))), "non-finite output"
    max_err = float(jnp.max(jnp.abs(out - ref)))
    # bf16 MXU inputs / bf16 inter-stage activations (f32 accumulate) vs f32 ref.
    assert max_err < 2e-2, f"Pallas mismatch (default tiling), max abs err {max_err}"

    # 2) Multi-tile + padded-batch path (stat masking under pl.when) on any chip.
    out2 = jax.block_until_ready(
        autoencoder_forward(x, enc_params, dec_params, tile_rows=64))
    max_err2 = float(jnp.max(jnp.abs(out2 - ref)))
    assert max_err2 < 2e-2, f"Pallas mismatch (tiled/padded), max abs err {max_err2}"

    print("KERNEL_OK")
</pallas_src>

<mosaic_0001>
module attributes {stable_mosaic.version = 11 : i64} {
  func.func @kernel(%arg0: i32, %arg1: memref<208x512xbf16, #tpu.memory_space<vmem>>, %arg2: memref<512x256xbf16, #tpu.memory_space<vmem>>, %arg3: memref<1x256xf32, #tpu.memory_space<vmem>>, %arg4: memref<208x256xbf16, #tpu.memory_space<vmem>>, %arg5: memref<1x2x256xf32, #tpu.memory_space<vmem>>) attributes {dimension_semantics = [#tpu.dimension_semantics<parallel>], iteration_bounds = array<i64: 1>, scalar_prefetch = 0 : i64, scratch_operands = 0 : i64, tpu.core_type = #tpu.core_type<tc>, window_params = [{transform_indices = @transform_0, window_bounds = array<i64: 208, 512>}, {pipeline_mode = #tpu.pipeline_mode<synchronous>, transform_indices = @transform_1, window_bounds = array<i64: 512, 256>}, {pipeline_mode = #tpu.pipeline_mode<synchronous>, transform_indices = @transform_2, window_bounds = array<i64: 1, 256>}, {transform_indices = @transform_3, window_bounds = array<i64: 208, 256>}, {transform_indices = @transform_4, window_bounds = array<i64: 1, 2, 256>}]} {
    %c0 = arith.constant 0 : index
    %c0_0 = arith.constant 0 : index
    %0 = vector.load %arg1[%c0, %c0_0] : memref<208x512xbf16, #tpu.memory_space<vmem>>, vector<208x512xbf16>
    %c0_1 = arith.constant 0 : index
    %c0_2 = arith.constant 0 : index
    %1 = vector.load %arg2[%c0_1, %c0_2] : memref<512x256xbf16, #tpu.memory_space<vmem>>, vector<512x256xbf16>
    %c0_3 = arith.constant 0 : index
    %c0_4 = arith.constant 0 : index
    %2 = vector.load %arg3[%c0_3, %c0_4] : memref<1x256xf32, #tpu.memory_space<vmem>>, vector<1x256xf32>
    %cst = arith.constant dense<0.000000e+00> : vector<208x256xf32>
    %3 = tpu.matmul %0, %1, %cst {dimension_numbers = #tpu.dot_dimension_numbers<[1], [0], [0], [1], [0, 0, 1, 1], [], []>} : vector<208x512xbf16>, vector<512x256xbf16>, vector<208x256xf32> -> vector<208x256xf32>
    %4 = vector.broadcast %2 : vector<1x256xf32> to vector<208x256xf32>
    %5 = arith.addf %3, %4 : vector<208x256xf32>
    %6 = arith.truncf %5 : vector<208x256xf32> to vector<208x256xbf16>
    %c0_5 = arith.constant 0 : index
    %c0_6 = arith.constant 0 : index
    %7 = vector.load %arg4[%c0_5, %c0_6] : memref<208x256xbf16, #tpu.memory_space<vmem>>, vector<208x256xbf16>
    tpu.vector_store %arg4[%c0_5, %c0_6], %6 {strides = array<i32>} : memref<208x256xbf16, #tpu.memory_space<vmem>>, vector<208x256xbf16>,
    %c0_i32 = arith.constant 0 : i32
    %8 = arith.cmpi eq, %arg0, %c0_i32 : i32
    %9 = arith.extui %8 : i1 to i32
    %c0_i32_7 = arith.constant 0 : i32
    %10 = arith.cmpi ne, %9, %c0_i32_7 : i32
    scf.if %10 {
      %14 = tpu.iota {dimensions = array<i32: 0>} : vector<208x1xi32>
      %c200_i32 = arith.constant 200 : i32
      %15 = vector.broadcast %c200_i32 : i32 to vector<208x1xi32>
      %16 = arith.cmpi slt, %14, %15 : vector<208x1xi32>
      %cst_10 = arith.constant 0.000000e+00 : f32
      %17 = vector.shape_cast %16 : vector<208x1xi1> to vector<208x1xi1>
      %18 = vector.broadcast %17 : vector<208x1xi1> to vector<208x256xi1>
      %19 = vector.broadcast %cst_10 : f32 to vector<208x256xf32>
      %20 = arith.select %18, %5, %19 : vector<208x256xi1>, vector<208x256xf32>
      %cst_11 = arith.constant dense<0.000000e+00> : vector<256xf32>
      %21 = vector.multi_reduction <add>, %20, %cst_11 [0] : vector<208x256xf32> to vector<256xf32>
      %22 = vector.shape_cast %21 : vector<256xf32> to vector<1x256xf32>
      %23 = arith.mulf %20, %20 : vector<208x256xf32>
      %cst_12 = arith.constant dense<0.000000e+00> : vector<256xf32>
      %24 = vector.multi_reduction <add>, %23, %cst_12 [0] : vector<208x256xf32> to vector<256xf32>
      %25 = vector.shape_cast %24 : vector<256xf32> to vector<1x256xf32>
      %26 = tpu.concatenate %22, %25 in 0 : vector<1x256xf32>, vector<1x256xf32> -> vector<2x256xf32>
      %c0_13 = arith.constant 0 : index
      %c0_14 = arith.constant 0 : index
      %c0_15 = arith.constant 0 : index
      %27 = vector.load %arg5[%c0_13, %c0_14, %c0_15] : memref<1x2x256xf32, #tpu.memory_space<vmem>>, vector<1x2x256xf32>
      %28 = vector.shape_cast %27 : vector<1x2x256xf32> to vector<2x256xf32>
      %29 = vector.shape_cast %26 : vector<2x256xf32> to vector<1x2x256xf32>
      tpu.vector_store %arg5[%c0_13, %c0_14, %c0_15], %29 {strides = array<i32>} : memref<1x2x256xf32, #tpu.memory_space<vmem>>, vector<1x2x256xf32>,
    } else {
    }
    %c0_i32_8 = arith.constant 0 : i32
    %11 = arith.cmpi ne, %arg0, %c0_i32_8 : i32
    %12 = arith.extui %11 : i1 to i32
    %c0_i32_9 = arith.constant 0 : i32
    %13 = arith.cmpi ne, %12, %c0_i32_9 : i32
    scf.if %13 {
      %cst_10 = arith.constant dense<0.000000e+00> : vector<256xf32>
      %14 = vector.multi_reduction <add>, %5, %cst_10 [0] : vector<208x256xf32> to vector<256xf32>
      %15 = vector.shape_cast %14 : vector<256xf32> to vector<1x256xf32>
      %16 = arith.mulf %5, %5 : vector<208x256xf32>
      %cst_11 = arith.constant dense<0.000000e+00> : vector<256xf32>
      %17 = vector.multi_reduction <add>, %16, %cst_11 [0] : vector<208x256xf32> to vector<256xf32>
      %18 = vector.shape_cast %17 : vector<256xf32> to vector<1x256xf32>
      %19 = tpu.concatenate %15, %18 in 0 : vector<1x256xf32>, vector<1x256xf32> -> vector<2x256xf32>
      %c0_12 = arith.constant 0 : index
      %c0_13 = arith.constant 0 : index
      %c0_14 = arith.constant 0 : index
      %20 = vector.load %arg5[%c0_12, %c0_13, %c0_14] : memref<1x2x256xf32, #tpu.memory_space<vmem>>, vector<1x2x256xf32>
      %21 = vector.shape_cast %20 : vector<1x2x256xf32> to vector<2x256xf32>
      %22 = vector.shape_cast %19 : vector<2x256xf32> to vector<1x2x256xf32>
      tpu.vector_store %arg5[%c0_12, %c0_13, %c0_14], %22 {strides = array<i32>} : memref<1x2x256xf32, #tpu.memory_space<vmem>>, vector<1x2x256xf32>,
    } else {
    }
    return
  }
  func.func @transform_0(%arg0: i32) -> (i32, i32) {
    %c0_i32 = arith.constant 0 : i32
    %c0_i32_0 = arith.constant 0 : i32
    return %arg0, %c0_i32 : i32, i32
  }
  func.func @transform_1(%arg0: i32) -> (i32, i32) {
    %c0_i32 = arith.constant 0 : i32
    %c0_i32_0 = arith.constant 0 : i32
    %c0_i32_1 = arith.constant 0 : i32
    return %c0_i32, %c0_i32_0 : i32, i32
  }
  func.func @transform_2(%arg0: i32) -> (i32, i32) {
    %c0_i32 = arith.constant 0 : i32
    %c0_i32_0 = arith.constant 0 : i32
    %c0_i32_1 = arith.constant 0 : i32
    return %c0_i32, %c0_i32_0 : i32, i32
  }
  func.func @transform_3(%arg0: i32) -> (i32, i32) {
    %c0_i32 = arith.constant 0 : i32
    %c0_i32_0 = arith.constant 0 : i32
    return %arg0, %c0_i32 : i32, i32
  }
  func.func @transform_4(%arg0: i32) -> (i32, i32, i32) {
    %c0_i32 = arith.constant 0 : i32
    %c0_i32_0 = arith.constant 0 : i32
    %c0_i32_1 = arith.constant 0 : i32
    return %arg0, %c0_i32, %c0_i32_0 : i32, i32, i32
  }
}

module attributes {stable_mosaic.version = 11 : i64} {
  func.func @kernel(%arg0: i32, %arg1: memref<1x2x256xf32, #tpu.memory_space<vmem>>, %arg2: memref<1x256xf32, #tpu.memory_space<vmem>>, %arg3: memref<1x256xf32, #tpu.memory_space<vmem>>, %arg4: memref<208x256xbf16, #tpu.memory_space<vmem>>, %arg5: memref<256x128xbf16, #tpu.memory_space<vmem>>, %arg6: memref<1x128xf32, #tpu.memory_space<vmem>>, %arg7: memref<128x256xbf16, #tpu.memory_space<vmem>>, %arg8: memref<1x256xf32, #tpu.memory_space<vmem>>, %arg9: memref<256x512xbf16, #tpu.memory_space<vmem>>, %arg10: memref<1x512xf32, #tpu.memory_space<vmem>>, %arg11: memref<208x512xf32, #tpu.memory_space<vmem>>) attributes {dimension_semantics = [#tpu.dimension_semantics<parallel>], iteration_bounds = array<i64: 1>, scalar_prefetch = 0 : i64, scratch_operands = 0 : i64, tpu.core_type = #tpu.core_type<tc>, window_params = [{pipeline_mode = #tpu.pipeline_mode<synchronous>, transform_indices = @transform_0, window_bounds = array<i64: 1, 2, 256>}, {pipeline_mode = #tpu.pipeline_mode<synchronous>, transform_indices = @transform_1, window_bounds = array<i64: 1, 256>}, {pipeline_mode = #tpu.pipeline_mode<synchronous>, transform_indices = @transform_2, window_bounds = array<i64: 1, 256>}, {transform_indices = @transform_3, window_bounds = array<i64: 208, 256>}, {pipeline_mode = #tpu.pipeline_mode<synchronous>, transform_indices = @transform_4, window_bounds = array<i64: 256, 128>}, {pipeline_mode = #tpu.pipeline_mode<synchronous>, transform_indices = @transform_5, window_bounds = array<i64: 1, 128>}, {pipeline_mode = #tpu.pipeline_mode<synchronous>, transform_indices = @transform_6, window_bounds = array<i64: 128, 256>}, {pipeline_mode = #tpu.pipeline_mode<synchronous>, transform_indices = @transform_7, window_bounds = array<i64: 1, 256>}, {pipeline_mode = #tpu.pipeline_mode<synchronous>, transform_indices = @transform_8, window_bounds = array<i64: 256, 512>}, {pipeline_mode = #tpu.pipeline_mode<synchronous>, transform_indices = @transform_9, window_bounds = array<i64: 1, 512>}, {transform_indices = @transform_10, window_bounds = array<i64: 208, 512>}]} {
    %c0 = arith.constant 0 : index
    %c0_0 = arith.constant 0 : index
    %c0_1 = arith.constant 0 : index
    %0 = vector.load %arg1[%c0, %c0_0, %c0_1] : memref<1x2x256xf32, #tpu.memory_space<vmem>>, vector<1x2x256xf32>
    %c0_2 = arith.constant 0 : index
    %c0_3 = arith.constant 0 : index
    %1 = vector.load %arg2[%c0_2, %c0_3] : memref<1x256xf32, #tpu.memory_space<vmem>>, vector<1x256xf32>
    %c0_4 = arith.constant 0 : index
    %c0_5 = arith.constant 0 : index
    %2 = vector.load %arg3[%c0_4, %c0_5] : memref<1x256xf32, #tpu.memory_space<vmem>>, vector<1x256xf32>
    %c0_6 = arith.constant 0 : index
    %c0_7 = arith.constant 0 : index
    %3 = vector.load %arg4[%c0_6, %c0_7] : memref<208x256xbf16, #tpu.memory_space<vmem>>, vector<208x256xbf16>
    %c0_8 = arith.constant 0 : index
    %c0_9 = arith.constant 0 : index
    %4 = vector.load %arg5[%c0_8, %c0_9] : memref<256x128xbf16, #tpu.memory_space<vmem>>, vector<256x128xbf16>
    %c0_10 = arith.constant 0 : index
    %c0_11 = arith.constant 0 : index
    %5 = vector.load %arg6[%c0_10, %c0_11] : memref<1x128xf32, #tpu.memory_space<vmem>>, vector<1x128xf32>
    %6 = vector.extract_strided_slice %0 {offsets = [0, 0, 0], sizes = [1, 1, 256], strides = [1, 1, 1]} : vector<1x2x256xf32> to vector<1x1x256xf32>
    %7 = vector.shape_cast %6 : vector<1x1x256xf32> to vector<1x256xf32>
    %cst = arith.constant dense<0.000000e+00> : vector<256xf32>
    %8 = vector.multi_reduction <add>, %7, %cst [0] : vector<1x256xf32> to vector<256xf32>
    %9 = vector.shape_cast %8 : vector<256xf32> to vector<1x256xf32>
    %10 = vector.extract_strided_slice %0 {offsets = [0, 1, 0], sizes = [1, 1, 256], strides = [1, 1, 1]} : vector<1x2x256xf32> to vector<1x1x256xf32>
    %11 = vector.shape_cast %10 : vector<1x1x256xf32> to vector<1x256xf32>
    %cst_12 = arith.constant dense<0.000000e+00> : vector<256xf32>
    %12 = vector.multi_reduction <add>, %11, %cst_12 [0] : vector<1x256xf32> to vector<256xf32>
    %13 = vector.shape_cast %12 : vector<256xf32> to vector<1x256xf32>
    %cst_13 = arith.constant 5.000000e-03 : f32
    %14 = vector.broadcast %cst_13 : f32 to vector<1x256xf32>
    %15 = arith.mulf %9, %14 : vector<1x256xf32>
    %cst_14 = arith.constant 5.000000e-03 : f32
    %16 = vector.broadcast %cst_14 : f32 to vector<1x256xf32>
    %17 = arith.mulf %13, %16 : vector<1x256xf32>
    %18 = arith.mulf %15, %15 : vector<1x256xf32>
    %19 = arith.subf %17, %18 : vector<1x256xf32>
    %cst_15 = arith.constant 0.000000e+00 : f32
    %20 = vector.broadcast %cst_15 : f32 to vector<1x256xf32>
    %21 = arith.maximumf %19, %20 : vector<1x256xf32>
    %cst_16 = arith.constant 9.99999974E-6 : f32
    %22 = vector.broadcast %cst_16 : f32 to vector<1x256xf32>
    %23 = arith.addf %21, %22 : vector<1x256xf32>
    %24 = math.rsqrt %23 : vector<1x256xf32>
    %25 = arith.mulf %1, %24 : vector<1x256xf32>
    %26 = arith.mulf %15, %25 : vector<1x256xf32>
    %27 = arith.subf %2, %26 : vector<1x256xf32>
    %28 = arith.extf %3 : vector<208x256xbf16> to vector<208x256xf32>
    %29 = vector.broadcast %25 : vector<1x256xf32> to vector<208x256xf32>
    %30 = arith.mulf %28, %29 : vector<208x256xf32>
    %31 = vector.broadcast %27 : vector<1x256xf32> to vector<208x256xf32>
    %32 = arith.addf %30, %31 : vector<208x256xf32>
    %cst_17 = arith.constant 0.000000e+00 : f32
    %33 = vector.broadcast %cst_17 : f32 to vector<208x256xf32>
    %34 = arith.maximumf %32, %33 : vector<208x256xf32>
    %35 = arith.truncf %34 : vector<208x256xf32> to vector<208x256xbf16>
    %cst_18 = arith.constant dense<0.000000e+00> : vector<208x128xf32>
    %36 = tpu.matmul %35, %4, %cst_18 {dimension_numbers = #tpu.dot_dimension_numbers<[1], [0], [0], [1], [0, 0, 1, 1], [], []>} : vector<208x256xbf16>, vector<256x128xbf16>, vector<208x128xf32> -> vector<208x128xf32>
    %37 = vector.broadcast %5 : vector<1x128xf32> to vector<208x128xf32>
    %38 = arith.addf %36, %37 : vector<208x128xf32>
    %39 = arith.mulf %38, %38 : vector<208x128xf32>
    %cst_19 = arith.constant dense<0.000000e+00> : vector<208xf32>
    %40 = vector.multi_reduction <add>, %39, %cst_19 [1] : vector<208x128xf32> to vector<208xf32>
    %41 = vector.shape_cast %40 : vector<208xf32> to vector<208x1xf32>
    %cst_20 = arith.constant 1.000000e-24 : f32
    %42 = vector.broadcast %cst_20 : f32 to vector<208x1xf32>
    %43 = arith.maximumf %41, %42 : vector<208x1xf32>
    %44 = math.rsqrt %43 : vector<208x1xf32>
    %45 = vector.broadcast %44 : vector<208x1xf32> to vector<208x128xf32>
    %46 = arith.mulf %38, %45 : vector<208x128xf32>
    %c0_21 = arith.constant 0 : index
    %c0_22 = arith.constant 0 : index
    %47 = vector.load %arg7[%c0_21, %c0_22] : memref<128x256xbf16, #tpu.memory_space<vmem>>, vector<128x256xbf16>
    %c0_23 = arith.constant 0 : index
    %c0_24 = arith.constant 0 : index
    %48 = vector.load %arg8[%c0_23, %c0_24] : memref<1x256xf32, #tpu.memory_space<vmem>>, vector<1x256xf32>
    %49 = arith.truncf %46 : vector<208x128xf32> to vector<208x128xbf16>
    %cst_25 = arith.constant dense<0.000000e+00> : vector<208x256xf32>
    %50 = tpu.matmul %49, %47, %cst_25 {dimension_numbers = #tpu.dot_dimension_numbers<[1], [0], [0], [1], [0, 0, 1, 1], [], []>} : vector<208x128xbf16>, vector<128x256xbf16>, vector<208x256xf32> -> vector<208x256xf32>
    %51 = vector.broadcast %48 : vector<1x256xf32> to vector<208x256xf32>
    %52 = arith.addf %50, %51 : vector<208x256xf32>
    %cst_26 = arith.constant 0.000000e+00 : f32
    %53 = vector.broadcast %cst_26 : f32 to vector<208x256xf32>
    %54 = arith.maximumf %52, %53 : vector<208x256xf32>
    %c0_27 = arith.constant 0 : index
    %c0_28 = arith.constant 0 : index
    %55 = vector.load %arg9[%c0_27, %c0_28] : memref<256x512xbf16, #tpu.memory_space<vmem>>, vector<256x512xbf16>
    %c0_29 = arith.constant 0 : index
    %c0_30 = arith.constant 0 : index
    %56 = vector.load %arg10[%c0_29, %c0_30] : memref<1x512xf32, #tpu.memory_space<vmem>>, vector<1x512xf32>
    %57 = arith.truncf %54 : vector<208x256xf32> to vector<208x256xbf16>
    %cst_31 = arith.constant dense<0.000000e+00> : vector<208x512xf32>
    %58 = tpu.matmul %57, %55, %cst_31 {dimension_numbers = #tpu.dot_dimension_numbers<[1], [0], [0], [1], [0, 0, 1, 1], [], []>} : vector<208x256xbf16>, vector<256x512xbf16>, vector<208x512xf32> -> vector<208x512xf32>
    %59 = vector.broadcast %56 : vector<1x512xf32> to vector<208x512xf32>
    %60 = arith.addf %58, %59 : vector<208x512xf32>
    %61 = arith.mulf %60, %60 : vector<208x512xf32>
    %cst_32 = arith.constant dense<0.000000e+00> : vector<208xf32>
    %62 = vector.multi_reduction <add>, %61, %cst_32 [1] : vector<208x512xf32> to vector<208xf32>
    %63 = vector.shape_cast %62 : vector<208xf32> to vector<208x1xf32>
    %cst_33 = arith.constant 1.000000e-24 : f32
    %64 = vector.broadcast %cst_33 : f32 to vector<208x1xf32>
    %65 = arith.maximumf %63, %64 : vector<208x1xf32>
    %66 = math.rsqrt %65 : vector<208x1xf32>
    %67 = vector.broadcast %66 : vector<208x1xf32> to vector<208x512xf32>
    %68 = arith.mulf %60, %67 : vector<208x512xf32>
    %c0_34 = arith.constant 0 : index
    %c0_35 = arith.constant 0 : index
    %69 = vector.load %arg11[%c0_34, %c0_35] : memref<208x512xf32, #tpu.memory_space<vmem>>, vector<208x512xf32>
    tpu.vector_store %arg11[%c0_34, %c0_35], %68 {strides = array<i32>} : memref<208x512xf32, #tpu.memory_space<vmem>>, vector<208x512xf32>,
    return
  }
  func.func @transform_0(%arg0: i32) -> (i32, i32, i32) {
    %c0_i32 = arith.constant 0 : i32
    %c0_i32_0 = arith.constant 0 : i32
    %c0_i32_1 = arith.constant 0 : i32
    %c0_i32_2 = arith.constant 0 : i32
    return %c0_i32, %c0_i32_0, %c0_i32_1 : i32, i32, i32
  }
  func.func @transform_1(%arg0: i32) -> (i32, i32) {
    %c0_i32 = arith.constant 0 : i32
    %c0_i32_0 = arith.constant 0 : i32
    %c0_i32_1 = arith.constant 0 : i32
    return %c0_i32, %c0_i32_0 : i32, i32
  }
  func.func @transform_2(%arg0: i32) -> (i32, i32) {
    %c0_i32 = arith.constant 0 : i32
    %c0_i32_0 = arith.constant 0 : i32
    %c0_i32_1 = arith.constant 0 : i32
    return %c0_i32, %c0_i32_0 : i32, i32
  }
  func.func @transform_3(%arg0: i32) -> (i32, i32) {
    %c0_i32 = arith.constant 0 : i32
    %c0_i32_0 = arith.constant 0 : i32
    return %arg0, %c0_i32 : i32, i32
  }
  func.func @transform_4(%arg0: i32) -> (i32, i32) {
    %c0_i32 = arith.constant 0 : i32
    %c0_i32_0 = arith.constant 0 : i32
    %c0_i32_1 = arith.constant 0 : i32
    return %c0_i32, %c0_i32_0 : i32, i32
  }
  func.func @transform_5(%arg0: i32) -> (i32, i32) {
    %c0_i32 = arith.constant 0 : i32
    %c0_i32_0 = arith.constant 0 : i32
    %c0_i32_1 = arith.constant 0 : i32
    return %c0_i32, %c0_i32_0 : i32, i32
  }
  func.func @transform_6(%arg0: i32) -> (i32, i32) {
    %c0_i32 = arith.constant 0 : i32
    %c0_i32_0 = arith.constant 0 : i32
    %c0_i32_1 = arith.constant 0 : i32
    return %c0_i32, %c0_i32_0 : i32, i32
  }
  func.func @transform_7(%arg0: i32) -> (i32, i32) {
    %c0_i32 = arith.constant 0 : i32
    %c0_i32_0 = arith.constant 0 : i32
    %c0_i32_1 = arith.constant 0 : i32
    return %c0_i32, %c0_i32_0 : i32, i32
  }
  func.func @transform_8(%arg0: i32) -> (i32, i32) {
    %c0_i32 = arith.constant 0 : i32
    %c0_i32_0 = arith.constant 0 : i32
    %c0_i32_1 = arith.constant 0 : i32
    return %c0_i32, %c0_i32_0 : i32, i32
  }
  func.func @transform_9(%arg0: i32) -> (i32, i32) {
    %c0_i32 = arith.constant 0 : i32
    %c0_i32_0 = arith.constant 0 : i32
    %c0_i32_1 = arith.constant 0 : i32
    return %c0_i32, %c0_i32_0 : i32, i32
  }
  func.func @transform_10(%arg0: i32) -> (i32, i32) {
    %c0_i32 = arith.constant 0 : i32
    %c0_i32_0 = arith.constant 0 : i32
    return %arg0, %c0_i32 : i32, i32
  }
}

</mosaic_0001>

<llo_original>
// kernel: autoencoder_forward.2
$region0: #{autoencoder_forward.2}
  #allocation0 [shape = 'u32[]', space=smem, size = 0x4, offset = 0x4, fixed_abs, tag = 'smem constant byte address 0x4 - core index']
  #allocation1 [shape = 'u32[144,128]{1,0:T(1,128)}', space=vmem, size = 0x12000, scoped, tag = 'internal scratch']
  %s0 = inlined_call_operand.vmem [shape: bf16[208,512], index: 0, kind: input, shape index: {}]
  %s1 = inlined_call_operand.vmem [shape: bf16[512,256], index: 1, kind: input, shape index: {}]
  %s2 = inlined_call_operand.vmem [shape: f32[1,256], index: 2, kind: input, shape index: {}]
  %s3 = inlined_call_operand.vmem [shape: bf16[208,256], index: 3, kind: output, shape index: {0}]
  %s4 = inlined_call_operand.vmem [shape: f32[1,2,256], index: 4, kind: output, shape index: {1}]
  %5 = xla_tuple %s3, %s4
  %s6 = sld [smem:[#allocation0]]
  $region38: #{autoencoder_forward.2} parent=0
    _
  %s8 = ssub.s32 1, %s6
  %s9 = scalar_select 0, %s8, %s6
  // Predicated region
  $region2: #{autoencoder_forward.2} parent=0 // pred_check
    _
  $region3: #{autoencoder_forward.2} parent=0 // pred_check_branch
    %11 = sbr.rel (0) target = $region5
  $region4: #{autoencoder_forward.2} parent=0 // pred_region
    _
  $region5: #{autoencoder_forward.2} parent=0 // pred_fallthru
    _
  // Predicated region
  $region6: #{autoencoder_forward.2} parent=0 // pred_check
    _
  $region7: #{autoencoder_forward.2} parent=0 // pred_check_branch
    %13 = sbr.rel (0) target = $region9
  $region8: #{autoencoder_forward.2} parent=0 // pred_region
    _
  $region9: #{autoencoder_forward.2} parent=0 // pred_fallthru
    _
  // Predicated region
  $region10: #{autoencoder_forward.2} parent=0 // pred_check
    _
  $region11: #{autoencoder_forward.2} parent=0 // pred_check_branch
    %15 = sbr.rel (0) target = $region13
  $region12: #{autoencoder_forward.2} parent=0 // pred_region
    _
  $region13: #{autoencoder_forward.2} parent=0 // pred_fallthru
    _
  %v16 = vld [vmem:[%s0] sm:$0xff]
  %v17 = vld [vmem:[%s0 + $0x8] sm:$0xff]
  %v18 = vld [vmem:[%s0 + $0x10] sm:$0xff]
  %v19 = vld [vmem:[%s0 + $0x18] sm:$0xff]
  %v20 = vld [vmem:[%s0 + $0x20] sm:$0xff]
  %v21 = vld [vmem:[%s0 + $0x28] sm:$0xff]
  %v22 = vld [vmem:[%s0 + $0x30] sm:$0xff]
  %v23 = vld [vmem:[%s0 + $0x38] sm:$0xff]
  %v24 = vld [vmem:[%s0 + $0x40] sm:$0xff]
  %v25 = vld [vmem:[%s0 + $0x48] sm:$0xff]
  %v26 = vld [vmem:[%s0 + $0x50] sm:$0xff]
  %v27 = vld [vmem:[%s0 + $0x58] sm:$0xff]
  %v28 = vld [vmem:[%s0 + $0x60] sm:$0xff]
  %v29 = vld [vmem:[%s0 + $0x68] sm:$0xff]
  %v30 = vld [vmem:[%s0 + $0x70] sm:$0xff]
  %v31 = vld [vmem:[%s0 + $0x78] sm:$0xff]
  %v32 = vld [vmem:[%s0 + $0x80] sm:$0xff]
  %v33 = vld [vmem:[%s0 + $0x88] sm:$0xff]
  %v34 = vld [vmem:[%s0 + $0x90] sm:$0xff]
  %v35 = vld [vmem:[%s0 + $0x98] sm:$0xff]
  %v36 = vld [vmem:[%s0 + $0xa0] sm:$0xff]
  %v37 = vld [vmem:[%s0 + $0xa8] sm:$0xff]
  %v38 = vld [vmem:[%s0 + $0xb0] sm:$0xff]
  %v39 = vld [vmem:[%s0 + $0xb8] sm:$0xff]
  %v40 = vld [vmem:[%s0 + $0xc0] sm:$0xff]
  %v41 = vld [vmem:[%s0 + $0xc8] sm:$0xff]
  %v42 = vld [vmem:[%s0 + $0xd0] sm:$0xff]
  %v43 = vld [vmem:[%s0 + $0xd8] sm:$0xff]
  %v44 = vld [vmem:[%s0 + $0xe0] sm:$0xff]
  %v45 = vld [vmem:[%s0 + $0xe8] sm:$0xff]
  %v46 = vld [vmem:[%s0 + $0xf0] sm:$0xff]
  %v47 = vld [vmem:[%s0 + $0xf8] sm:$0xff]
  %v48 = vld [vmem:[%s0 + $0x100] sm:$0xff]
  %v49 = vld [vmem:[%s0 + $0x108] sm:$0xff]
  %v50 = vld [vmem:[%s0 + $0x110] sm:$0xff]
  %v51 = vld [vmem:[%s0 + $0x118] sm:$0xff]
  %v52 = vld [vmem:[%s0 + $0x120] sm:$0xff]
  %v53 = vld [vmem:[%s0 + $0x128] sm:$0xff]
  %v54 = vld [vmem:[%s0 + $0x130] sm:$0xff]
  %v55 = vld [vmem:[%s0 + $0x138] sm:$0xff]
  %v56 = vld [vmem:[%s0 + $0x140] sm:$0xff]
  %v57 = vld [vmem:[%s0 + $0x148] sm:$0xff]
  %v58 = vld [vmem:[%s0 + $0x150] sm:$0xff]
  %v59 = vld [vmem:[%s0 + $0x158] sm:$0xff]
  %v60 = vld [vmem:[%s0 + $0x160] sm:$0xff]
  %v61 = vld [vmem:[%s0 + $0x168] sm:$0xff]
  %v62 = vld [vmem:[%s0 + $0x170] sm:$0xff]
  %v63 = vld [vmem:[%s0 + $0x178] sm:$0xff]
  %v64 = vld [vmem:[%s0 + $0x180] sm:$0xff]
  %v65 = vld [vmem:[%s0 + $0x188] sm:$0xff]
  %v66 = vld [vmem:[%s0 + $0x190] sm:$0xff]
  %v67 = vld [vmem:[%s0 + $0x198] sm:$0xff]
  %v68 = vld [vmem:[%s1] sm:$0xff]
  %v69 = vld [vmem:[%s1 + $0x8] sm:$0xff]
  %v70 = vld [vmem:[%s1 + $0x10] sm:$0xff]
  %v71 = vld [vmem:[%s1 + $0x18] sm:$0xff]
  %v72 = vld [vmem:[%s1 + $0x20] sm:$0xff]
  %v73 = vld [vmem:[%s1 + $0x28] sm:$0xff]
  %v74 = vld [vmem:[%s1 + $0x30] sm:$0xff]
  %v75 = vld [vmem:[%s1 + $0x38] sm:$0xff]
  %v76 = vld [vmem:[%s1 + $0x40] sm:$0xff]
  %v77 = vld [vmem:[%s1 + $0x48] sm:$0xff]
  %v78 = vld [vmem:[%s1 + $0x50] sm:$0xff]
  %v79 = vld [vmem:[%s1 + $0x58] sm:$0xff]
  %v80 = vld [vmem:[%s1 + $0x60] sm:$0xff]
  %v81 = vld [vmem:[%s1 + $0x68] sm:$0xff]
  %v82 = vld [vmem:[%s1 + $0x70] sm:$0xff]
  %v83 = vld [vmem:[%s1 + $0x78] sm:$0xff]
  %v84 = vld [vmem:[%s1 + $0x80] sm:$0xff]
  %v85 = vld [vmem:[%s1 + $0x88] sm:$0xff]
  %v86 = vld [vmem:[%s1 + $0x90] sm:$0xff]
  %v87 = vld [vmem:[%s1 + $0x98] sm:$0xff]
  %v88 = vld [vmem:[%s1 + $0xa0] sm:$0xff]
  %v89 = vld [vmem:[%s1 + $0xa8] sm:$0xff]
  %v90 = vld [vmem:[%s1 + $0xb0] sm:$0xff]
  %v91 = vld [vmem:[%s1 + $0xb8] sm:$0xff]
  %v92 = vld [vmem:[%s1 + $0xc0] sm:$0xff]
  %v93 = vld [vmem:[%s1 + $0xc8] sm:$0xff]
  %v94 = vld [vmem:[%s1 + $0xd0] sm:$0xff]
  %v95 = vld [vmem:[%s1 + $0xd8] sm:$0xff]
  %v96 = vld [vmem:[%s1 + $0xe0] sm:$0xff]
  %v97 = vld [vmem:[%s1 + $0xe8] sm:$0xff]
  %v98 = vld [vmem:[%s1 + $0xf0] sm:$0xff]
  %v99 = vld [vmem:[%s1 + $0xf8] sm:$0xff]
  %v100 = vld [vmem:[%s1 + $0x100] sm:$0xff]
  %v101 = vld [vmem:[%s1 + $0x108] sm:$0xff]
  %v102 = vld [vmem:[%s1 + $0x110] sm:$0xff]
  %v103 = vld [vmem:[%s1 + $0x118] sm:$0xff]
  %v104 = vld [vmem:[%s1 + $0x120] sm:$0xff]
  %v105 = vld [vmem:[%s1 + $0x128] sm:$0xff]
  %v106 = vld [vmem:[%s1 + $0x130] sm:$0xff]
  %v107 = vld [vmem:[%s1 + $0x138] sm:$0xff]
  %v108 = vld [vmem:[%s1 + $0x140] sm:$0xff]
  %v109 = vld [vmem:[%s1 + $0x148] sm:$0xff]
  %v110 = vld [vmem:[%s1 + $0x150] sm:$0xff]
  %v111 = vld [vmem:[%s1 + $0x158] sm:$0xff]
  %v112 = vld [vmem:[%s1 + $0x160] sm:$0xff]
  %v113 = vld [vmem:[%s1 + $0x168] sm:$0xff]
  %v114 = vld [vmem:[%s1 + $0x170] sm:$0xff]
  %v115 = vld [vmem:[%s1 + $0x178] sm:$0xff]
  %v116 = vld [vmem:[%s1 + $0x180] sm:$0xff]
  %v117 = vld [vmem:[%s1 + $0x188] sm:$0xff]
  %v118 = vld [vmem:[%s1 + $0x190] sm:$0xff]
  %v119 = vld [vmem:[%s1 + $0x198] sm:$0xff]
  %v120 = vld [vmem:[%s1 + $0x1a0] sm:$0xff]
  %v121 = vld [vmem:[%s1 + $0x1a8] sm:$0xff]
  %v122 = vld [vmem:[%s1 + $0x1b0] sm:$0xff]
  %v123 = vld [vmem:[%s1 + $0x1b8] sm:$0xff]
  %v124 = vld [vmem:[%s1 + $0x1c0] sm:$0xff]
  %v125 = vld [vmem:[%s1 + $0x1c8] sm:$0xff]
  %v126 = vld [vmem:[%s1 + $0x1d0] sm:$0xff]
  %v127 = vld [vmem:[%s1 + $0x1d8] sm:$0xff]
  %v128 = vld [vmem:[%s1 + $0x1e0] sm:$0xff]
  %v129 = vld [vmem:[%s1 + $0x1e8] sm:$0xff]
  %v130 = vld [vmem:[%s1 + $0x1f0] sm:$0xff]
  %v131 = vld [vmem:[%s1 + $0x1f8] sm:$0xff]
  %v132 = vld [vmem:[%s2] sm:$0x3]
  %v134 = vlaneseq
  %v135 = vshrl.u32 %v134, 7
  %v136 = vsub.s32 0, %v135
  %v137 = vrot.slane %v132, %v136
  %v138 = vlaneseq
  %v139 = vshrl.u32 %v138, 7
  %v140 = vsub.s32 1, %v139
  %v141 = vrot.slane %v132, %v140
  %v196 = vunpack.c.l.b16 %v16
  %v197 = vunpack.c.h.b16 %v16
  %v198 = vunpack.c.l.b16 %v17
  %v199 = vunpack.c.h.b16 %v17
  %v200 = vunpack.c.l.b16 %v18
  %v201 = vunpack.c.h.b16 %v18
  %v202 = vunpack.c.l.b16 %v19
  %v203 = vunpack.c.h.b16 %v19
  %v204 = vunpack.c.l.b16 %v20
  %v205 = vunpack.c.h.b16 %v20
  %v206 = vunpack.c.l.b16 %v21
  %v207 = vunpack.c.h.b16 %v21
  %v208 = vunpack.c.l.b16 %v22
  %v209 = vunpack.c.h.b16 %v22
  %v210 = vunpack.c.l.b16 %v23
  %v211 = vunpack.c.h.b16 %v23
  %v212 = vunpack.c.l.b16 %v24
  %v213 = vunpack.c.h.b16 %v24
  %v214 = vunpack.c.l.b16 %v25
  %v215 = vunpack.c.h.b16 %v25
  %v216 = vunpack.c.l.b16 %v26
  %v217 = vunpack.c.h.b16 %v26
  %v218 = vunpack.c.l.b16 %v27
  %v219 = vunpack.c.h.b16 %v27
  %v220 = vunpack.c.l.b16 %v28
  %v221 = vunpack.c.h.b16 %v28
  %v222 = vunpack.c.l.b16 %v29
  %v223 = vunpack.c.h.b16 %v29
  %v224 = vunpack.c.l.b16 %v30
  %v225 = vunpack.c.h.b16 %v30
  %v226 = vunpack.c.l.b16 %v31
  %v227 = vunpack.c.h.b16 %v31
  %v228 = vunpack.c.l.b16 %v32
  %v229 = vunpack.c.h.b16 %v32
  %v230 = vunpack.c.l.b16 %v33
  %v231 = vunpack.c.h.b16 %v33
  %v232 = vunpack.c.l.b16 %v34
  %v233 = vunpack.c.h.b16 %v34
  %v234 = vunpack.c.l.b16 %v35
  %v235 = vunpack.c.h.b16 %v35
  %v236 = vunpack.c.l.b16 %v36
  %v237 = vunpack.c.h.b16 %v36
  %v238 = vunpack.c.l.b16 %v37
  %v239 = vunpack.c.h.b16 %v37
  %v240 = vunpack.c.l.b16 %v38
  %v241 = vunpack.c.h.b16 %v38
  %v242 = vunpack.c.l.b16 %v39
  %v243 = vunpack.c.h.b16 %v39
  %v244 = vunpack.c.l.b16 %v40
  %v245 = vunpack.c.h.b16 %v40
  %v246 = vunpack.c.l.b16 %v41
  %v247 = vunpack.c.h.b16 %v41
  %v248 = vunpack.c.l.b16 %v42
  %v249 = vunpack.c.h.b16 %v42
  %v250 = vunpack.c.l.b16 %v43
  %v251 = vunpack.c.h.b16 %v43
  %v252 = vunpack.c.l.b16 %v44
  %v253 = vunpack.c.h.b16 %v44
  %v254 = vunpack.c.l.b16 %v45
  %v255 = vunpack.c.h.b16 %v45
  %v256 = vunpack.c.l.b16 %v46
  %v257 = vunpack.c.h.b16 %v46
  %v258 = vunpack.c.l.b16 %v47
  %v259 = vunpack.c.h.b16 %v47
  %v260 = vunpack.c.l.b16 %v48
  %v261 = vunpack.c.h.b16 %v48
  %v262 = vunpack.c.l.b16 %v49
  %v263 = vunpack.c.h.b16 %v49
  %v264 = vunpack.c.l.b16 %v50
  %v265 = vunpack.c.h.b16 %v50
  %v266 = vunpack.c.l.b16 %v51
  %v267 = vunpack.c.h.b16 %v51
  %v268 = vunpack.c.l.b16 %v52
  %v269 = vunpack.c.h.b16 %v52
  %v270 = vunpack.c.l.b16 %v53
  %v271 = vunpack.c.h.b16 %v53
  %v272 = vunpack.c.l.b16 %v54
  %v273 = vunpack.c.h.b16 %v54
  %v274 = vunpack.c.l.b16 %v55
  %v275 = vunpack.c.h.b16 %v55
  %v276 = vunpack.c.l.b16 %v56
  %v277 = vunpack.c.h.b16 %v56
  %v278 = vunpack.c.l.b16 %v57
  %v279 = vunpack.c.h.b16 %v57
  %v280 = vunpack.c.l.b16 %v58
  %v281 = vunpack.c.h.b16 %v58
  %v282 = vunpack.c.l.b16 %v59
  %v283 = vunpack.c.h.b16 %v59
  %v284 = vunpack.c.l.b16 %v60
  %v285 = vunpack.c.h.b16 %v60
  %v286 = vunpack.c.l.b16 %v61
  %v287 = vunpack.c.h.b16 %v61
  %v288 = vunpack.c.l.b16 %v62
  %v289 = vunpack.c.h.b16 %v62
  %v290 = vunpack.c.l.b16 %v63
  %v291 = vunpack.c.h.b16 %v63
  %v292 = vunpack.c.l.b16 %v64
  %v293 = vunpack.c.h.b16 %v64
  %v294 = vunpack.c.l.b16 %v65
  %v295 = vunpack.c.h.b16 %v65
  %v296 = vunpack.c.l.b16 %v66
  %v297 = vunpack.c.h.b16 %v66
  %v298 = vunpack.c.l.b16 %v67
  %v299 = vunpack.c.h.b16 %v67
  %v300 = vpack.c.b16 %v200, %v196
  %v301 = vpack.c.b16 %v201, %v197
  %v302 = vpack.c.b16 %v202, %v198
  %v303 = vpack.c.b16 %v203, %v199
  %v304 = vpack.c.b16 %v208, %v204
  %v305 = vpack.c.b16 %v209, %v205
  %v306 = vpack.c.b16 %v210, %v206
  %v307 = vpack.c.b16 %v211, %v207
  %v308 = vpack.c.b16 %v216, %v212
  %v309 = vpack.c.b16 %v217, %v213
  %v310 = vpack.c.b16 %v218, %v214
  %v311 = vpack.c.b16 %v219, %v215
  %v312 = vpack.c.b16 %v224, %v220
  %v313 = vpack.c.b16 %v225, %v221
  %v314 = vpack.c.b16 %v226, %v222
  %v315 = vpack.c.b16 %v227, %v223
  %v316 = vpack.c.b16 %v232, %v228
  %v317 = vpack.c.b16 %v233, %v229
  %v318 = vpack.c.b16 %v234, %v230
  %v319 = vpack.c.b16 %v235, %v231
  %v320 = vpack.c.b16 %v240, %v236
  %v321 = vpack.c.b16 %v241, %v237
  %v322 = vpack.c.b16 %v242, %v238
  %v323 = vpack.c.b16 %v243, %v239
  %v324 = vpack.c.b16 %v248, %v244
  %v325 = vpack.c.b16 %v249, %v245
  %v326 = vpack.c.b16 %v250, %v246
  %v327 = vpack.c.b16 %v251, %v247
  %v328 = vpack.c.b16 %v256, %v252
  %v329 = vpack.c.b16 %v257, %v253
  %v330 = vpack.c.b16 %v258, %v254
  %v331 = vpack.c.b16 %v259, %v255
  %v332 = vpack.c.b16 %v264, %v260
  %v333 = vpack.c.b16 %v265, %v261
  %v334 = vpack.c.b16 %v266, %v262
  %v335 = vpack.c.b16 %v267, %v263
  %v336 = vpack.c.b16 %v272, %v268
  %v337 = vpack.c.b16 %v273, %v269
  %v338 = vpack.c.b16 %v274, %v270
  %v339 = vpack.c.b16 %v275, %v271
  %v340 = vpack.c.b16 %v280, %v276
  %v341 = vpack.c.b16 %v281, %v277
  %v342 = vpack.c.b16 %v282, %v278
  %v343 = vpack.c.b16 %v283, %v279
  %v344 = vpack.c.b16 %v288, %v284
  %v345 = vpack.c.b16 %v289, %v285
  %v346 = vpack.c.b16 %v290, %v286
  %v347 = vpack.c.b16 %v291, %v287
  %v348 = vpack.c.b16 %v296, %v292
  %v349 = vpack.c.b16 %v297, %v293
  %v350 = vpack.c.b16 %v298, %v294
  %v351 = vpack.c.b16 %v299, %v295
  %v468 = vunpack.c.l.b16 %v68
  %v469 = vunpack.c.h.b16 %v68
  %v470 = vunpack.c.l.b16 %v69
  %v471 = vunpack.c.h.b16 %v69
  %v472 = vunpack.c.l.b16 %v70
  %v473 = vunpack.c.h.b16 %v70
  %v474 = vunpack.c.l.b16 %v71
  %v475 = vunpack.c.h.b16 %v71
  %v476 = vunpack.c.l.b16 %v72
  %v477 = vunpack.c.h.b16 %v72
  %v478 = vunpack.c.l.b16 %v73
  %v479 = vunpack.c.h.b16 %v73
  %v480 = vunpack.c.l.b16 %v74
  %v481 = vunpack.c.h.b16 %v74
  %v482 = vunpack.c.l.b16 %v75
  %v483 = vunpack.c.h.b16 %v75
  %v484 = vunpack.c.l.b16 %v76
  %v485 = vunpack.c.h.b16 %v76
  %v486 = vunpack.c.l.b16 %v77
  %v487 = vunpack.c.h.b16 %v77
  %v488 = vunpack.c.l.b16 %v78
  %v489 = vunpack.c.h.b16 %v78
  %v490 = vunpack.c.l.b16 %v79
  %v491 = vunpack.c.h.b16 %v79
  %v492 = vunpack.c.l.b16 %v80
  %v493 = vunpack.c.h.b16 %v80
  %v494 = vunpack.c.l.b16 %v81
  %v495 = vunpack.c.h.b16 %v81
  %v496 = vunpack.c.l.b16 %v82
  %v497 = vunpack.c.h.b16 %v82
  %v498 = vunpack.c.l.b16 %v83
  %v499 = vunpack.c.h.b16 %v83
  %v500 = vunpack.c.l.b16 %v84
  %v501 = vunpack.c.h.b16 %v84
  %v502 = vunpack.c.l.b16 %v85
  %v503 = vunpack.c.h.b16 %v85
  %v504 = vunpack.c.l.b16 %v86
  %v505 = vunpack.c.h.b16 %v86
  %v506 = vunpack.c.l.b16 %v87
  %v507 = vunpack.c.h.b16 %v87
  %v508 = vunpack.c.l.b16 %v88
  %v509 = vunpack.c.h.b16 %v88
  %v510 = vunpack.c.l.b16 %v89
  %v511 = vunpack.c.h.b16 %v89
  %v512 = vunpack.c.l.b16 %v90
  %v513 = vunpack.c.h.b16 %v90
  %v514 = vunpack.c.l.b16 %v91
  %v515 = vunpack.c.h.b16 %v91
  %v516 = vunpack.c.l.b16 %v92
  %v517 = vunpack.c.h.b16 %v92
  %v518 = vunpack.c.l.b16 %v93
  %v519 = vunpack.c.h.b16 %v93
  %v520 = vunpack.c.l.b16 %v94
  %v521 = vunpack.c.h.b16 %v94
  %v522 = vunpack.c.l.b16 %v95
  %v523 = vunpack.c.h.b16 %v95
  %v524 = vunpack.c.l.b16 %v96
  %v525 = vunpack.c.h.b16 %v96
  %v526 = vunpack.c.l.b16 %v97
  %v527 = vunpack.c.h.b16 %v97
  %v528 = vunpack.c.l.b16 %v98
  %v529 = vunpack.c.h.b16 %v98
  %v530 = vunpack.c.l.b16 %v99
  %v531 = vunpack.c.h.b16 %v99
  %v532 = vunpack.c.l.b16 %v100
  %v533 = vunpack.c.h.b16 %v100
  %v534 = vunpack.c.l.b16 %v101
  %v535 = vunpack.c.h.b16 %v101
  %v536 = vunpack.c.l.b16 %v102
  %v537 = vunpack.c.h.b16 %v102
  %v538 = vunpack.c.l.b16 %v103
  %v539 = vunpack.c.h.b16 %v103
  %v540 = vunpack.c.l.b16 %v104
  %v541 = vunpack.c.h.b16 %v104
  %v542 = vunpack.c.l.b16 %v105
  %v543 = vunpack.c.h.b16 %v105
  %v544 = vunpack.c.l.b16 %v106
  %v545 = vunpack.c.h.b16 %v106
  %v546 = vunpack.c.l.b16 %v107
  %v547 = vunpack.c.h.b16 %v107
  %v548 = vunpack.c.l.b16 %v108
  %v549 = vunpack.c.h.b16 %v108
  %v550 = vunpack.c.l.b16 %v109
  %v551 = vunpack.c.h.b16 %v109
  %v552 = vunpack.c.l.b16 %v110
  %v553 = vunpack.c.h.b16 %v110
  %v554 = vunpack.c.l.b16 %v111
  %v555 = vunpack.c.h.b16 %v111
  %v556 = vunpack.c.l.b16 %v112
  %v557 = vunpack.c.h.b16 %v112
  %v558 = vunpack.c.l.b16 %v113
  %v559 = vunpack.c.h.b16 %v113
  %v560 = vunpack.c.l.b16 %v114
  %v561 = vunpack.c.h.b16 %v114
  %v562 = vunpack.c.l.b16 %v115
  %v563 = vunpack.c.h.b16 %v115
  %v564 = vunpack.c.l.b16 %v116
  %v565 = vunpack.c.h.b16 %v116
  %v566 = vunpack.c.l.b16 %v117
  %v567 = vunpack.c.h.b16 %v117
  %v568 = vunpack.c.l.b16 %v118
  %v569 = vunpack.c.h.b16 %v118
  %v570 = vunpack.c.l.b16 %v119
  %v571 = vunpack.c.h.b16 %v119
  %v572 = vunpack.c.l.b16 %v120
  %v573 = vunpack.c.h.b16 %v120
  %v574 = vunpack.c.l.b16 %v121
  %v575 = vunpack.c.h.b16 %v121
  %v576 = vunpack.c.l.b16 %v122
  %v577 = vunpack.c.h.b16 %v122
  %v578 = vunpack.c.l.b16 %v123
  %v579 = vunpack.c.h.b16 %v123
  %v580 = vunpack.c.l.b16 %v124
  %v581 = vunpack.c.h.b16 %v124
  %v582 = vunpack.c.l.b16 %v125
  %v583 = vunpack.c.h.b16 %v125
  %v584 = vunpack.c.l.b16 %v126
  %v585 = vunpack.c.h.b16 %v126
  %v586 = vunpack.c.l.b16 %v127
  %v587 = vunpack.c.h.b16 %v127
  %v588 = vunpack.c.l.b16 %v128
  %v589 = vunpack.c.h.b16 %v128
  %v590 = vunpack.c.l.b16 %v129
  %v591 = vunpack.c.h.b16 %v129
  %v592 = vunpack.c.l.b16 %v130
  %v593 = vunpack.c.h.b16 %v130
  %v594 = vunpack.c.l.b16 %v131
  %v595 = vunpack.c.h.b16 %v131
  %v596 = vpack.c.b16 %v470, %v468
  %v597 = vpack.c.b16 %v471, %v469
  %v598 = vpack.c.b16 %v474, %v472
  %v599 = vpack.c.b16 %v475, %v473
  %v600 = vpack.c.b16 %v478, %v476
  %v601 = vpack.c.b16 %v479, %v477
  %v602 = vpack.c.b16 %v482, %v480
  %v603 = vpack.c.b16 %v483, %v481
  %v604 = vpack.c.b16 %v486, %v484
  %v605 = vpack.c.b16 %v487, %v485
  %v606 = vpack.c.b16 %v490, %v488
  %v607 = vpack.c.b16 %v491, %v489
  %v608 = vpack.c.b16 %v494, %v492
  %v609 = vpack.c.b16 %v495, %v493
  %v610 = vpack.c.b16 %v498, %v496
  %v611 = vpack.c.b16 %v499, %v497
  %v612 = vpack.c.b16 %v502, %v500
  %v613 = vpack.c.b16 %v503, %v501
  %v614 = vpack.c.b16 %v506, %v504
  %v615 = vpack.c.b16 %v507, %v505
  %v616 = vpack.c.b16 %v510, %v508
  %v617 = vpack.c.b16 %v511, %v509
  %v618 = vpack.c.b16 %v514, %v512
  %v619 = vpack.c.b16 %v515, %v513
  %v620 = vpack.c.b16 %v518, %v516
  %v621 = vpack.c.b16 %v519, %v517
  %v622 = vpack.c.b16 %v522, %v520
  %v623 = vpack.c.b16 %v523, %v521
  %v624 = vpack.c.b16 %v526, %v524
  %v625 = vpack.c.b16 %v527, %v525
  %v626 = vpack.c.b16 %v530, %v528
  %v627 = vpack.c.b16 %v531, %v529
  %v628 = vpack.c.b16 %v534, %v532
  %v629 = vpack.c.b16 %v535, %v533
  %v630 = vpack.c.b16 %v538, %v536
  %v631 = vpack.c.b16 %v539, %v537
  %v632 = vpack.c.b16 %v542, %v540
  %v633 = vpack.c.b16 %v543, %v541
  %v634 = vpack.c.b16 %v546, %v544
  %v635 = vpack.c.b16 %v547, %v545
  %v636 = vpack.c.b16 %v550, %v548
  %v637 = vpack.c.b16 %v551, %v549
  %v638 = vpack.c.b16 %v554, %v552
  %v639 = vpack.c.b16 %v555, %v553
  %v640 = vpack.c.b16 %v558, %v556
  %v641 = vpack.c.b16 %v559, %v557
  %v642 = vpack.c.b16 %v562, %v560
  %v643 = vpack.c.b16 %v563, %v561
  %v644 = vpack.c.b16 %v566, %v564
  %v645 = vpack.c.b16 %v567, %v565
  %v646 = vpack.c.b16 %v570, %v568
  %v647 = vpack.c.b16 %v571, %v569
  %v648 = vpack.c.b16 %v574, %v572
  %v649 = vpack.c.b16 %v575, %v573
  %v650 = vpack.c.b16 %v578, %v576
  %v651 = vpack.c.b16 %v579, %v577
  %v652 = vpack.c.b16 %v582, %v580
  %v653 = vpack.c.b16 %v583, %v581
  %v654 = vpack.c.b16 %v586, %v584
  %v655 = vpack.c.b16 %v587, %v585
  %v656 = vpack.c.b16 %v590, %v588
  %v657 = vpack.c.b16 %v591, %v589
  %v658 = vpack.c.b16 %v594, %v592
  %v659 = vpack.c.b16 %v595, %v593
  %724 = vmatprep.subr.bf16.mxu0 %v597
  %725 = vmatpush1.bf16.msra.mxu0 %v596
  %726 = vmatprep.subr.bf16.mxu0 %v599
  %727 = vmatpush1.bf16.msra.mxu0 %v598
  %728 = vmatprep.subr.bf16.mxu0 %v601
  %729 = vmatpush1.bf16.msra.mxu0 %v600
  %730 = vmatprep.subr.bf16.mxu0 %v603
  %731 = vmatpush1.bf16.msra.mxu0 %v602
  %732 = vmatprep.subr.bf16.mxu0 %v605
  %733 = vmatpush1.bf16.msra.mxu0 %v604
  %734 = vmatprep.subr.bf16.mxu0 %v607
  %735 = vmatpush1.bf16.msra.mxu0 %v606
  %736 = vmatprep.subr.bf16.mxu0 %v609
  %737 = vmatpush1.bf16.msra.mxu0 %v608
  %738 = vmatprep.subr.bf16.mxu0 %v611
  %739 = vmatpush1.bf16.msra.mxu0 %v610
  %740 = vmatprep.subr.bf16.mxu0 %v613
  %741 = vmatpush1.bf16.msra.mxu0 %v612
  %742 = vmatprep.subr.bf16.mxu0 %v615
  %743 = vmatpush1.bf16.msra.mxu0 %v614
  %744 = vmatprep.subr.bf16.mxu0 %v617
  %745 = vmatpush1.bf16.msra.mxu0 %v616
  %746 = vmatprep.subr.bf16.mxu0 %v619
  %747 = vmatpush1.bf16.msra.mxu0 %v618
  %748 = vmatprep.subr.bf16.mxu0 %v621
  %749 = vmatpush1.bf16.msra.mxu0 %v620
  %750 = vmatprep.subr.bf16.mxu0 %v623
  %751 = vmatpush1.bf16.msra.mxu0 %v622
  %752 = vmatprep.subr.bf16.mxu0 %v625
  %753 = vmatpush1.bf16.msra.mxu0 %v624
  %754 = vmatprep.subr.bf16.mxu0 %v627
  %755 = vmatpush1.bf16.msra.mxu0 %v626
  %756 = vmatprep.mubr.bf16.mxu0 %v301
  %757 = vmatmul.mubr.bf16.gmra.mrb[0].mxu0 %v300
  %v758 = vpop.f32.mrb[0].mxu0
  %v759 = vadd.f32 %v137, %v758
  %v760 = vpop.f32.mrb[0].mxu0
  %v761 = vadd.f32 %v141, %v760
  %v762 = vpop.f32.mrb[0].mxu0
  %v763 = vadd.f32 %v137, %v762
  %v764 = vpop.f32.mrb[0].mxu0
  %v765 = vadd.f32 %v141, %v764
  %766 = vmatprep.mubr.bf16.mxu0 %v305
  %767 = vmatmul.mubr.bf16.gmra.mrb[0].mxu0 %v304
  %v768 = vpop.f32.mrb[0].mxu0
  %v769 = vadd.f32 %v137, %v768
  %v770 = vpop.f32.mrb[0].mxu0
  %v771 = vadd.f32 %v141, %v770
  %v772 = vpop.f32.mrb[0].mxu0
  %v773 = vadd.f32 %v137, %v772
  %v774 = vpop.f32.mrb[0].mxu0
  %v775 = vadd.f32 %v141, %v774
  %776 = vmatprep.mubr.bf16.mxu0 %v309
  %777 = vmatmul.mubr.bf16.gmra.mrb[0].mxu0 %v308
  %v778 = vpop.f32.mrb[0].mxu0
  %v779 = vadd.f32 %v137, %v778
  %v780 = vpop.f32.mrb[0].mxu0
  %v781 = vadd.f32 %v141, %v780
  %v782 = vpop.f32.mrb[0].mxu0
  %v783 = vadd.f32 %v137, %v782
  %v784 = vpop.f32.mrb[0].mxu0
  %v785 = vadd.f32 %v141, %v784
  %786 = vmatprep.mubr.bf16.mxu0 %v313
  %787 = vmatmul.mubr.bf16.gmra.mrb[0].mxu0 %v312
  %v788 = vpop.f32.mrb[0].mxu0
  %v789 = vadd.f32 %v137, %v788
  %v790 = vpop.f32.mrb[0].mxu0
  %v791 = vadd.f32 %v141, %v790
  %v792 = vpop.f32.mrb[0].mxu0
  %v793 = vadd.f32 %v137, %v792
  %v794 = vpop.f32.mrb[0].mxu0
  %v795 = vadd.f32 %v141, %v794
  %796 = vmatprep.mubr.bf16.mxu0 %v317
  %797 = vmatmul.mubr.bf16.gmra.mrb[0].mxu0 %v316
  %v798 = vpop.f32.mrb[0].mxu0
  %v799 = vadd.f32 %v137, %v798
  %v800 = vpop.f32.mrb[0].mxu0
  %v801 = vadd.f32 %v141, %v800
  %v802 = vpop.f32.mrb[0].mxu0
  %v803 = vadd.f32 %v137, %v802
  %v804 = vpop.f32.mrb[0].mxu0
  %v805 = vadd.f32 %v141, %v804
  %806 = vmatprep.mubr.bf16.mxu0 %v321
  %807 = vmatmul.mubr.bf16.gmra.mrb[0].mxu0 %v320
  %v808 = vpop.f32.mrb[0].mxu0
  %v809 = vadd.f32 %v137, %v808
  %v810 = vpop.f32.mrb[0].mxu0
  %v811 = vadd.f32 %v141, %v810
  %v812 = vpop.f32.mrb[0].mxu0
  %v813 = vadd.f32 %v137, %v812
  %v814 = vpop.f32.mrb[0].mxu0
  %v815 = vadd.f32 %v141, %v814
  %816 = vmatprep.mubr.bf16.mxu0 %v325
  %817 = vmatmul.mubr.bf16.gmra.mrb[0].mxu0 %v324
  %v818 = vpop.f32.mrb[0].mxu0
  %v819 = vadd.f32 %v137, %v818
  %v820 = vpop.f32.mrb[0].mxu0
  %v821 = vadd.f32 %v141, %v820
  %v822 = vpop.f32.mrb[0].mxu0
  %v823 = vadd.f32 %v137, %v822
  %v824 = vpop.f32.mrb[0].mxu0
  %v825 = vadd.f32 %v141, %v824
  %826 = vmatprep.mubr.bf16.mxu0 %v329
  %827 = vmatmul.mubr.bf16.gmra.mrb[0].mxu0 %v328
  %v828 = vpop.f32.mrb[0].mxu0
  %v829 = vadd.f32 %v137, %v828
  %v830 = vpop.f32.mrb[0].mxu0
  %v831 = vadd.f32 %v141, %v830
  %v832 = vpop.f32.mrb[0].mxu0
  %v833 = vadd.f32 %v137, %v832
  %v834 = vpop.f32.mrb[0].mxu0
  %v835 = vadd.f32 %v141, %v834
  %836 = vmatprep.mubr.bf16.mxu0 %v333
  %837 = vmatmul.mubr.bf16.gmra.mrb[0].mxu0 %v332
  %v838 = vpop.f32.mrb[0].mxu0
  %v839 = vadd.f32 %v137, %v838
  %v840 = vpop.f32.mrb[0].mxu0
  %v841 = vadd.f32 %v141, %v840
  %v842 = vpop.f32.mrb[0].mxu0
  %v843 = vadd.f32 %v137, %v842
  %v844 = vpop.f32.mrb[0].mxu0
  %v845 = vadd.f32 %v141, %v844
  %846 = vmatprep.mubr.bf16.mxu0 %v337
  %847 = vmatmul.mubr.bf16.gmra.mrb[0].mxu0 %v336
  %v848 = vpop.f32.mrb[0].mxu0
  %v849 = vadd.f32 %v137, %v848
  %v850 = vpop.f32.mrb[0].mxu0
  %v851 = vadd.f32 %v141, %v850
  %v852 = vpop.f32.mrb[0].mxu0
  %v853 = vadd.f32 %v137, %v852
  %v854 = vpop.f32.mrb[0].mxu0
  %v855 = vadd.f32 %v141, %v854
  %856 = vmatprep.mubr.bf16.mxu0 %v341
  %857 = vmatmul.mubr.bf16.gmra.mrb[0].mxu0 %v340
  %v858 = vpop.f32.mrb[0].mxu0
  %v859 = vadd.f32 %v137, %v858
  %v860 = vpop.f32.mrb[0].mxu0
  %v861 = vadd.f32 %v141, %v860
  %v862 = vpop.f32.mrb[0].mxu0
  %v863 = vadd.f32 %v137, %v862
  %v864 = vpop.f32.mrb[0].mxu0
  %v865 = vadd.f32 %v141, %v864
  %866 = vmatprep.mubr.bf16.mxu0 %v345
  %867 = vmatmul.mubr.bf16.gmra.mrb[0].mxu0 %v344
  %v868 = vpop.f32.mrb[0].mxu0
  %v869 = vadd.f32 %v137, %v868
  %v870 = vpop.f32.mrb[0].mxu0
  %v871 = vadd.f32 %v141, %v870
  %v872 = vpop.f32.mrb[0].mxu0
  %v873 = vadd.f32 %v137, %v872
  %v874 = vpop.f32.mrb[0].mxu0
  %v875 = vadd.f32 %v141, %v874
  %876 = vmatprep.mubr.bf16.mxu0 %v349
  %877 = vmatmul.mubr.bf16.gmra.mrb[0].mxu0 %v348
  %v878 = vpop.f32.mrb[0].mxu0
  %v879 = vadd.f32 %v137, %v878
  %v880 = vpop.f32.mrb[0].mxu0
  %v881 = vadd.f32 %v141, %v880
  %v882 = vpop.f32.mrb[0].mxu0
  %v883 = vadd.f32 %v137, %v882
  %v884 = vpop.f32.mrb[0].mxu0
  %v885 = vadd.f32 %v141, %v884
  %886 = vdwg.mxu0
  %887 = vmatprep.subr.bf16.mxu0 %v629
  %888 = vmatpush1.bf16.msra.mxu0 %v628
  %889 = vmatprep.subr.bf16.mxu0 %v631
  %890 = vmatpush1.bf16.msra.mxu0 %v630
  %891 = vmatprep.subr.bf16.mxu0 %v633
  %892 = vmatpush1.bf16.msra.mxu0 %v632
  %893 = vmatprep.subr.bf16.mxu0 %v635
  %894 = vmatpush1.bf16.msra.mxu0 %v634
  %895 = vmatprep.subr.bf16.mxu0 %v637
  %896 = vmatpush1.bf16.msra.mxu0 %v636
  %897 = vmatprep.subr.bf16.mxu0 %v639
  %898 = vmatpush1.bf16.msra.mxu0 %v638
  %899 = vmatprep.subr.bf16.mxu0 %v641
  %900 = vmatpush1.bf16.msra.mxu0 %v640
  %901 = vmatprep.subr.bf16.mxu0 %v643
  %902 = vmatpush1.bf16.msra.mxu0 %v642
  %903 = vmatprep.subr.bf16.mxu0 %v645
  %904 = vmatpush1.bf16.msra.mxu0 %v644
  %905 = vmatprep.subr.bf16.mxu0 %v647
  %906 = vmatpush1.bf16.msra.mxu0 %v646
  %907 = vmatprep.subr.bf16.mxu0 %v649
  %908 = vmatpush1.bf16.msra.mxu0 %v648
  %909 = vmatprep.subr.bf16.mxu0 %v651
  %910 = vmatpush1.bf16.msra.mxu0 %v650
  %911 = vmatprep.subr.bf16.mxu0 %v653
  %912 = vmatpush1.bf16.msra.mxu0 %v652
  %913 = vmatprep.subr.bf16.mxu0 %v655
  %914 = vmatpush1.bf16.msra.mxu0 %v654
  %915 = vmatprep.subr.bf16.mxu0 %v657
  %916 = vmatpush1.bf16.msra.mxu0 %v656
  %917 = vmatprep.subr.bf16.mxu0 %v659
  %918 = vmatpush1.bf16.msra.mxu0 %v658
  %919 = vmatprep.mubr.bf16.mxu0 %v303
  %920 = vmatmul.mubr.bf16.gmra.mrb[0].mxu0 %v302
  %v921 = vpop.f32.mrb[0].mxu0
  %v922 = vadd.f32 %v759, %v921
  %v923 = vpop.f32.mrb[0].mxu0
  %v924 = vadd.f32 %v761, %v923
  %v925 = vpop.f32.mrb[0].mxu0
  %v926 = vadd.f32 %v763, %v925
  %v927 = vpop.f32.mrb[0].mxu0
  %v928 = vadd.f32 %v765, %v927
  %929 = vmatprep.mubr.bf16.mxu0 %v307
  %930 = vmatmul.mubr.bf16.gmra.mrb[0].mxu0 %v306
  %v931 = vpop.f32.mrb[0].mxu0
  %v932 = vadd.f32 %v769, %v931
  %v933 = vpop.f32.mrb[0].mxu0
  %v934 = vadd.f32 %v771, %v933
  %v935 = vpop.f32.mrb[0].mxu0
  %v936 = vadd.f32 %v773, %v935
  %v937 = vpop.f32.mrb[0].mxu0
  %v938 = vadd.f32 %v775, %v937
  %939 = vmatprep.mubr.bf16.mxu0 %v311
  %940 = vmatmul.mubr.bf16.gmra.mrb[0].mxu0 %v310
  %v941 = vpop.f32.mrb[0].mxu0
  %v942 = vadd.f32 %v779, %v941
  %v943 = vpop.f32.mrb[0].mxu0
  %v944 = vadd.f32 %v781, %v943
  %v945 = vpop.f32.mrb[0].mxu0
  %v946 = vadd.f32 %v783, %v945
  %v947 = vpop.f32.mrb[0].mxu0
  %v948 = vadd.f32 %v785, %v947
  %949 = vmatprep.mubr.bf16.mxu0 %v315
  %950 = vmatmul.mubr.bf16.gmra.mrb[0].mxu0 %v314
  %v951 = vpop.f32.mrb[0].mxu0
  %v952 = vadd.f32 %v789, %v951
  %v953 = vpop.f32.mrb[0].mxu0
  %v954 = vadd.f32 %v791, %v953
  %v955 = vpop.f32.mrb[0].mxu0
  %v956 = vadd.f32 %v793, %v955
  %v957 = vpop.f32.mrb[0].mxu0
  %v958 = vadd.f32 %v795, %v957
  %959 = vmatprep.mubr.bf16.mxu0 %v319
  %960 = vmatmul.mubr.bf16.gmra.mrb[0].mxu0 %v318
  %v961 = vpop.f32.mrb[0].mxu0
  %v962 = vadd.f32 %v799, %v961
  %v963 = vpop.f32.mrb[0].mxu0
  %v964 = vadd.f32 %v801, %v963
  %v965 = vpop.f32.mrb[0].mxu0
  %v966 = vadd.f32 %v803, %v965
  %v967 = vpop.f32.mrb[0].mxu0
  %v968 = vadd.f32 %v805, %v967
  %969 = vmatprep.mubr.bf16.mxu0 %v323
  %970 = vmatmul.mubr.bf16.gmra.mrb[0].mxu0 %v322
  %v971 = vpop.f32.mrb[0].mxu0
  %v972 = vadd.f32 %v809, %v971
  %v973 = vpop.f32.mrb[0].mxu0
  %v974 = vadd.f32 %v811, %v973
  %v975 = vpop.f32.mrb[0].mxu0
  %v976 = vadd.f32 %v813, %v975
  %v977 = vpop.f32.mrb[0].mxu0
  %v978 = vadd.f32 %v815, %v977
  %979 = vmatprep.mubr.bf16.mxu0 %v327
  %980 = vmatmul.mubr.bf16.gmra.mrb[0].mxu0 %v326
  %v981 = vpop.f32.mrb[0].mxu0
  %v982 = vadd.f32 %v819, %v981
  %v983 = vpop.f32.mrb[0].mxu0
  %v984 = vadd.f32 %v821, %v983
  %v985 = vpop.f32.mrb[0].mxu0
  %v986 = vadd.f32 %v823, %v985
  %v987 = vpop.f32.mrb[0].mxu0
  %v988 = vadd.f32 %v825, %v987
  %989 = vmatprep.mubr.bf16.mxu0 %v331
  %990 = vmatmul.mubr.bf16.gmra.mrb[0].mxu0 %v330
  %v991 = vpop.f32.mrb[0].mxu0
  %v992 = vadd.f32 %v829, %v991
  %v993 = vpop.f32.mrb[0].mxu0
  %v994 = vadd.f32 %v831, %v993
  %v995 = vpop.f32.mrb[0].mxu0
  %v996 = vadd.f32 %v833, %v995
  %v997 = vpop.f32.mrb[0].mxu0
  %v998 = vadd.f32 %v835, %v997
  %999 = vmatprep.mubr.bf16.mxu0 %v335
  %1000 = vmatmul.mubr.bf16.gmra.mrb[0].mxu0 %v334
  %v1001 = vpop.f32.mrb[0].mxu0
  %v1002 = vadd.f32 %v839, %v1001
  %v1003 = vpop.f32.mrb[0].mxu0
  %v1004 = vadd.f32 %v841, %v1003
  %v1005 = vpop.f32.mrb[0].mxu0
  %v1006 = vadd.f32 %v843, %v1005
  %v1007 = vpop.f32.mrb[0].mxu0
  %v1008 = vadd.f32 %v845, %v1007
  %1009 = vmatprep.mubr.bf16.mxu0 %v339
  %1010 = vmatmul.mubr.bf16.gmra.mrb[0].mxu0 %v338
  %v1011 = vpop.f32.mrb[0].mxu0
  %v1012 = vadd.f32 %v849, %v1011
  %v1013 = vpop.f32.mrb[0].mxu0
  %v1014 = vadd.f32 %v851, %v1013
  %v1015 = vpop.f32.mrb[0].mxu0
  %v1016 = vadd.f32 %v853, %v1015
  %v1017 = vpop.f32.mrb[0].mxu0
  %v1018 = vadd.f32 %v855, %v1017
  %1019 = vmatprep.mubr.bf16.mxu0 %v343
  %1020 = vmatmul.mubr.bf16.gmra.mrb[0].mxu0 %v342
  %v1021 = vpop.f32.mrb[0].mxu0
  %v1022 = vadd.f32 %v859, %v1021
  %v1023 = vpop.f32.mrb[0].mxu0
  %v1024 = vadd.f32 %v861, %v1023
  %v1025 = vpop.f32.mrb[0].mxu0
  %v1026 = vadd.f32 %v863, %v1025
  %v1027 = vpop.f32.mrb[0].mxu0
  %v1028 = vadd.f32 %v865, %v1027
  %1029 = vmatprep.mubr.bf16.mxu0 %v347
  %1030 = vmatmul.mubr.bf16.gmra.mrb[0].mxu0 %v346
  %v1031 = vpop.f32.mrb[0].mxu0
  %v1032 = vadd.f32 %v869, %v1031
  %v1033 = vpop.f32.mrb[0].mxu0
  %v1034 = vadd.f32 %v871, %v1033
  %v1035 = vpop.f32.mrb[0].mxu0
  %v1036 = vadd.f32 %v873, %v1035
  %v1037 = vpop.f32.mrb[0].mxu0
  %v1038 = vadd.f32 %v875, %v1037
  %1039 = vmatprep.mubr.bf16.mxu0 %v351
  %1040 = vmatmul.mubr.bf16.gmra.mrb[0].mxu0 %v350
  %v1041 = vpop.f32.mrb[0].mxu0
  %v1042 = vadd.f32 %v879, %v1041
  %v1043 = vpop.f32.mrb[0].mxu0
  %v1044 = vadd.f32 %v881, %v1043
  %v1045 = vpop.f32.mrb[0].mxu0
  %v1046 = vadd.f32 %v883, %v1045
  %v1047 = vpop.f32.mrb[0].mxu0
  %v1048 = vadd.f32 %v885, %v1047
  %1049 = vdwg.mxu0
  %v1050 = vpack.c.bf16 %v926, %v922
  %v1051 = vpack.c.bf16 %v928, %v924
  %v1052 = vpack.c.bf16 %v936, %v932
  %v1053 = vpack.c.bf16 %v938, %v934
  %v1054 = vpack.c.bf16 %v946, %v942
  %v1055 = vpack.c.bf16 %v948, %v944
  %v1056 = vpack.c.bf16 %v956, %v952
  %v1057 = vpack.c.bf16 %v958, %v954
  %v1058 = vpack.c.bf16 %v966, %v962
  %v1059 = vpack.c.bf16 %v968, %v964
  %v1060 = vpack.c.bf16 %v976, %v972
  %v1061 = vpack.c.bf16 %v978, %v974
  %v1062 = vpack.c.bf16 %v986, %v982
  %v1063 = vpack.c.bf16 %v988, %v984
  %v1064 = vpack.c.bf16 %v996, %v992
  %v1065 = vpack.c.bf16 %v998, %v994
  %v1066 = vpack.c.bf16 %v1006, %v1002
  %v1067 = vpack.c.bf16 %v1008, %v1004
  %v1068 = vpack.c.bf16 %v1016, %v1012
  %v1069 = vpack.c.bf16 %v1018, %v1014
  %v1070 = vpack.c.bf16 %v1026, %v1022
  %v1071 = vpack.c.bf16 %v1028, %v1024
  %v1072 = vpack.c.bf16 %v1036, %v1032
  %v1073 = vpack.c.bf16 %v1038, %v1034
  %v1074 = vpack.c.bf16 %v1046, %v1042
  %v1075 = vpack.c.bf16 %v1048, %v1044
  %v1102 = vunpack.c.l.b16 %v1050
  %v1103 = vunpack.c.l.b16 %v1051
  %v1104 = vunpack.c.h.b16 %v1050
  %v1105 = vunpack.c.h.b16 %v1051
  %v1106 = vunpack.c.l.b16 %v1052
  %v1107 = vunpack.c.l.b16 %v1053
  %v1108 = vunpack.c.h.b16 %v1052
  %v1109 = vunpack.c.h.b16 %v1053
  %v1110 = vunpack.c.l.b16 %v1054
  %v1111 = vunpack.c.l.b16 %v1055
  %v1112 = vunpack.c.h.b16 %v1054
  %v1113 = vunpack.c.h.b16 %v1055
  %v1114 = vunpack.c.l.b16 %v1056
  %v1115 = vunpack.c.l.b16 %v1057
  %v1116 = vunpack.c.h.b16 %v1056
  %v1117 = vunpack.c.h.b16 %v1057
  %v1118 = vunpack.c.l.b16 %v1058
  %v1119 = vunpack.c.l.b16 %v1059
  %v1120 = vunpack.c.h.b16 %v1058
  %v1121 = vunpack.c.h.b16 %v1059
  %v1122 = vunpack.c.l.b16 %v1060
  %v1123 = vunpack.c.l.b16 %v1061
  %v1124 = vunpack.c.h.b16 %v1060
  %v1125 = vunpack.c.h.b16 %v1061
  %v1126 = vunpack.c.l.b16 %v1062
  %v1127 = vunpack.c.l.b16 %v1063
  %v1128 = vunpack.c.h.b16 %v1062
  %v1129 = vunpack.c.h.b16 %v1063
  %v1130 = vunpack.c.l.b16 %v1064
  %v1131 = vunpack.c.l.b16 %v1065
  %v1132 = vunpack.c.h.b16 %v1064
  %v1133 = vunpack.c.h.b16 %v1065
  %v1134 = vunpack.c.l.b16 %v1066
  %v1135 = vunpack.c.l.b16 %v1067
  %v1136 = vunpack.c.h.b16 %v1066
  %v1137 = vunpack.c.h.b16 %v1067
  %v1138 = vunpack.c.l.b16 %v1068
  %v1139 = vunpack.c.l.b16 %v1069
  %v1140 = vunpack.c.h.b16 %v1068
  %v1141 = vunpack.c.h.b16 %v1069
  %v1142 = vunpack.c.l.b16 %v1070
  %v1143 = vunpack.c.l.b16 %v1071
  %v1144 = vunpack.c.h.b16 %v1070
  %v1145 = vunpack.c.h.b16 %v1071
  %v1146 = vunpack.c.l.b16 %v1072
  %v1147 = vunpack.c.l.b16 %v1073
  %v1148 = vunpack.c.h.b16 %v1072
  %v1149 = vunpack.c.h.b16 %v1073
  %v1150 = vunpack.c.l.b16 %v1074
  %v1151 = vunpack.c.l.b16 %v1075
  %v1152 = vunpack.c.h.b16 %v1074
  %v1153 = vunpack.c.h.b16 %v1075
  %v1154 = vpack.c.b16 %v1103, %v1102
  %v1155 = vpack.c.b16 %v1105, %v1104
  %v1156 = vpack.c.b16 %v1107, %v1106
  %v1157 = vpack.c.b16 %v1109, %v1108
  %v1158 = vpack.c.b16 %v1111, %v1110
  %v1159 = vpack.c.b16 %v1113, %v1112
  %v1160 = vpack.c.b16 %v1115, %v1114
  %v1161 = vpack.c.b16 %v1117, %v1116
  %v1162 = vpack.c.b16 %v1119, %v1118
  %v1163 = vpack.c.b16 %v1121, %v1120
  %v1164 = vpack.c.b16 %v1123, %v1122
  %v1165 = vpack.c.b16 %v1125, %v1124
  %v1166 = vpack.c.b16 %v1127, %v1126
  %v1167 = vpack.c.b16 %v1129, %v1128
  %v1168 = vpack.c.b16 %v1131, %v1130
  %v1169 = vpack.c.b16 %v1133, %v1132
  %v1170 = vpack.c.b16 %v1135, %v1134
  %v1171 = vpack.c.b16 %v1137, %v1136
  %v1172 = vpack.c.b16 %v1139, %v1138
  %v1173 = vpack.c.b16 %v1141, %v1140
  %v1174 = vpack.c.b16 %v1143, %v1142
  %v1175 = vpack.c.b16 %v1145, %v1144
  %v1176 = vpack.c.b16 %v1147, %v1146
  %v1177 = vpack.c.b16 %v1149, %v1148
  %v1178 = vpack.c.b16 %v1151, %v1150
  %v1179 = vpack.c.b16 %v1153, %v1152
  %1206 = vst [vmem:[%s3] sm:$0xff] %v1154
  %1207 = vst [vmem:[%s3 + $0x8] sm:$0xff] %v1155
  %1208 = vst [vmem:[%s3 + $0x10] sm:$0xff] %v1156
  %1209 = vst [vmem:[%s3 + $0x18] sm:$0xff] %v1157
  %1210 = vst [vmem:[%s3 + $0x20] sm:$0xff] %v1158
  %1211 = vst [vmem:[%s3 + $0x28] sm:$0xff] %v1159
  %1212 = vst [vmem:[%s3 + $0x30] sm:$0xff] %v1160
  %1213 = vst [vmem:[%s3 + $0x38] sm:$0xff] %v1161
  %1214 = vst [vmem:[%s3 + $0x40] sm:$0xff] %v1162
  %1215 = vst [vmem:[%s3 + $0x48] sm:$0xff] %v1163
  %1216 = vst [vmem:[%s3 + $0x50] sm:$0xff] %v1164
  %1217 = vst [vmem:[%s3 + $0x58] sm:$0xff] %v1165
  %1218 = vst [vmem:[%s3 + $0x60] sm:$0xff] %v1166
  %1219 = vst [vmem:[%s3 + $0x68] sm:$0xff] %v1167
  %1220 = vst [vmem:[%s3 + $0x70] sm:$0xff] %v1168
  %1221 = vst [vmem:[%s3 + $0x78] sm:$0xff] %v1169
  %1222 = vst [vmem:[%s3 + $0x80] sm:$0xff] %v1170
  %1223 = vst [vmem:[%s3 + $0x88] sm:$0xff] %v1171
  %1224 = vst [vmem:[%s3 + $0x90] sm:$0xff] %v1172
  %1225 = vst [vmem:[%s3 + $0x98] sm:$0xff] %v1173
  %1226 = vst [vmem:[%s3 + $0xa0] sm:$0xff] %v1174
  %1227 = vst [vmem:[%s3 + $0xa8] sm:$0xff] %v1175
  %1228 = vst [vmem:[%s3 + $0xb0] sm:$0xff] %v1176
  %1229 = vst [vmem:[%s3 + $0xb8] sm:$0xff] %v1177
  %1230 = vst [vmem:[%s3 + $0xc0] sm:$0xff] %v1178
  %1231 = vst [vmem:[%s3 + $0xc8] sm:$0xff] %v1179
  %p1232 = scmp.eq.s32.totalorder 0, 0
  // Predicated region
  $region14: #{autoencoder_forward.2} parent=0 // pred_check
    %p1233 = pneg %p1232
  $region15: #{autoencoder_forward.2} parent=0 // pred_check_branch
    %1235 = sbr.rel (%p1233) target = $region17
  $region16: #{autoencoder_forward.2} parent=0 // pred_region
    %v1236 = vlaneseq
    %v1237 = vshrl.u32 %v1236, 7
    %v1238 = vadd.s32 %v1237, 8
    %v1239 = vadd.s32 %v1237, 16
    %v1240 = vadd.s32 %v1237, 24
    %v1241 = vadd.s32 %v1237, 32
    %v1242 = vadd.s32 %v1237, 40
    %v1243 = vadd.s32 %v1237, 48
    %v1244 = vadd.s32 %v1237, 56
    %v1245 = vadd.s32 %v1237, 64
    %v1246 = vadd.s32 %v1237, 72
    %v1247 = vadd.s32 %v1237, 80
    %v1248 = vadd.s32 %v1237, 88
    %v1249 = vadd.s32 %v1237, 96
    %v1250 = vadd.s32 %v1237, 104
    %v1251 = vadd.s32 %v1237, 112
    %v1252 = vadd.s32 %v1237, 120
    %v1253 = vadd.s32 %v1237, 128
    %v1254 = vadd.s32 %v1237, 136
    %v1255 = vadd.s32 %v1237, 144
    %v1256 = vadd.s32 %v1237, 152
    %v1257 = vadd.s32 %v1237, 160
    %v1258 = vadd.s32 %v1237, 168
    %v1259 = vadd.s32 %v1237, 176
    %v1260 = vadd.s32 %v1237, 184
    %v1261 = vadd.s32 %v1237, 192
    %v1262 = vadd.s32 %v1237, 200
    %vm1263 = vcmp.lt.s32.totalorder %v1237, 200
    %vm1264 = vcmp.lt.s32.totalorder %v1238, 200
    %vm1265 = vcmp.lt.s32.totalorder %v1239, 200
    %vm1266 = vcmp.lt.s32.totalorder %v1240, 200
    %vm1267 = vcmp.lt.s32.totalorder %v1241, 200
    %vm1268 = vcmp.lt.s32.totalorder %v1242, 200
    %vm1269 = vcmp.lt.s32.totalorder %v1243, 200
    %vm1270 = vcmp.lt.s32.totalorder %v1244, 200
    %vm1271 = vcmp.lt.s32.totalorder %v1245, 200
    %vm1272 = vcmp.lt.s32.totalorder %v1246, 200
    %vm1273 = vcmp.lt.s32.totalorder %v1247, 200
    %vm1274 = vcmp.lt.s32.totalorder %v1248, 200
    %vm1275 = vcmp.lt.s32.totalorder %v1249, 200
    %vm1276 = vcmp.lt.s32.totalorder %v1250, 200
    %vm1277 = vcmp.lt.s32.totalorder %v1251, 200
    %vm1278 = vcmp.lt.s32.totalorder %v1252, 200
    %vm1279 = vcmp.lt.s32.totalorder %v1253, 200
    %vm1280 = vcmp.lt.s32.totalorder %v1254, 200
    %vm1281 = vcmp.lt.s32.totalorder %v1255, 200
    %vm1282 = vcmp.lt.s32.totalorder %v1256, 200
    %vm1283 = vcmp.lt.s32.totalorder %v1257, 200
    %vm1284 = vcmp.lt.s32.totalorder %v1258, 200
    %vm1285 = vcmp.lt.s32.totalorder %v1259, 200
    %vm1286 = vcmp.lt.s32.totalorder %v1260, 200
    %vm1287 = vcmp.lt.s32.totalorder %v1261, 200
    %vm1288 = vcmp.lt.s32.totalorder %v1262, 200
    %v1289 = vsel %vm1263, 1, 0
    %v1290 = vsel %vm1264, 1, 0
    %v1291 = vsel %vm1265, 1, 0
    %v1292 = vsel %vm1266, 1, 0
    %v1293 = vsel %vm1267, 1, 0
    %v1294 = vsel %vm1268, 1, 0
    %v1295 = vsel %vm1269, 1, 0
    %v1296 = vsel %vm1270, 1, 0
    %v1297 = vsel %vm1271, 1, 0
    %v1298 = vsel %vm1272, 1, 0
    %v1299 = vsel %vm1273, 1, 0
    %v1300 = vsel %vm1274, 1, 0
    %v1301 = vsel %vm1275, 1, 0
    %v1302 = vsel %vm1276, 1, 0
    %v1303 = vsel %vm1277, 1, 0
    %v1304 = vsel %vm1278, 1, 0
    %v1305 = vsel %vm1279, 1, 0
    %v1306 = vsel %vm1280, 1, 0
    %v1307 = vsel %vm1281, 1, 0
    %v1308 = vsel %vm1282, 1, 0
    %v1309 = vsel %vm1283, 1, 0
    %v1310 = vsel %vm1284, 1, 0
    %v1311 = vsel %vm1285, 1, 0
    %v1312 = vsel %vm1286, 1, 0
    %v1313 = vsel %vm1287, 1, 0
    %v1314 = vsel %vm1288, 1, 0
    %vm1315 = vcmp.eq.s32.totalorder %v1289, 1
    %vm1316 = vcmp.eq.s32.totalorder %v1290, 1
    %vm1317 = vcmp.eq.s32.totalorder %v1291, 1
    %vm1318 = vcmp.eq.s32.totalorder %v1292, 1
    %vm1319 = vcmp.eq.s32.totalorder %v1293, 1
    %vm1320 = vcmp.eq.s32.totalorder %v1294, 1
    %vm1321 = vcmp.eq.s32.totalorder %v1295, 1
    %vm1322 = vcmp.eq.s32.totalorder %v1296, 1
    %vm1323 = vcmp.eq.s32.totalorder %v1297, 1
    %vm1324 = vcmp.eq.s32.totalorder %v1298, 1
    %vm1325 = vcmp.eq.s32.totalorder %v1299, 1
    %vm1326 = vcmp.eq.s32.totalorder %v1300, 1
    %vm1327 = vcmp.eq.s32.totalorder %v1301, 1
    %vm1328 = vcmp.eq.s32.totalorder %v1302, 1
    %vm1329 = vcmp.eq.s32.totalorder %v1303, 1
    %vm1330 = vcmp.eq.s32.totalorder %v1304, 1
    %vm1331 = vcmp.eq.s32.totalorder %v1305, 1
    %vm1332 = vcmp.eq.s32.totalorder %v1306, 1
    %vm1333 = vcmp.eq.s32.totalorder %v1307, 1
    %vm1334 = vcmp.eq.s32.totalorder %v1308, 1
    %vm1335 = vcmp.eq.s32.totalorder %v1309, 1
    %vm1336 = vcmp.eq.s32.totalorder %v1310, 1
    %vm1337 = vcmp.eq.s32.totalorder %v1311, 1
    %vm1338 = vcmp.eq.s32.totalorder %v1312, 1
    %vm1339 = vcmp.eq.s32.totalorder %v1313, 1
    %vm1340 = vcmp.eq.s32.totalorder %v1314, 1
    %v1341 = vsel %vm1315, %v922, 0.0
    %v1342 = vsel %vm1315, %v924, 0.0
    %v1343 = vsel %vm1316, %v926, 0.0
    %v1344 = vsel %vm1316, %v928, 0.0
    %v1345 = vsel %vm1317, %v932, 0.0
    %v1346 = vsel %vm1317, %v934, 0.0
    %v1347 = vsel %vm1318, %v936, 0.0
    %v1348 = vsel %vm1318, %v938, 0.0
    %v1349 = vsel %vm1319, %v942, 0.0
    %v1350 = vsel %vm1319, %v944, 0.0
    %v1351 = vsel %vm1320, %v946, 0.0
    %v1352 = vsel %vm1320, %v948, 0.0
    %v1353 = vsel %vm1321, %v952, 0.0
    %v1354 = vsel %vm1321, %v954, 0.0
    %v1355 = vsel %vm1322, %v956, 0.0
    %v1356 = vsel %vm1322, %v958, 0.0
    %v1357 = vsel %vm1323, %v962, 0.0
    %v1358 = vsel %vm1323, %v964, 0.0
    %v1359 = vsel %vm1324, %v966, 0.0
    %v1360 = vsel %vm1324, %v968, 0.0
    %v1361 = vsel %vm1325, %v972, 0.0
    %v1362 = vsel %vm1325, %v974, 0.0
    %v1363 = vsel %vm1326, %v976, 0.0
    %v1364 = vsel %vm1326, %v978, 0.0
    %v1365 = vsel %vm1327, %v982, 0.0
    %v1366 = vsel %vm1327, %v984, 0.0
    %v1367 = vsel %vm1328, %v986, 0.0
    %v1368 = vsel %vm1328, %v988, 0.0
    %v1369 = vsel %vm1329, %v992, 0.0
    %v1370 = vsel %vm1329, %v994, 0.0
    %v1371 = vsel %vm1330, %v996, 0.0
    %v1372 = vsel %vm1330, %v998, 0.0
    %v1373 = vsel %vm1331, %v1002, 0.0
    %v1374 = vsel %vm1331, %v1004, 0.0
    %v1375 = vsel %vm1332, %v1006, 0.0
    %v1376 = vsel %vm1332, %v1008, 0.0
    %v1377 = vsel %vm1333, %v1012, 0.0
    %v1378 = vsel %vm1333, %v1014, 0.0
    %v1379 = vsel %vm1334, %v1016, 0.0
    %v1380 = vsel %vm1334, %v1018, 0.0
    %v1381 = vsel %vm1335, %v1022, 0.0
    %v1382 = vsel %vm1335, %v1024, 0.0
    %v1383 = vsel %vm1336, %v1026, 0.0
    %v1384 = vsel %vm1336, %v1028, 0.0
    %v1385 = vsel %vm1337, %v1032, 0.0
    %v1386 = vsel %vm1337, %v1034, 0.0
    %v1387 = vsel %vm1338, %v1036, 0.0
    %v1388 = vsel %vm1338, %v1038, 0.0
    %v1389 = vsel %vm1339, %v1042, 0.0
    %v1390 = vsel %vm1339, %v1044, 0.0
    %v1391 = vsel %vm1340, %v1046, 0.0
    %v1392 = vsel %vm1340, %v1048, 0.0
    %v1393 = vadd.f32 %v1341, %v1343
    %v1394 = vadd.f32 %v1393, %v1345
    %v1395 = vadd.f32 %v1394, %v1347
    %v1396 = vadd.f32 %v1395, %v1349
    %v1397 = vadd.f32 %v1396, %v1351
    %v1398 = vadd.f32 %v1397, %v1353
    %v1399 = vadd.f32 %v1398, %v1355
    %v1400 = vadd.f32 %v1399, %v1357
    %v1401 = vadd.f32 %v1400, %v1359
    %v1402 = vadd.f32 %v1401, %v1361
    %v1403 = vadd.f32 %v1402, %v1363
    %v1404 = vadd.f32 %v1403, %v1365
    %v1405 = vadd.f32 %v1404, %v1367
    %v1406 = vadd.f32 %v1405, %v1369
    %v1407 = vadd.f32 %v1406, %v1371
    %v1408 = vadd.f32 %v1407, %v1373
    %v1409 = vadd.f32 %v1408, %v1375
    %v1410 = vadd.f32 %v1409, %v1377
    %v1411 = vadd.f32 %v1410, %v1379
    %v1412 = vadd.f32 %v1411, %v1381
    %v1413 = vadd.f32 %v1412, %v1383
    %v1414 = vadd.f32 %v1413, %v1385
    %v1415 = vadd.f32 %v1414, %v1387
    %v1416 = vadd.f32 %v1415, %v1389
    %v1417 = vadd.f32 %v1416, %v1391
    %v1418 = vrot.slane %v1417, 4
    %v1419 = vadd.f32 %v1417, %v1418
    %v1420 = vrot.slane %v1419, 2
    %v1421 = vadd.f32 %v1419, %v1420
    %v1422 = vrot.slane %v1421, 1
    %v1423 = vadd.f32 %v1421, %v1422
    %v1424 = vadd.f32 %v1342, %v1344
    %v1425 = vadd.f32 %v1424, %v1346
    %v1426 = vadd.f32 %v1425, %v1348
    %v1427 = vadd.f32 %v1426, %v1350
    %v1428 = vadd.f32 %v1427, %v1352
    %v1429 = vadd.f32 %v1428, %v1354
    %v1430 = vadd.f32 %v1429, %v1356
    %v1431 = vadd.f32 %v1430, %v1358
    %v1432 = vadd.f32 %v1431, %v1360
    %v1433 = vadd.f32 %v1432, %v1362
    %v1434 = vadd.f32 %v1433, %v1364
    %v1435 = vadd.f32 %v1434, %v1366
    %v1436 = vadd.f32 %v1435, %v1368
    %v1437 = vadd.f32 %v1436, %v1370
    %v1438 = vadd.f32 %v1437, %v1372
    %v1439 = vadd.f32 %v1438, %v1374
    %v1440 = vadd.f32 %v1439, %v1376
    %v1441 = vadd.f32 %v1440, %v1378
    %v1442 = vadd.f32 %v1441, %v1380
    %v1443 = vadd.f32 %v1442, %v1382
    %v1444 = vadd.f32 %v1443, %v1384
    %v1445 = vadd.f32 %v1444, %v1386
    %v1446 = vadd.f32 %v1445, %v1388
    %v1447 = vadd.f32 %v1446, %v1390
    %v1448 = vadd.f32 %v1447, %v1392
    %v1449 = vrot.slane %v1448, 4
    %v1450 = vadd.f32 %v1448, %v1449
    %v1451 = vrot.slane %v1450, 2
    %v1452 = vadd.f32 %v1450, %v1451
    %v1453 = vrot.slane %v1452, 1
    %v1454 = vadd.f32 %v1452, %v1453
    %v1455 = vmul.f32 %v1341, %v1341
    %v1456 = vmul.f32 %v1342, %v1342
    %v1457 = vmul.f32 %v1343, %v1343
    %v1458 = vmul.f32 %v1344, %v1344
    %v1459 = vmul.f32 %v1345, %v1345
    %v1460 = vmul.f32 %v1346, %v1346
    %v1461 = vmul.f32 %v1347, %v1347
    %v1462 = vmul.f32 %v1348, %v1348
    %v1463 = vmul.f32 %v1349, %v1349
    %v1464 = vmul.f32 %v1350, %v1350
    %v1465 = vmul.f32 %v1351, %v1351
    %v1466 = vmul.f32 %v1352, %v1352
    %v1467 = vmul.f32 %v1353, %v1353
    %v1468 = vmul.f32 %v1354, %v1354
    %v1469 = vmul.f32 %v1355, %v1355
    %v1470 = vmul.f32 %v1356, %v1356
    %v1471 = vmul.f32 %v1357, %v1357
    %v1472 = vmul.f32 %v1358, %v1358
    %v1473 = vmul.f32 %v1359, %v1359
    %v1474 = vmul.f32 %v1360, %v1360
    %v1475 = vmul.f32 %v1361, %v1361
    %v1476 = vmul.f32 %v1362, %v1362
    %v1477 = vmul.f32 %v1363, %v1363
    %v1478 = vmul.f32 %v1364, %v1364
    %v1479 = vmul.f32 %v1365, %v1365
    %v1480 = vmul.f32 %v1366, %v1366
    %v1481 = vmul.f32 %v1367, %v1367
    %v1482 = vmul.f32 %v1368, %v1368
    %v1483 = vmul.f32 %v1369, %v1369
    %v1484 = vmul.f32 %v1370, %v1370
    %v1485 = vmul.f32 %v1371, %v1371
    %v1486 = vmul.f32 %v1372, %v1372
    %v1487 = vmul.f32 %v1373, %v1373
    %v1488 = vmul.f32 %v1374, %v1374
    %v1489 = vmul.f32 %v1375, %v1375
    %v1490 = vmul.f32 %v1376, %v1376
    %v1491 = vmul.f32 %v1377, %v1377
    %v1492 = vmul.f32 %v1378, %v1378
    %v1493 = vmul.f32 %v1379, %v1379
    %v1494 = vmul.f32 %v1380, %v1380
    %v1495 = vmul.f32 %v1381, %v1381
    %v1496 = vmul.f32 %v1382, %v1382
    %v1497 = vmul.f32 %v1383, %v1383
    %v1498 = vmul.f32 %v1384, %v1384
    %v1499 = vmul.f32 %v1385, %v1385
    %v1500 = vmul.f32 %v1386, %v1386
    %v1501 = vmul.f32 %v1387, %v1387
    %v1502 = vmul.f32 %v1388, %v1388
    %v1503 = vmul.f32 %v1389, %v1389
    %v1504 = vmul.f32 %v1390, %v1390
    %v1505 = vmul.f32 %v1391, %v1391
    %v1506 = vmul.f32 %v1392, %v1392
    %v1507 = vadd.f32 %v1455, %v1457
    %v1508 = vadd.f32 %v1507, %v1459
    %v1509 = vadd.f32 %v1508, %v1461
    %v1510 = vadd.f32 %v1509, %v1463
    %v1511 = vadd.f32 %v1510, %v1465
    %v1512 = vadd.f32 %v1511, %v1467
    %v1513 = vadd.f32 %v1512, %v1469
    %v1514 = vadd.f32 %v1513, %v1471
    %v1515 = vadd.f32 %v1514, %v1473
    %v1516 = vadd.f32 %v1515, %v1475
    %v1517 = vadd.f32 %v1516, %v1477
    %v1518 = vadd.f32 %v1517, %v1479
    %v1519 = vadd.f32 %v1518, %v1481
    %v1520 = vadd.f32 %v1519, %v1483
    %v1521 = vadd.f32 %v1520, %v1485
    %v1522 = vadd.f32 %v1521, %v1487
    %v1523 = vadd.f32 %v1522, %v1489
    %v1524 = vadd.f32 %v1523, %v1491
    %v1525 = vadd.f32 %v1524, %v1493
    %v1526 = vadd.f32 %v1525, %v1495
    %v1527 = vadd.f32 %v1526, %v1497
    %v1528 = vadd.f32 %v1527, %v1499
    %v1529 = vadd.f32 %v1528, %v1501
    %v1530 = vadd.f32 %v1529, %v1503
    %v1531 = vadd.f32 %v1530, %v1505
    %v1532 = vrot.slane %v1531, 4
    %v1533 = vadd.f32 %v1531, %v1532
    %v1534 = vrot.slane %v1533, 2
    %v1535 = vadd.f32 %v1533, %v1534
    %v1536 = vrot.slane %v1535, 1
    %v1537 = vadd.f32 %v1535, %v1536
    %v1538 = vadd.f32 %v1456, %v1458
    %v1539 = vadd.f32 %v1538, %v1460
    %v1540 = vadd.f32 %v1539, %v1462
    %v1541 = vadd.f32 %v1540, %v1464
    %v1542 = vadd.f32 %v1541, %v1466
    %v1543 = vadd.f32 %v1542, %v1468
    %v1544 = vadd.f32 %v1543, %v1470
    %v1545 = vadd.f32 %v1544, %v1472
    %v1546 = vadd.f32 %v1545, %v1474
    %v1547 = vadd.f32 %v1546, %v1476
    %v1548 = vadd.f32 %v1547, %v1478
    %v1549 = vadd.f32 %v1548, %v1480
    %v1550 = vadd.f32 %v1549, %v1482
    %v1551 = vadd.f32 %v1550, %v1484
    %v1552 = vadd.f32 %v1551, %v1486
    %v1553 = vadd.f32 %v1552, %v1488
    %v1554 = vadd.f32 %v1553, %v1490
    %v1555 = vadd.f32 %v1554, %v1492
    %v1556 = vadd.f32 %v1555, %v1494
    %v1557 = vadd.f32 %v1556, %v1496
    %v1558 = vadd.f32 %v1557, %v1498
    %v1559 = vadd.f32 %v1558, %v1500
    %v1560 = vadd.f32 %v1559, %v1502
    %v1561 = vadd.f32 %v1560, %v1504
    %v1562 = vadd.f32 %v1561, %v1506
    %v1563 = vrot.slane %v1562, 4
    %v1564 = vadd.f32 %v1562, %v1563
    %v1565 = vrot.slane %v1564, 2
    %v1566 = vadd.f32 %v1564, %v1565
    %v1567 = vrot.slane %v1566, 1
    %v1568 = vadd.f32 %v1566, %v1567
    %vm1569 = vcmask 1040384
    %v1570 = vsel %vm1569, %v1423, %v1537
    %v1571 = vsel %vm1569, %v1454, %v1568
    %v1574 = vcombine.low %v1570, %v1571
    %v1576 = vunpack.c.l.s4 1983009808
    %v1577 = vunpack.c.0.s8 %v1576
    %v1578 = vlaneseq
    %v1579 = vshrl.u32 %v1578, 7
    %v1580 = vsub.s32 %v1577, %v1579
    %v1581 = vrot.slane %v1574, %v1580
    %1583 = vst [vmem:[%s4] sm:$0xf] %v1581
  $region17: #{autoencoder_forward.2} parent=0 // pred_fallthru
    _
  %p1584 = scmp.ne.s32.totalorder 0, 0
  // Predicated region
  $region18: #{autoencoder_forward.2} parent=0 // pred_check
    %p1585 = pneg %p1584
  $region19: #{autoencoder_forward.2} parent=0 // pred_check_branch
    %1587 = sbr.rel (%p1585) target = $region21
  $region20: #{autoencoder_forward.2} parent=0 // pred_region
    %v1588 = vadd.f32 %v922, %v926
    %v1589 = vadd.f32 %v1588, %v932
    %v1590 = vadd.f32 %v1589, %v936
    %v1591 = vadd.f32 %v1590, %v942
    %v1592 = vadd.f32 %v1591, %v946
    %v1593 = vadd.f32 %v1592, %v952
    %v1594 = vadd.f32 %v1593, %v956
    %v1595 = vadd.f32 %v1594, %v962
    %v1596 = vadd.f32 %v1595, %v966
    %v1597 = vadd.f32 %v1596, %v972
    %v1598 = vadd.f32 %v1597, %v976
    %v1599 = vadd.f32 %v1598, %v982
    %v1600 = vadd.f32 %v1599, %v986
    %v1601 = vadd.f32 %v1600, %v992
    %v1602 = vadd.f32 %v1601, %v996
    %v1603 = vadd.f32 %v1602, %v1002
    %v1604 = vadd.f32 %v1603, %v1006
    %v1605 = vadd.f32 %v1604, %v1012
    %v1606 = vadd.f32 %v1605, %v1016
    %v1607 = vadd.f32 %v1606, %v1022
    %v1608 = vadd.f32 %v1607, %v1026
    %v1609 = vadd.f32 %v1608, %v1032
    %v1610 = vadd.f32 %v1609, %v1036
    %v1611 = vadd.f32 %v1610, %v1042
    %v1612 = vadd.f32 %v1611, %v1046
    %v1613 = vrot.slane %v1612, 4
    %v1614 = vadd.f32 %v1612, %v1613
    %v1615 = vrot.slane %v1614, 2
    %v1616 = vadd.f32 %v1614, %v1615
    %v1617 = vrot.slane %v1616, 1
    %v1618 = vadd.f32 %v1616, %v1617
    %v1619 = vadd.f32 %v924, %v928
    %v1620 = vadd.f32 %v1619, %v934
    %v1621 = vadd.f32 %v1620, %v938
    %v1622 = vadd.f32 %v1621, %v944
    %v1623 = vadd.f32 %v1622, %v948
    %v1624 = vadd.f32 %v1623, %v954
    %v1625 = vadd.f32 %v1624, %v958
    %v1626 = vadd.f32 %v1625, %v964
    %v1627 = vadd.f32 %v1626, %v968
    %v1628 = vadd.f32 %v1627, %v974
    %v1629 = vadd.f32 %v1628, %v978
    %v1630 = vadd.f32 %v1629, %v984
    %v1631 = vadd.f32 %v1630, %v988
    %v1632 = vadd.f32 %v1631, %v994
    %v1633 = vadd.f32 %v1632, %v998
    %v1634 = vadd.f32 %v1633, %v1004
    %v1635 = vadd.f32 %v1634, %v1008
    %v1636 = vadd.f32 %v1635, %v1014
    %v1637 = vadd.f32 %v1636, %v1018
    %v1638 = vadd.f32 %v1637, %v1024
    %v1639 = vadd.f32 %v1638, %v1028
    %v1640 = vadd.f32 %v1639, %v1034
    %v1641 = vadd.f32 %v1640, %v1038
    %v1642 = vadd.f32 %v1641, %v1044
    %v1643 = vadd.f32 %v1642, %v1048
    %v1644 = vrot.slane %v1643, 4
    %v1645 = vadd.f32 %v1643, %v1644
    %v1646 = vrot.slane %v1645, 2
    %v1647 = vadd.f32 %v1645, %v1646
    %v1648 = vrot.slane %v1647, 1
    %v1649 = vadd.f32 %v1647, %v1648
    %v1650 = vmul.f32 %v922, %v922
    %v1651 = vmul.f32 %v924, %v924
    %v1652 = vmul.f32 %v926, %v926
    %v1653 = vmul.f32 %v928, %v928
    %v1654 = vmul.f32 %v932, %v932
    %v1655 = vmul.f32 %v934, %v934
    %v1656 = vmul.f32 %v936, %v936
    %v1657 = vmul.f32 %v938, %v938
    %v1658 = vmul.f32 %v942, %v942
    %v1659 = vmul.f32 %v944, %v944
    %v1660 = vmul.f32 %v946, %v946
    %v1661 = vmul.f32 %v948, %v948
    %v1662 = vmul.f32 %v952, %v952
    %v1663 = vmul.f32 %v954, %v954
    %v1664 = vmul.f32 %v956, %v956
    %v1665 = vmul.f32 %v958, %v958
    %v1666 = vmul.f32 %v962, %v962
    %v1667 = vmul.f32 %v964, %v964
    %v1668 = vmul.f32 %v966, %v966
    %v1669 = vmul.f32 %v968, %v968
    %v1670 = vmul.f32 %v972, %v972
    %v1671 = vmul.f32 %v974, %v974
    %v1672 = vmul.f32 %v976, %v976
    %v1673 = vmul.f32 %v978, %v978
    %v1674 = vmul.f32 %v982, %v982
    %v1675 = vmul.f32 %v984, %v984
    %v1676 = vmul.f32 %v986, %v986
    %v1677 = vmul.f32 %v988, %v988
    %v1678 = vmul.f32 %v992, %v992
    %v1679 = vmul.f32 %v994, %v994
    %v1680 = vmul.f32 %v996, %v996
    %v1681 = vmul.f32 %v998, %v998
    %v1682 = vmul.f32 %v1002, %v1002
    %v1683 = vmul.f32 %v1004, %v1004
    %v1684 = vmul.f32 %v1006, %v1006
    %v1685 = vmul.f32 %v1008, %v1008
    %v1686 = vmul.f32 %v1012, %v1012
    %v1687 = vmul.f32 %v1014, %v1014
    %v1688 = vmul.f32 %v1016, %v1016
    %v1689 = vmul.f32 %v1018, %v1018
    %v1690 = vmul.f32 %v1022, %v1022
    %v1691 = vmul.f32 %v1024, %v1024
    %v1692 = vmul.f32 %v1026, %v1026
    %v1693 = vmul.f32 %v1028, %v1028
    %v1694 = vmul.f32 %v1032, %v1032
    %v1695 = vmul.f32 %v1034, %v1034
    %v1696 = vmul.f32 %v1036, %v1036
    %v1697 = vmul.f32 %v1038, %v1038
    %v1698 = vmul.f32 %v1042, %v1042
    %v1699 = vmul.f32 %v1044, %v1044
    %v1700 = vmul.f32 %v1046, %v1046
    %v1701 = vmul.f32 %v1048, %v1048
    %v1702 = vadd.f32 %v1650, %v1652
    %v1703 = vadd.f32 %v1702, %v1654
    %v1704 = vadd.f32 %v1703, %v1656
    %v1705 = vadd.f32 %v1704, %v1658
    %v1706 = vadd.f32 %v1705, %v1660
    %v1707 = vadd.f32 %v1706, %v1662
    %v1708 = vadd.f32 %v1707, %v1664
    %v1709 = vadd.f32 %v1708, %v1666
    %v1710 = vadd.f32 %v1709, %v1668
    %v1711 = vadd.f32 %v1710, %v1670
    %v1712 = vadd.f32 %v1711, %v1672
    %v1713 = vadd.f32 %v1712, %v1674
    %v1714 = vadd.f32 %v1713, %v1676
    %v1715 = vadd.f32 %v1714, %v1678
    %v1716 = vadd.f32 %v1715, %v1680
    %v1717 = vadd.f32 %v1716, %v1682
    %v1718 = vadd.f32 %v1717, %v1684
    %v1719 = vadd.f32 %v1718, %v1686
    %v1720 = vadd.f32 %v1719, %v1688
    %v1721 = vadd.f32 %v1720, %v1690
    %v1722 = vadd.f32 %v1721, %v1692
    %v1723 = vadd.f32 %v1722, %v1694
    %v1724 = vadd.f32 %v1723, %v1696
    %v1725 = vadd.f32 %v1724, %v1698
    %v1726 = vadd.f32 %v1725, %v1700
    %v1727 = vrot.slane %v1726, 4
    %v1728 = vadd.f32 %v1726, %v1727
    %v1729 = vrot.slane %v1728, 2
    %v1730 = vadd.f32 %v1728, %v1729
    %v1731 = vrot.slane %v1730, 1
    %v1732 = vadd.f32 %v1730, %v1731
    %v1733 = vadd.f32 %v1651, %v1653
    %v1734 = vadd.f32 %v1733, %v1655
    %v1735 = vadd.f32 %v1734, %v1657
    %v1736 = vadd.f32 %v1735, %v1659
    %v1737 = vadd.f32 %v1736, %v1661
    %v1738 = vadd.f32 %v1737, %v1663
    %v1739 = vadd.f32 %v1738, %v1665
    %v1740 = vadd.f32 %v1739, %v1667
    %v1741 = vadd.f32 %v1740, %v1669
    %v1742 = vadd.f32 %v1741, %v1671
    %v1743 = vadd.f32 %v1742, %v1673
    %v1744 = vadd.f32 %v1743, %v1675
    %v1745 = vadd.f32 %v1744, %v1677
    %v1746 = vadd.f32 %v1745, %v1679
    %v1747 = vadd.f32 %v1746, %v1681
    %v1748 = vadd.f32 %v1747, %v1683
    %v1749 = vadd.f32 %v1748, %v1685
    %v1750 = vadd.f32 %v1749, %v1687
    %v1751 = vadd.f32 %v1750, %v1689
    %v1752 = vadd.f32 %v1751, %v1691
    %v1753 = vadd.f32 %v1752, %v1693
    %v1754 = vadd.f32 %v1753, %v1695
    %v1755 = vadd.f32 %v1754, %v1697
    %v1756 = vadd.f32 %v1755, %v1699
    %v1757 = vadd.f32 %v1756, %v1701
    %v1758 = vrot.slane %v1757, 4
    %v1759 = vadd.f32 %v1757, %v1758
    %v1760 = vrot.slane %v1759, 2
    %v1761 = vadd.f32 %v1759, %v1760
    %v1762 = vrot.slane %v1761, 1
    %v1763 = vadd.f32 %v1761, %v1762
    %vm1764 = vcmask 1040384
    %v1765 = vsel %vm1764, %v1618, %v1732
    %v1766 = vsel %vm1764, %v1649, %v1763
    %v1769 = vcombine.low %v1765, %v1766
    %v1771 = vunpack.c.l.s4 1983009808
    %v1772 = vunpack.c.0.s8 %v1771
    %v1773 = vlaneseq
    %v1774 = vshrl.u32 %v1773, 7
    %v1775 = vsub.s32 %v1772, %v1774
    %v1776 = vrot.slane %v1769, %v1775
    %1778 = vst [vmem:[%s4] sm:$0xf] %v1776
  $region21: #{autoencoder_forward.2} parent=0 // pred_fallthru
    _
  // Predicated region
  $region22: #{autoencoder_forward.2} parent=0 // pred_check
    _
  $region23: #{autoencoder_forward.2} parent=0 // pred_check_branch
    %1780 = sbr.rel (0) target = $region25
  $region24: #{autoencoder_forward.2} parent=0 // pred_region
    _
  $region25: #{autoencoder_forward.2} parent=0 // pred_fallthru
    _
  // Predicated region
  $region26: #{autoencoder_forward.2} parent=0 // pred_check
    _
  $region27: #{autoencoder_forward.2} parent=0 // pred_check_branch
    %1782 = sbr.rel (0) target = $region29
  $region28: #{autoencoder_forward.2} parent=0 // pred_region
    _
  $region29: #{autoencoder_forward.2} parent=0 // pred_fallthru
    _
  // Predicated region
  $region30: #{autoencoder_forward.2} parent=0 // pred_check
    _
  $region31: #{autoencoder_forward.2} parent=0 // pred_check_branch
    %1784 = sbr.rel (0) target = $region33
  $region32: #{autoencoder_forward.2} parent=0 // pred_region
    _
  $region33: #{autoencoder_forward.2} parent=0 // pred_fallthru
    _
  // Predicated region
  $region34: #{autoencoder_forward.2} parent=0 // pred_check
    _
  $region35: #{autoencoder_forward.2} parent=0 // pred_check_branch
    %1786 = sbr.rel (0) target = $region37
  $region36: #{autoencoder_forward.2} parent=0 // pred_region
    _
  $region37: #{autoencoder_forward.2} parent=0 // pred_fallthru
    _

// kernel: autoencoder_forward.3
$region0: #{autoencoder_forward.3}
  #allocation0 [shape = 'u32[]', space=smem, size = 0x4, offset = 0x4, fixed_abs, tag = 'smem constant byte address 0x4 - core index']
  #allocation1 [shape = 'u32[144,128]{1,0:T(1,128)}', space=vmem, size = 0x12000, scoped, tag = 'internal scratch']
  %s0 = inlined_call_operand.vmem [shape: f32[1,2,256], index: 0, kind: input, shape index: {}]
  %s1 = inlined_call_operand.vmem [shape: f32[1,256], index: 1, kind: input, shape index: {}]
  %s2 = inlined_call_operand.vmem [shape: f32[1,256], index: 2, kind: input, shape index: {}]
  %s3 = inlined_call_operand.vmem [shape: bf16[208,256], index: 3, kind: input, shape index: {}]
  %s4 = inlined_call_operand.vmem [shape: bf16[256,128], index: 4, kind: input, shape index: {}]
  %s5 = inlined_call_operand.vmem [shape: f32[1,128], index: 5, kind: input, shape index: {}]
  %s6 = inlined_call_operand.vmem [shape: bf16[128,256], index: 6, kind: input, shape index: {}]
  %s7 = inlined_call_operand.vmem [shape: f32[1,256], index: 7, kind: input, shape index: {}]
  %s8 = inlined_call_operand.vmem [shape: bf16[256,512], index: 8, kind: input, shape index: {}]
  %s9 = inlined_call_operand.vmem [shape: f32[1,512], index: 9, kind: input, shape index: {}]
  %s10 = inlined_call_operand.vmem [shape: f32[208,512], index: 10, kind: output, shape index: {}]
  %s11 = sld [smem:[#allocation0]]
  $region50: #{autoencoder_forward.3} parent=0
    _
  %s13 = ssub.s32 1, %s11
  %s14 = scalar_select 0, %s13, %s11
  // Predicated region
  $region2: #{autoencoder_forward.3} parent=0 // pred_check
    _
  $region3: #{autoencoder_forward.3} parent=0 // pred_check_branch
    %16 = sbr.rel (0) target = $region5
  $region4: #{autoencoder_forward.3} parent=0 // pred_region
    _
  $region5: #{autoencoder_forward.3} parent=0 // pred_fallthru
    _
  // Predicated region
  $region6: #{autoencoder_forward.3} parent=0 // pred_check
    _
  $region7: #{autoencoder_forward.3} parent=0 // pred_check_branch
    %18 = sbr.rel (0) target = $region9
  $region8: #{autoencoder_forward.3} parent=0 // pred_region
    _
  $region9: #{autoencoder_forward.3} parent=0 // pred_fallthru
    _
  // Predicated region
  $region10: #{autoencoder_forward.3} parent=0 // pred_check
    _
  $region11: #{autoencoder_forward.3} parent=0 // pred_check_branch
    %20 = sbr.rel (0) target = $region13
  $region12: #{autoencoder_forward.3} parent=0 // pred_region
    _
  $region13: #{autoencoder_forward.3} parent=0 // pred_fallthru
    _
  // Predicated region
  $region14: #{autoencoder_forward.3} parent=0 // pred_check
    _
  $region15: #{autoencoder_forward.3} parent=0 // pred_check_branch
    %22 = sbr.rel (0) target = $region17
  $region16: #{autoencoder_forward.3} parent=0 // pred_region
    _
  $region17: #{autoencoder_forward.3} parent=0 // pred_fallthru
    _
  // Predicated region
  $region18: #{autoencoder_forward.3} parent=0 // pred_check
    _
  $region19: #{autoencoder_forward.3} parent=0 // pred_check_branch
    %24 = sbr.rel (0) target = $region21
  $region20: #{autoencoder_forward.3} parent=0 // pred_region
    _
  $region21: #{autoencoder_forward.3} parent=0 // pred_fallthru
    _
  // Predicated region
  $region22: #{autoencoder_forward.3} parent=0 // pred_check
    _
  $region23: #{autoencoder_forward.3} parent=0 // pred_check_branch
    %26 = sbr.rel (0) target = $region25
  $region24: #{autoencoder_forward.3} parent=0 // pred_region
    _
  $region25: #{autoencoder_forward.3} parent=0 // pred_fallthru
    _
  // Predicated region
  $region26: #{autoencoder_forward.3} parent=0 // pred_check
    _
  $region27: #{autoencoder_forward.3} parent=0 // pred_check_branch
    %28 = sbr.rel (0) target = $region29
  $region28: #{autoencoder_forward.3} parent=0 // pred_region
    _
  $region29: #{autoencoder_forward.3} parent=0 // pred_fallthru
    _
  // Predicated region
  $region30: #{autoencoder_forward.3} parent=0 // pred_check
    _
  $region31: #{autoencoder_forward.3} parent=0 // pred_check_branch
    %30 = sbr.rel (0) target = $region33
  $region32: #{autoencoder_forward.3} parent=0 // pred_region
    _
  $region33: #{autoencoder_forward.3} parent=0 // pred_fallthru
    _
  // Predicated region
  $region34: #{autoencoder_forward.3} parent=0 // pred_check
    _
  $region35: #{autoencoder_forward.3} parent=0 // pred_check_branch
    %32 = sbr.rel (0) target = $region37
  $region36: #{autoencoder_forward.3} parent=0 // pred_region
    _
  $region37: #{autoencoder_forward.3} parent=0 // pred_fallthru
    _
  // Predicated region
  $region38: #{autoencoder_forward.3} parent=0 // pred_check
    _
  $region39: #{autoencoder_forward.3} parent=0 // pred_check_branch
    %34 = sbr.rel (0) target = $region41
  $region40: #{autoencoder_forward.3} parent=0 // pred_region
    _
  $region41: #{autoencoder_forward.3} parent=0 // pred_fallthru
    _
  %v36 = vld [vmem:[%s0] sm:$0xf]
  %v37 = vld [vmem:[%s1] sm:$0x3]
  %v38 = vld [vmem:[%s2] sm:$0x3]
  %v39 = vld [vmem:[%s3] sm:$0xff]
  %v40 = vld [vmem:[%s3 + $0x8] sm:$0xff]
  %v41 = vld [vmem:[%s3 + $0x10] sm:$0xff]
  %v42 = vld [vmem:[%s3 + $0x18] sm:$0xff]
  %v43 = vld [vmem:[%s3 + $0x20] sm:$0xff]
  %v44 = vld [vmem:[%s3 + $0x28] sm:$0xff]
  %v45 = vld [vmem:[%s3 + $0x30] sm:$0xff]
  %v46 = vld [vmem:[%s3 + $0x38] sm:$0xff]
  %v47 = vld [vmem:[%s3 + $0x40] sm:$0xff]
  %v48 = vld [vmem:[%s3 + $0x48] sm:$0xff]
  %v49 = vld [vmem:[%s3 + $0x50] sm:$0xff]
  %v50 = vld [vmem:[%s3 + $0x58] sm:$0xff]
  %v51 = vld [vmem:[%s3 + $0x60] sm:$0xff]
  %v52 = vld [vmem:[%s3 + $0x68] sm:$0xff]
  %v53 = vld [vmem:[%s3 + $0x70] sm:$0xff]
  %v54 = vld [vmem:[%s3 + $0x78] sm:$0xff]
  %v55 = vld [vmem:[%s3 + $0x80] sm:$0xff]
  %v56 = vld [vmem:[%s3 + $0x88] sm:$0xff]
  %v57 = vld [vmem:[%s3 + $0x90] sm:$0xff]
  %v58 = vld [vmem:[%s3 + $0x98] sm:$0xff]
  %v59 = vld [vmem:[%s3 + $0xa0] sm:$0xff]
  %v60 = vld [vmem:[%s3 + $0xa8] sm:$0xff]
  %v61 = vld [vmem:[%s3 + $0xb0] sm:$0xff]
  %v62 = vld [vmem:[%s3 + $0xb8] sm:$0xff]
  %v63 = vld [vmem:[%s3 + $0xc0] sm:$0xff]
  %v64 = vld [vmem:[%s3 + $0xc8] sm:$0xff]
  %v65 = vld [vmem:[%s4] sm:$0xf]
  %v66 = vld [vmem:[%s4 + $0x4] sm:$0xf]
  %v67 = vld [vmem:[%s4 + $0x8] sm:$0xf]
  %v68 = vld [vmem:[%s4 + $0xc] sm:$0xf]
  %v69 = vld [vmem:[%s4 + $0x10] sm:$0xf]
  %v70 = vld [vmem:[%s4 + $0x14] sm:$0xf]
  %v71 = vld [vmem:[%s4 + $0x18] sm:$0xf]
  %v72 = vld [vmem:[%s4 + $0x1c] sm:$0xf]
  %v73 = vld [vmem:[%s4 + $0x20] sm:$0xf]
  %v74 = vld [vmem:[%s4 + $0x24] sm:$0xf]
  %v75 = vld [vmem:[%s4 + $0x28] sm:$0xf]
  %v76 = vld [vmem:[%s4 + $0x2c] sm:$0xf]
  %v77 = vld [vmem:[%s4 + $0x30] sm:$0xf]
  %v78 = vld [vmem:[%s4 + $0x34] sm:$0xf]
  %v79 = vld [vmem:[%s4 + $0x38] sm:$0xf]
  %v80 = vld [vmem:[%s4 + $0x3c] sm:$0xf]
  %v81 = vld [vmem:[%s4 + $0x40] sm:$0xf]
  %v82 = vld [vmem:[%s4 + $0x44] sm:$0xf]
  %v83 = vld [vmem:[%s4 + $0x48] sm:$0xf]
  %v84 = vld [vmem:[%s4 + $0x4c] sm:$0xf]
  %v85 = vld [vmem:[%s4 + $0x50] sm:$0xf]
  %v86 = vld [vmem:[%s4 + $0x54] sm:$0xf]
  %v87 = vld [vmem:[%s4 + $0x58] sm:$0xf]
  %v88 = vld [vmem:[%s4 + $0x5c] sm:$0xf]
  %v89 = vld [vmem:[%s4 + $0x60] sm:$0xf]
  %v90 = vld [vmem:[%s4 + $0x64] sm:$0xf]
  %v91 = vld [vmem:[%s4 + $0x68] sm:$0xf]
  %v92 = vld [vmem:[%s4 + $0x6c] sm:$0xf]
  %v93 = vld [vmem:[%s4 + $0x70] sm:$0xf]
  %v94 = vld [vmem:[%s4 + $0x74] sm:$0xf]
  %v95 = vld [vmem:[%s4 + $0x78] sm:$0xf]
  %v96 = vld [vmem:[%s4 + $0x7c] sm:$0xf]
  %v97 = vld [vmem:[%s5] sm:$0x1]
  %v98 = vadd.f32 %v36, 0.0
  %v99 = vmul.f32 %v98, 0.005
  %v100 = vmul.f32 %v99, %v99
  %v102 = vrot.slane %v100, 7
  %v104 = vsub.f32 %v99, %v102
  %v105 = vmax.f32 %v104, 0.0
  %v106 = vadd.f32 %v105, 1e-05
  %v107 = vrsqrt.pop %v106
  %v110 = vunpack.c.l.s4 1966171168
  %v111 = vunpack.c.0.s8 %v110
  %v112 = vlaneseq
  %v113 = vshrl.u32 %v112, 7
  %v114 = vsub.s32 %v111, %v113
  %v115 = vrot.slane %v107, %v114
  %v116 = vcombine.high %v115, %v115
  %v118 = vmul.f32 %v37, %v116
  %v121 = vunpack.c.l.s4 857870592
  %v122 = vunpack.c.0.s8 %v121
  %v123 = vlaneseq
  %v124 = vshrl.u32 %v123, 7
  %v125 = vsub.s32 %v122, %v124
  %v126 = vrot.slane %v118, %v125
  %v128 = vmul.f32 %v99, %v126
  %v131 = vunpack.c.l.s4 1966171168
  %v132 = vunpack.c.0.s8 %v131
  %v133 = vlaneseq
  %v134 = vshrl.u32 %v133, 7
  %v135 = vsub.s32 %v132, %v134
  %v136 = vrot.slane %v128, %v135
  %v138 = vsub.f32 %v38, %v136
  %v139 = vunpack.c.l.bf16 %v39
  %v140 = vunpack.c.h.bf16 %v39
  %v141 = vunpack.c.l.bf16 %v40
  %v142 = vunpack.c.h.bf16 %v40
  %v143 = vunpack.c.l.bf16 %v41
  %v144 = vunpack.c.h.bf16 %v41
  %v145 = vunpack.c.l.bf16 %v42
  %v146 = vunpack.c.h.bf16 %v42
  %v147 = vunpack.c.l.bf16 %v43
  %v148 = vunpack.c.h.bf16 %v43
  %v149 = vunpack.c.l.bf16 %v44
  %v150 = vunpack.c.h.bf16 %v44
  %v151 = vunpack.c.l.bf16 %v45
  %v152 = vunpack.c.h.bf16 %v45
  %v153 = vunpack.c.l.bf16 %v46
  %v154 = vunpack.c.h.bf16 %v46
  %v155 = vunpack.c.l.bf16 %v47
  %v156 = vunpack.c.h.bf16 %v47
  %v157 = vunpack.c.l.bf16 %v48
  %v158 = vunpack.c.h.bf16 %v48
  %v159 = vunpack.c.l.bf16 %v49
  %v160 = vunpack.c.h.bf16 %v49
  %v161 = vunpack.c.l.bf16 %v50
  %v162 = vunpack.c.h.bf16 %v50
  %v163 = vunpack.c.l.bf16 %v51
  %v164 = vunpack.c.h.bf16 %v51
  %v165 = vunpack.c.l.bf16 %v52
  %v166 = vunpack.c.h.bf16 %v52
  %v167 = vunpack.c.l.bf16 %v53
  %v168 = vunpack.c.h.bf16 %v53
  %v169 = vunpack.c.l.bf16 %v54
  %v170 = vunpack.c.h.bf16 %v54
  %v171 = vunpack.c.l.bf16 %v55
  %v172 = vunpack.c.h.bf16 %v55
  %v173 = vunpack.c.l.bf16 %v56
  %v174 = vunpack.c.h.bf16 %v56
  %v175 = vunpack.c.l.bf16 %v57
  %v176 = vunpack.c.h.bf16 %v57
  %v177 = vunpack.c.l.bf16 %v58
  %v178 = vunpack.c.h.bf16 %v58
  %v179 = vunpack.c.l.bf16 %v59
  %v180 = vunpack.c.h.bf16 %v59
  %v181 = vunpack.c.l.bf16 %v60
  %v182 = vunpack.c.h.bf16 %v60
  %v183 = vunpack.c.l.bf16 %v61
  %v184 = vunpack.c.h.bf16 %v61
  %v185 = vunpack.c.l.bf16 %v62
  %v186 = vunpack.c.h.bf16 %v62
  %v187 = vunpack.c.l.bf16 %v63
  %v188 = vunpack.c.h.bf16 %v63
  %v189 = vunpack.c.l.bf16 %v64
  %v190 = vunpack.c.h.bf16 %v64
  %v191 = vlaneseq
  %v192 = vshrl.u32 %v191, 7
  %v193 = vsub.s32 0, %v192
  %v194 = vrot.slane %v118, %v193
  %v195 = vlaneseq
  %v196 = vshrl.u32 %v195, 7
  %v197 = vsub.s32 1, %v196
  %v198 = vrot.slane %v118, %v197
  %v201 = vmul.f32 %v139, %v194
  %v202 = vmul.f32 %v140, %v198
  %v203 = vmul.f32 %v141, %v194
  %v204 = vmul.f32 %v142, %v198
  %v205 = vmul.f32 %v143, %v194
  %v206 = vmul.f32 %v144, %v198
  %v207 = vmul.f32 %v145, %v194
  %v208 = vmul.f32 %v146, %v198
  %v209 = vmul.f32 %v147, %v194
  %v210 = vmul.f32 %v148, %v198
  %v211 = vmul.f32 %v149, %v194
  %v212 = vmul.f32 %v150, %v198
  %v213 = vmul.f32 %v151, %v194
  %v214 = vmul.f32 %v152, %v198
  %v215 = vmul.f32 %v153, %v194
  %v216 = vmul.f32 %v154, %v198
  %v217 = vmul.f32 %v155, %v194
  %v218 = vmul.f32 %v156, %v198
  %v219 = vmul.f32 %v157, %v194
  %v220 = vmul.f32 %v158, %v198
  %v221 = vmul.f32 %v159, %v194
  %v222 = vmul.f32 %v160, %v198
  %v223 = vmul.f32 %v161, %v194
  %v224 = vmul.f32 %v162, %v198
  %v225 = vmul.f32 %v163, %v194
  %v226 = vmul.f32 %v164, %v198
  %v227 = vmul.f32 %v165, %v194
  %v228 = vmul.f32 %v166, %v198
  %v229 = vmul.f32 %v167, %v194
  %v230 = vmul.f32 %v168, %v198
  %v231 = vmul.f32 %v169, %v194
  %v232 = vmul.f32 %v170, %v198
  %v233 = vmul.f32 %v171, %v194
  %v234 = vmul.f32 %v172, %v198
  %v235 = vmul.f32 %v173, %v194
  %v236 = vmul.f32 %v174, %v198
  %v237 = vmul.f32 %v175, %v194
  %v238 = vmul.f32 %v176, %v198
  %v239 = vmul.f32 %v177, %v194
  %v240 = vmul.f32 %v178, %v198
  %v241 = vmul.f32 %v179, %v194
  %v242 = vmul.f32 %v180, %v198
  %v243 = vmul.f32 %v181, %v194
  %v244 = vmul.f32 %v182, %v198
  %v245 = vmul.f32 %v183, %v194
  %v246 = vmul.f32 %v184, %v198
  %v247 = vmul.f32 %v185, %v194
  %v248 = vmul.f32 %v186, %v198
  %v249 = vmul.f32 %v187, %v194
  %v250 = vmul.f32 %v188, %v198
  %v251 = vmul.f32 %v189, %v194
  %v252 = vmul.f32 %v190, %v198
  %v254 = vlaneseq
  %v255 = vshrl.u32 %v254, 7
  %v256 = vsub.s32 0, %v255
  %v257 = vrot.slane %v138, %v256
  %v258 = vlaneseq
  %v259 = vshrl.u32 %v258, 7
  %v260 = vsub.s32 1, %v259
  %v261 = vrot.slane %v138, %v260
  %v264 = vadd.f32 %v201, %v257
  %v265 = vadd.f32 %v202, %v261
  %v266 = vadd.f32 %v203, %v257
  %v267 = vadd.f32 %v204, %v261
  %v268 = vadd.f32 %v205, %v257
  %v269 = vadd.f32 %v206, %v261
  %v270 = vadd.f32 %v207, %v257
  %v271 = vadd.f32 %v208, %v261
  %v272 = vadd.f32 %v209, %v257
  %v273 = vadd.f32 %v210, %v261
  %v274 = vadd.f32 %v211, %v257
  %v275 = vadd.f32 %v212, %v261
  %v276 = vadd.f32 %v213, %v257
  %v277 = vadd.f32 %v214, %v261
  %v278 = vadd.f32 %v215, %v257
  %v279 = vadd.f32 %v216, %v261
  %v280 = vadd.f32 %v217, %v257
  %v281 = vadd.f32 %v218, %v261
  %v282 = vadd.f32 %v219, %v257
  %v283 = vadd.f32 %v220, %v261
  %v284 = vadd.f32 %v221, %v257
  %v285 = vadd.f32 %v222, %v261
  %v286 = vadd.f32 %v223, %v257
  %v287 = vadd.f32 %v224, %v261
  %v288 = vadd.f32 %v225, %v257
  %v289 = vadd.f32 %v226, %v261
  %v290 = vadd.f32 %v227, %v257
  %v291 = vadd.f32 %v228, %v261
  %v292 = vadd.f32 %v229, %v257
  %v293 = vadd.f32 %v230, %v261
  %v294 = vadd.f32 %v231, %v257
  %v295 = vadd.f32 %v232, %v261
  %v296 = vadd.f32 %v233, %v257
  %v297 = vadd.f32 %v234, %v261
  %v298 = vadd.f32 %v235, %v257
  %v299 = vadd.f32 %v236, %v261
  %v300 = vadd.f32 %v237, %v257
  %v301 = vadd.f32 %v238, %v261
  %v302 = vadd.f32 %v239, %v257
  %v303 = vadd.f32 %v240, %v261
  %v304 = vadd.f32 %v241, %v257
  %v305 = vadd.f32 %v242, %v261
  %v306 = vadd.f32 %v243, %v257
  %v307 = vadd.f32 %v244, %v261
  %v308 = vadd.f32 %v245, %v257
  %v309 = vadd.f32 %v246, %v261
  %v310 = vadd.f32 %v247, %v257
  %v311 = vadd.f32 %v248, %v261
  %v312 = vadd.f32 %v249, %v257
  %v313 = vadd.f32 %v250, %v261
  %v314 = vadd.f32 %v251, %v257
  %v315 = vadd.f32 %v252, %v261
  %v316 = vmax.f32 %v264, 0.0
  %v317 = vmax.f32 %v265, 0.0
  %v318 = vmax.f32 %v266, 0.0
  %v319 = vmax.f32 %v267, 0.0
  %v320 = vmax.f32 %v268, 0.0
  %v321 = vmax.f32 %v269, 0.0
  %v322 = vmax.f32 %v270, 0.0
  %v323 = vmax.f32 %v271, 0.0
  %v324 = vmax.f32 %v272, 0.0
  %v325 = vmax.f32 %v273, 0.0
  %v326 = vmax.f32 %v274, 0.0
  %v327 = vmax.f32 %v275, 0.0
  %v328 = vmax.f32 %v276, 0.0
  %v329 = vmax.f32 %v277, 0.0
  %v330 = vmax.f32 %v278, 0.0
  %v331 = vmax.f32 %v279, 0.0
  %v332 = vmax.f32 %v280, 0.0
  %v333 = vmax.f32 %v281, 0.0
  %v334 = vmax.f32 %v282, 0.0
  %v335 = vmax.f32 %v283, 0.0
  %v336 = vmax.f32 %v284, 0.0
  %v337 = vmax.f32 %v285, 0.0
  %v338 = vmax.f32 %v286, 0.0
  %v339 = vmax.f32 %v287, 0.0
  %v340 = vmax.f32 %v288, 0.0
  %v341 = vmax.f32 %v289, 0.0
  %v342 = vmax.f32 %v290, 0.0
  %v343 = vmax.f32 %v291, 0.0
  %v344 = vmax.f32 %v292, 0.0
  %v345 = vmax.f32 %v293, 0.0
  %v346 = vmax.f32 %v294, 0.0
  %v347 = vmax.f32 %v295, 0.0
  %v348 = vmax.f32 %v296, 0.0
  %v349 = vmax.f32 %v297, 0.0
  %v350 = vmax.f32 %v298, 0.0
  %v351 = vmax.f32 %v299, 0.0
  %v352 = vmax.f32 %v300, 0.0
  %v353 = vmax.f32 %v301, 0.0
  %v354 = vmax.f32 %v302, 0.0
  %v355 = vmax.f32 %v303, 0.0
  %v356 = vmax.f32 %v304, 0.0
  %v357 = vmax.f32 %v305, 0.0
  %v358 = vmax.f32 %v306, 0.0
  %v359 = vmax.f32 %v307, 0.0
  %v360 = vmax.f32 %v308, 0.0
  %v361 = vmax.f32 %v309, 0.0
  %v362 = vmax.f32 %v310, 0.0
  %v363 = vmax.f32 %v311, 0.0
  %v364 = vmax.f32 %v312, 0.0
  %v365 = vmax.f32 %v313, 0.0
  %v366 = vmax.f32 %v314, 0.0
  %v367 = vmax.f32 %v315, 0.0
  %v368 = vpack.c.bf16 %v318, %v316
  %v369 = vpack.c.bf16 %v319, %v317
  %v370 = vpack.c.bf16 %v322, %v320
  %v371 = vpack.c.bf16 %v323, %v321
  %v372 = vpack.c.bf16 %v326, %v324
  %v373 = vpack.c.bf16 %v327, %v325
  %v374 = vpack.c.bf16 %v330, %v328
  %v375 = vpack.c.bf16 %v331, %v329
  %v376 = vpack.c.bf16 %v334, %v332
  %v377 = vpack.c.bf16 %v335, %v333
  %v378 = vpack.c.bf16 %v338, %v336
  %v379 = vpack.c.bf16 %v339, %v337
  %v380 = vpack.c.bf16 %v342, %v340
  %v381 = vpack.c.bf16 %v343, %v341
  %v382 = vpack.c.bf16 %v346, %v344
  %v383 = vpack.c.bf16 %v347, %v345
  %v384 = vpack.c.bf16 %v350, %v348
  %v385 = vpack.c.bf16 %v351, %v349
  %v386 = vpack.c.bf16 %v354, %v352
  %v387 = vpack.c.bf16 %v355, %v353
  %v388 = vpack.c.bf16 %v358, %v356
  %v389 = vpack.c.bf16 %v359, %v357
  %v390 = vpack.c.bf16 %v362, %v360
  %v391 = vpack.c.bf16 %v363, %v361
  %v392 = vpack.c.bf16 %v366, %v364
  %v393 = vpack.c.bf16 %v367, %v365
  %v395 = vlaneseq
  %v396 = vshrl.u32 %v395, 7
  %v397 = vsub.s32 0, %v396
  %v398 = vrot.slane %v97, %v397
  %v432 = vunpack.c.l.b16 %v65
  %v433 = vunpack.c.l.b16 %v66
  %v434 = vunpack.c.l.b16 %v67
  %v435 = vunpack.c.l.b16 %v68
  %v436 = vunpack.c.l.b16 %v69
  %v437 = vunpack.c.l.b16 %v70
  %v438 = vunpack.c.l.b16 %v71
  %v439 = vunpack.c.l.b16 %v72
  %v440 = vunpack.c.l.b16 %v73
  %v441 = vunpack.c.l.b16 %v74
  %v442 = vunpack.c.l.b16 %v75
  %v443 = vunpack.c.l.b16 %v76
  %v444 = vunpack.c.l.b16 %v77
  %v445 = vunpack.c.l.b16 %v78
  %v446 = vunpack.c.l.b16 %v79
  %v447 = vunpack.c.l.b16 %v80
  %v448 = vunpack.c.l.b16 %v81
  %v449 = vunpack.c.l.b16 %v82
  %v450 = vunpack.c.l.b16 %v83
  %v451 = vunpack.c.l.b16 %v84
  %v452 = vunpack.c.l.b16 %v85
  %v453 = vunpack.c.l.b16 %v86
  %v454 = vunpack.c.l.b16 %v87
  %v455 = vunpack.c.l.b16 %v88
  %v456 = vunpack.c.l.b16 %v89
  %v457 = vunpack.c.l.b16 %v90
  %v458 = vunpack.c.l.b16 %v91
  %v459 = vunpack.c.l.b16 %v92
  %v460 = vunpack.c.l.b16 %v93
  %v461 = vunpack.c.l.b16 %v94
  %v462 = vunpack.c.l.b16 %v95
  %v463 = vunpack.c.l.b16 %v96
  %v464 = vpack.c.b16 %v433, %v432
  %v465 = vpack.c.b16 %v435, %v434
  %v466 = vpack.c.b16 %v437, %v436
  %v467 = vpack.c.b16 %v439, %v438
  %v468 = vpack.c.b16 %v441, %v440
  %v469 = vpack.c.b16 %v443, %v442
  %v470 = vpack.c.b16 %v445, %v444
  %v471 = vpack.c.b16 %v447, %v446
  %v472 = vpack.c.b16 %v449, %v448
  %v473 = vpack.c.b16 %v451, %v450
  %v474 = vpack.c.b16 %v453, %v452
  %v475 = vpack.c.b16 %v455, %v454
  %v476 = vpack.c.b16 %v457, %v456
  %v477 = vpack.c.b16 %v459, %v458
  %v478 = vpack.c.b16 %v461, %v460
  %v479 = vpack.c.b16 %v463, %v462
  %496 = vmatprep.subr.bf16.mxu0 0
  %497 = vmatpush1.bf16.msra.mxu0 %v464
  %498 = vmatprep.subr.bf16.mxu0 0
  %499 = vmatpush1.bf16.msra.mxu0 %v465
  %500 = vmatprep.subr.bf16.mxu0 0
  %501 = vmatpush1.bf16.msra.mxu0 %v466
  %502 = vmatprep.subr.bf16.mxu0 0
  %503 = vmatpush1.bf16.msra.mxu0 %v467
  %504 = vmatprep.subr.bf16.mxu0 0
  %505 = vmatpush1.bf16.msra.mxu0 %v468
  %506 = vmatprep.subr.bf16.mxu0 0
  %507 = vmatpush1.bf16.msra.mxu0 %v469
  %508 = vmatprep.subr.bf16.mxu0 0
  %509 = vmatpush1.bf16.msra.mxu0 %v470
  %510 = vmatprep.subr.bf16.mxu0 0
  %511 = vmatpush1.bf16.msra.mxu0 %v471
  %512 = vmatprep.subr.bf16.mxu0 0
  %513 = vmatpush1.bf16.msra.mxu0 %v472
  %514 = vmatprep.subr.bf16.mxu0 0
  %515 = vmatpush1.bf16.msra.mxu0 %v473
  %516 = vmatprep.subr.bf16.mxu0 0
  %517 = vmatpush1.bf16.msra.mxu0 %v474
  %518 = vmatprep.subr.bf16.mxu0 0
  %519 = vmatpush1.bf16.msra.mxu0 %v475
  %520 = vmatprep.subr.bf16.mxu0 0
  %521 = vmatpush1.bf16.msra.mxu0 %v476
  %522 = vmatprep.subr.bf16.mxu0 0
  %523 = vmatpush1.bf16.msra.mxu0 %v477
  %524 = vmatprep.subr.bf16.mxu0 0
  %525 = vmatpush1.bf16.msra.mxu0 %v478
  %526 = vmatprep.subr.bf16.mxu0 0
  %527 = vmatpush1.bf16.msra.mxu0 %v479
  %528 = vmatprep.mubr.bf16.mxu0 %v369
  %529 = vmatmul.mubr.bf16.gmra.mrb[0].mxu0 %v368
  %v530 = vpop.f32.mrb[0].mxu0
  %v531 = vadd.f32 %v398, %v530
  %v532 = vpop.f32.mrb[0].mxu0
  %v533 = vpop.f32.mrb[0].mxu0
  %v534 = vadd.f32 %v398, %v533
  %v535 = vpop.f32.mrb[0].mxu0
  %536 = vmatprep.mubr.bf16.mxu0 %v371
  %537 = vmatmul.mubr.bf16.gmra.mrb[0].mxu0 %v370
  %v538 = vpop.f32.mrb[0].mxu0
  %v539 = vadd.f32 %v398, %v538
  %v540 = vpop.f32.mrb[0].mxu0
  %v541 = vpop.f32.mrb[0].mxu0
  %v542 = vadd.f32 %v398, %v541
  %v543 = vpop.f32.mrb[0].mxu0
  %544 = vmatprep.mubr.bf16.mxu0 %v373
  %545 = vmatmul.mubr.bf16.gmra.mrb[0].mxu0 %v372
  %v546 = vpop.f32.mrb[0].mxu0
  %v547 = vadd.f32 %v398, %v546
  %v548 = vpop.f32.mrb[0].mxu0
  %v549 = vpop.f32.mrb[0].mxu0
  %v550 = vadd.f32 %v398, %v549
  %v551 = vpop.f32.mrb[0].mxu0
  %552 = vmatprep.mubr.bf16.mxu0 %v375
  %553 = vmatmul.mubr.bf16.gmra.mrb[0].mxu0 %v374
  %v554 = vpop.f32.mrb[0].mxu0
  %v555 = vadd.f32 %v398, %v554
  %v556 = vpop.f32.mrb[0].mxu0
  %v557 = vpop.f32.mrb[0].mxu0
  %v558 = vadd.f32 %v398, %v557
  %v559 = vpop.f32.mrb[0].mxu0
  %560 = vmatprep.mubr.bf16.mxu0 %v377
  %561 = vmatmul.mubr.bf16.gmra.mrb[0].mxu0 %v376
  %v562 = vpop.f32.mrb[0].mxu0
  %v563 = vadd.f32 %v398, %v562
  %v564 = vpop.f32.mrb[0].mxu0
  %v565 = vpop.f32.mrb[0].mxu0
  %v566 = vadd.f32 %v398, %v565
  %v567 = vpop.f32.mrb[0].mxu0
  %568 = vmatprep.mubr.bf16.mxu0 %v379
  %569 = vmatmul.mubr.bf16.gmra.mrb[0].mxu0 %v378
  %v570 = vpop.f32.mrb[0].mxu0
  %v571 = vadd.f32 %v398, %v570
  %v572 = vpop.f32.mrb[0].mxu0
  %v573 = vpop.f32.mrb[0].mxu0
  %v574 = vadd.f32 %v398, %v573
  %v575 = vpop.f32.mrb[0].mxu0
  %576 = vmatprep.mubr.bf16.mxu0 %v381
  %577 = vmatmul.mubr.bf16.gmra.mrb[0].mxu0 %v380
  %v578 = vpop.f32.mrb[0].mxu0
  %v579 = vadd.f32 %v398, %v578
  %v580 = vpop.f32.mrb[0].mxu0
  %v581 = vpop.f32.mrb[0].mxu0
  %v582 = vadd.f32 %v398, %v581
  %v583 = vpop.f32.mrb[0].mxu0
  %584 = vmatprep.mubr.bf16.mxu0 %v383
  %585 = vmatmul.mubr.bf16.gmra.mrb[0].mxu0 %v382
  %v586 = vpop.f32.mrb[0].mxu0
  %v587 = vadd.f32 %v398, %v586
  %v588 = vpop.f32.mrb[0].mxu0
  %v589 = vpop.f32.mrb[0].mxu0
  %v590 = vadd.f32 %v398, %v589
  %v591 = vpop.f32.mrb[0].mxu0
  %592 = vmatprep.mubr.bf16.mxu0 %v385
  %593 = vmatmul.mubr.bf16.gmra.mrb[0].mxu0 %v384
  %v594 = vpop.f32.mrb[0].mxu0
  %v595 = vadd.f32 %v398, %v594
  %v596 = vpop.f32.mrb[0].mxu0
  %v597 = vpop.f32.mrb[0].mxu0
  %v598 = vadd.f32 %v398, %v597
  %v599 = vpop.f32.mrb[0].mxu0
  %600 = vmatprep.mubr.bf16.mxu0 %v387
  %601 = vmatmul.mubr.bf16.gmra.mrb[0].mxu0 %v386
  %v602 = vpop.f32.mrb[0].mxu0
  %v603 = vadd.f32 %v398, %v602
  %v604 = vpop.f32.mrb[0].mxu0
  %v605 = vpop.f32.mrb[0].mxu0
  %v606 = vadd.f32 %v398, %v605
  %v607 = vpop.f32.mrb[0].mxu0
  %608 = vmatprep.mubr.bf16.mxu0 %v389
  %609 = vmatmul.mubr.bf16.gmra.mrb[0].mxu0 %v388
  %v610 = vpop.f32.mrb[0].mxu0
  %v611 = vadd.f32 %v398, %v610
  %v612 = vpop.f32.mrb[0].mxu0
  %v613 = vpop.f32.mrb[0].mxu0
  %v614 = vadd.f32 %v398, %v613
  %v615 = vpop.f32.mrb[0].mxu0
  %616 = vmatprep.mubr.bf16.mxu0 %v391
  %617 = vmatmul.mubr.bf16.gmra.mrb[0].mxu0 %v390
  %v618 = vpop.f32.mrb[0].mxu0
  %v619 = vadd.f32 %v398, %v618
  %v620 = vpop.f32.mrb[0].mxu0
  %v621 = vpop.f32.mrb[0].mxu0
  %v622 = vadd.f32 %v398, %v621
  %v623 = vpop.f32.mrb[0].mxu0
  %624 = vmatprep.mubr.bf16.mxu0 %v393
  %625 = vmatmul.mubr.bf16.gmra.mrb[0].mxu0 %v392
  %v626 = vpop.f32.mrb[0].mxu0
  %v627 = vadd.f32 %v398, %v626
  %v628 = vpop.f32.mrb[0].mxu0
  %v629 = vpop.f32.mrb[0].mxu0
  %v630 = vadd.f32 %v398, %v629
  %v631 = vpop.f32.mrb[0].mxu0
  %632 = vdwg.mxu0
  %v633 = vmul.f32 %v531, %v531
  %v634 = vmul.f32 %v534, %v534
  %v635 = vmul.f32 %v539, %v539
  %v636 = vmul.f32 %v542, %v542
  %v637 = vmul.f32 %v547, %v547
  %v638 = vmul.f32 %v550, %v550
  %v639 = vmul.f32 %v555, %v555
  %v640 = vmul.f32 %v558, %v558
  %v641 = vmul.f32 %v563, %v563
  %v642 = vmul.f32 %v566, %v566
  %v643 = vmul.f32 %v571, %v571
  %v644 = vmul.f32 %v574, %v574
  %v645 = vmul.f32 %v579, %v579
  %v646 = vmul.f32 %v582, %v582
  %v647 = vmul.f32 %v587, %v587
  %v648 = vmul.f32 %v590, %v590
  %v649 = vmul.f32 %v595, %v595
  %v650 = vmul.f32 %v598, %v598
  %v651 = vmul.f32 %v603, %v603
  %v652 = vmul.f32 %v606, %v606
  %v653 = vmul.f32 %v611, %v611
  %v654 = vmul.f32 %v614, %v614
  %v655 = vmul.f32 %v619, %v619
  %v656 = vmul.f32 %v622, %v622
  %v657 = vmul.f32 %v627, %v627
  %v658 = vmul.f32 %v630, %v630
  %659 = vadd.xlane.f32.xlu0 %v633
  %v660 = vpop.xlane.xlu0 %659
  %661 = vadd.xlane.f32.xlu0 %v634
  %v662 = vpop.xlane.xlu0 %661
  %663 = vadd.xlane.f32.xlu0 %v635
  %v664 = vpop.xlane.xlu0 %663
  %665 = vadd.xlane.f32.xlu0 %v636
  %v666 = vpop.xlane.xlu0 %665
  %667 = vadd.xlane.f32.xlu0 %v637
  %v668 = vpop.xlane.xlu0 %667
  %669 = vadd.xlane.f32.xlu0 %v638
  %v670 = vpop.xlane.xlu0 %669
  %671 = vadd.xlane.f32.xlu0 %v639
  %v672 = vpop.xlane.xlu0 %671
  %673 = vadd.xlane.f32.xlu0 %v640
  %v674 = vpop.xlane.xlu0 %673
  %675 = vadd.xlane.f32.xlu0 %v641
  %v676 = vpop.xlane.xlu0 %675
  %677 = vadd.xlane.f32.xlu0 %v642
  %v678 = vpop.xlane.xlu0 %677
  %679 = vadd.xlane.f32.xlu0 %v643
  %v680 = vpop.xlane.xlu0 %679
  %681 = vadd.xlane.f32.xlu0 %v644
  %v682 = vpop.xlane.xlu0 %681
  %683 = vadd.xlane.f32.xlu0 %v645
  %v684 = vpop.xlane.xlu0 %683
  %685 = vadd.xlane.f32.xlu0 %v646
  %v686 = vpop.xlane.xlu0 %685
  %687 = vadd.xlane.f32.xlu0 %v647
  %v688 = vpop.xlane.xlu0 %687
  %689 = vadd.xlane.f32.xlu0 %v648
  %v690 = vpop.xlane.xlu0 %689
  %691 = vadd.xlane.f32.xlu0 %v649
  %v692 = vpop.xlane.xlu0 %691
  %693 = vadd.xlane.f32.xlu0 %v650
  %v694 = vpop.xlane.xlu0 %693
  %695 = vadd.xlane.f32.xlu0 %v651
  %v696 = vpop.xlane.xlu0 %695
  %697 = vadd.xlane.f32.xlu0 %v652
  %v698 = vpop.xlane.xlu0 %697
  %699 = vadd.xlane.f32.xlu0 %v653
  %v700 = vpop.xlane.xlu0 %699
  %701 = vadd.xlane.f32.xlu0 %v654
  %v702 = vpop.xlane.xlu0 %701
  %703 = vadd.xlane.f32.xlu0 %v655
  %v704 = vpop.xlane.xlu0 %703
  %705 = vadd.xlane.f32.xlu0 %v656
  %v706 = vpop.xlane.xlu0 %705
  %707 = vadd.xlane.f32.xlu0 %v657
  %v708 = vpop.xlane.xlu0 %707
  %709 = vadd.xlane.f32.xlu0 %v658
  %v710 = vpop.xlane.xlu0 %709
  %v711 = vmax.f32 %v660, 1e-24
  %v712 = vmax.f32 %v662, 1e-24
  %v713 = vmax.f32 %v664, 1e-24
  %v714 = vmax.f32 %v666, 1e-24
  %v715 = vmax.f32 %v668, 1e-24
  %v716 = vmax.f32 %v670, 1e-24
  %v717 = vmax.f32 %v672, 1e-24
  %v718 = vmax.f32 %v674, 1e-24
  %v719 = vmax.f32 %v676, 1e-24
  %v720 = vmax.f32 %v678, 1e-24
  %v721 = vmax.f32 %v680, 1e-24
  %v722 = vmax.f32 %v682, 1e-24
  %v723 = vmax.f32 %v684, 1e-24
  %v724 = vmax.f32 %v686, 1e-24
  %v725 = vmax.f32 %v688, 1e-24
  %v726 = vmax.f32 %v690, 1e-24
  %v727 = vmax.f32 %v692, 1e-24
  %v728 = vmax.f32 %v694, 1e-24
  %v729 = vmax.f32 %v696, 1e-24
  %v730 = vmax.f32 %v698, 1e-24
  %v731 = vmax.f32 %v700, 1e-24
  %v732 = vmax.f32 %v702, 1e-24
  %v733 = vmax.f32 %v704, 1e-24
  %v734 = vmax.f32 %v706, 1e-24
  %v735 = vmax.f32 %v708, 1e-24
  %v736 = vmax.f32 %v710, 1e-24
  %v737 = vrsqrt.pop %v711
  %v738 = vrsqrt.pop %v712
  %v739 = vrsqrt.pop %v713
  %v740 = vrsqrt.pop %v714
  %v741 = vrsqrt.pop %v715
  %v742 = vrsqrt.pop %v716
  %v743 = vrsqrt.pop %v717
  %v744 = vrsqrt.pop %v718
  %v745 = vrsqrt.pop %v719
  %v746 = vrsqrt.pop %v720
  %v747 = vrsqrt.pop %v721
  %v748 = vrsqrt.pop %v722
  %v749 = vrsqrt.pop %v723
  %v750 = vrsqrt.pop %v724
  %v751 = vrsqrt.pop %v725
  %v752 = vrsqrt.pop %v726
  %v753 = vrsqrt.pop %v727
  %v754 = vrsqrt.pop %v728
  %v755 = vrsqrt.pop %v729
  %v756 = vrsqrt.pop %v730
  %v757 = vrsqrt.pop %v731
  %v758 = vrsqrt.pop %v732
  %v759 = vrsqrt.pop %v733
  %v760 = vrsqrt.pop %v734
  %v761 = vrsqrt.pop %v735
  %v762 = vrsqrt.pop %v736
  %v763 = vmul.f32 %v531, %v737
  %v764 = vmul.f32 %v534, %v738
  %v765 = vmul.f32 %v539, %v739
  %v766 = vmul.f32 %v542, %v740
  %v767 = vmul.f32 %v547, %v741
  %v768 = vmul.f32 %v550, %v742
  %v769 = vmul.f32 %v555, %v743
  %v770 = vmul.f32 %v558, %v744
  %v771 = vmul.f32 %v563, %v745
  %v772 = vmul.f32 %v566, %v746
  %v773 = vmul.f32 %v571, %v747
  %v774 = vmul.f32 %v574, %v748
  %v775 = vmul.f32 %v579, %v749
  %v776 = vmul.f32 %v582, %v750
  %v777 = vmul.f32 %v587, %v751
  %v778 = vmul.f32 %v590, %v752
  %v779 = vmul.f32 %v595, %v753
  %v780 = vmul.f32 %v598, %v754
  %v781 = vmul.f32 %v603, %v755
  %v782 = vmul.f32 %v606, %v756
  %v783 = vmul.f32 %v611, %v757
  %v784 = vmul.f32 %v614, %v758
  %v785 = vmul.f32 %v619, %v759
  %v786 = vmul.f32 %v622, %v760
  %v787 = vmul.f32 %v627, %v761
  %v788 = vmul.f32 %v630, %v762
  %v789 = vld [vmem:[%s6] sm:$0xff]
  %v790 = vld [vmem:[%s6 + $0x8] sm:$0xff]
  %v791 = vld [vmem:[%s6 + $0x10] sm:$0xff]
  %v792 = vld [vmem:[%s6 + $0x18] sm:$0xff]
  %v793 = vld [vmem:[%s6 + $0x20] sm:$0xff]
  %v794 = vld [vmem:[%s6 + $0x28] sm:$0xff]
  %v795 = vld [vmem:[%s6 + $0x30] sm:$0xff]
  %v796 = vld [vmem:[%s6 + $0x38] sm:$0xff]
  %v797 = vld [vmem:[%s6 + $0x40] sm:$0xff]
  %v798 = vld [vmem:[%s6 + $0x48] sm:$0xff]
  %v799 = vld [vmem:[%s6 + $0x50] sm:$0xff]
  %v800 = vld [vmem:[%s6 + $0x58] sm:$0xff]
  %v801 = vld [vmem:[%s6 + $0x60] sm:$0xff]
  %v802 = vld [vmem:[%s6 + $0x68] sm:$0xff]
  %v803 = vld [vmem:[%s6 + $0x70] sm:$0xff]
  %v804 = vld [vmem:[%s6 + $0x78] sm:$0xff]
  %v805 = vld [vmem:[%s7] sm:$0x3]
  %v806 = vpack.c.bf16 %v764, %v763
  %v807 = vpack.c.bf16 %v766, %v765
  %v808 = vpack.c.bf16 %v768, %v767
  %v809 = vpack.c.bf16 %v770, %v769
  %v810 = vpack.c.bf16 %v772, %v771
  %v811 = vpack.c.bf16 %v774, %v773
  %v812 = vpack.c.bf16 %v776, %v775
  %v813 = vpack.c.bf16 %v778, %v777
  %v814 = vpack.c.bf16 %v780, %v779
  %v815 = vpack.c.bf16 %v782, %v781
  %v816 = vpack.c.bf16 %v784, %v783
  %v817 = vpack.c.bf16 %v786, %v785
  %v818 = vpack.c.bf16 %v788, %v787
  %v820 = vlaneseq
  %v821 = vshrl.u32 %v820, 7
  %v822 = vsub.s32 0, %v821
  %v823 = vrot.slane %v805, %v822
  %v824 = vlaneseq
  %v825 = vshrl.u32 %v824, 7
  %v826 = vsub.s32 1, %v825
  %v827 = vrot.slane %v805, %v826
  %v846 = vunpack.c.l.b16 %v789
  %v847 = vunpack.c.h.b16 %v789
  %v848 = vunpack.c.l.b16 %v790
  %v849 = vunpack.c.h.b16 %v790
  %v850 = vunpack.c.l.b16 %v791
  %v851 = vunpack.c.h.b16 %v791
  %v852 = vunpack.c.l.b16 %v792
  %v853 = vunpack.c.h.b16 %v792
  %v854 = vunpack.c.l.b16 %v793
  %v855 = vunpack.c.h.b16 %v793
  %v856 = vunpack.c.l.b16 %v794
  %v857 = vunpack.c.h.b16 %v794
  %v858 = vunpack.c.l.b16 %v795
  %v859 = vunpack.c.h.b16 %v795
  %v860 = vunpack.c.l.b16 %v796
  %v861 = vunpack.c.h.b16 %v796
  %v862 = vunpack.c.l.b16 %v797
  %v863 = vunpack.c.h.b16 %v797
  %v864 = vunpack.c.l.b16 %v798
  %v865 = vunpack.c.h.b16 %v798
  %v866 = vunpack.c.l.b16 %v799
  %v867 = vunpack.c.h.b16 %v799
  %v868 = vunpack.c.l.b16 %v800
  %v869 = vunpack.c.h.b16 %v800
  %v870 = vunpack.c.l.b16 %v801
  %v871 = vunpack.c.h.b16 %v801
  %v872 = vunpack.c.l.b16 %v802
  %v873 = vunpack.c.h.b16 %v802
  %v874 = vunpack.c.l.b16 %v803
  %v875 = vunpack.c.h.b16 %v803
  %v876 = vunpack.c.l.b16 %v804
  %v877 = vunpack.c.h.b16 %v804
  %v878 = vpack.c.b16 %v848, %v846
  %v879 = vpack.c.b16 %v849, %v847
  %v880 = vpack.c.b16 %v852, %v850
  %v881 = vpack.c.b16 %v853, %v851
  %v882 = vpack.c.b16 %v856, %v854
  %v883 = vpack.c.b16 %v857, %v855
  %v884 = vpack.c.b16 %v860, %v858
  %v885 = vpack.c.b16 %v861, %v859
  %v886 = vpack.c.b16 %v864, %v862
  %v887 = vpack.c.b16 %v865, %v863
  %v888 = vpack.c.b16 %v868, %v866
  %v889 = vpack.c.b16 %v869, %v867
  %v890 = vpack.c.b16 %v872, %v870
  %v891 = vpack.c.b16 %v873, %v871
  %v892 = vpack.c.b16 %v876, %v874
  %v893 = vpack.c.b16 %v877, %v875
  %910 = vmatprep.subr.bf16.mxu0 %v879
  %911 = vmatpush1.bf16.msra.mxu0 %v878
  %912 = vmatprep.subr.bf16.mxu0 %v881
  %913 = vmatpush1.bf16.msra.mxu0 %v880
  %914 = vmatprep.subr.bf16.mxu0 %v883
  %915 = vmatpush1.bf16.msra.mxu0 %v882
  %916 = vmatprep.subr.bf16.mxu0 %v885
  %917 = vmatpush1.bf16.msra.mxu0 %v884
  %918 = vmatprep.subr.bf16.mxu0 %v887
  %919 = vmatpush1.bf16.msra.mxu0 %v886
  %920 = vmatprep.subr.bf16.mxu0 %v889
  %921 = vmatpush1.bf16.msra.mxu0 %v888
  %922 = vmatprep.subr.bf16.mxu0 %v891
  %923 = vmatpush1.bf16.msra.mxu0 %v890
  %924 = vmatprep.subr.bf16.mxu0 %v893
  %925 = vmatpush1.bf16.msra.mxu0 %v892
  %926 = vmatprep.subr.bf16.mxu0 0
  %927 = vmatpush1.bf16.msra.mxu0 0
  %928 = vmatprep.subr.bf16.mxu0 0
  %929 = vmatpush1.bf16.msra.mxu0 0
  %930 = vmatprep.subr.bf16.mxu0 0
  %931 = vmatpush1.bf16.msra.mxu0 0
  %932 = vmatprep.subr.bf16.mxu0 0
  %933 = vmatpush1.bf16.msra.mxu0 0
  %934 = vmatprep.subr.bf16.mxu0 0
  %935 = vmatpush1.bf16.msra.mxu0 0
  %936 = vmatprep.subr.bf16.mxu0 0
  %937 = vmatpush1.bf16.msra.mxu0 0
  %938 = vmatprep.subr.bf16.mxu0 0
  %939 = vmatpush1.bf16.msra.mxu0 0
  %940 = vmatprep.subr.bf16.mxu0 0
  %941 = vmatpush1.bf16.msra.mxu0 0
  %942 = vmatprep.mubr.bf16.mxu0 0
  %943 = vmatmul.mubr.bf16.gmra.mrb[0].mxu0 %v806
  %v944 = vpop.f32.mrb[0].mxu0
  %v945 = vadd.f32 %v823, %v944
  %v946 = vpop.f32.mrb[0].mxu0
  %v947 = vadd.f32 %v827, %v946
  %v948 = vpop.f32.mrb[0].mxu0
  %v949 = vadd.f32 %v823, %v948
  %v950 = vpop.f32.mrb[0].mxu0
  %v951 = vadd.f32 %v827, %v950
  %952 = vmatprep.mubr.bf16.mxu0 0
  %953 = vmatmul.mubr.bf16.gmra.mrb[0].mxu0 %v807
  %v954 = vpop.f32.mrb[0].mxu0
  %v955 = vadd.f32 %v823, %v954
  %v956 = vpop.f32.mrb[0].mxu0
  %v957 = vadd.f32 %v827, %v956
  %v958 = vpop.f32.mrb[0].mxu0
  %v959 = vadd.f32 %v823, %v958
  %v960 = vpop.f32.mrb[0].mxu0
  %v961 = vadd.f32 %v827, %v960
  %962 = vmatprep.mubr.bf16.mxu0 0
  %963 = vmatmul.mubr.bf16.gmra.mrb[0].mxu0 %v808
  %v964 = vpop.f32.mrb[0].mxu0
  %v965 = vadd.f32 %v823, %v964
  %v966 = vpop.f32.mrb[0].mxu0
  %v967 = vadd.f32 %v827, %v966
  %v968 = vpop.f32.mrb[0].mxu0
  %v969 = vadd.f32 %v823, %v968
  %v970 = vpop.f32.mrb[0].mxu0
  %v971 = vadd.f32 %v827, %v970
  %972 = vmatprep.mubr.bf16.mxu0 0
  %973 = vmatmul.mubr.bf16.gmra.mrb[0].mxu0 %v809
  %v974 = vpop.f32.mrb[0].mxu0
  %v975 = vadd.f32 %v823, %v974
  %v976 = vpop.f32.mrb[0].mxu0
  %v977 = vadd.f32 %v827, %v976
  %v978 = vpop.f32.mrb[0].mxu0
  %v979 = vadd.f32 %v823, %v978
  %v980 = vpop.f32.mrb[0].mxu0
  %v981 = vadd.f32 %v827, %v980
  %982 = vmatprep.mubr.bf16.mxu0 0
  %983 = vmatmul.mubr.bf16.gmra.mrb[0].mxu0 %v810
  %v984 = vpop.f32.mrb[0].mxu0
  %v985 = vadd.f32 %v823, %v984
  %v986 = vpop.f32.mrb[0].mxu0
  %v987 = vadd.f32 %v827, %v986
  %v988 = vpop.f32.mrb[0].mxu0
  %v989 = vadd.f32 %v823, %v988
  %v990 = vpop.f32.mrb[0].mxu0
  %v991 = vadd.f32 %v827, %v990
  %992 = vmatprep.mubr.bf16.mxu0 0
  %993 = vmatmul.mubr.bf16.gmra.mrb[0].mxu0 %v811
  %v994 = vpop.f32.mrb[0].mxu0
  %v995 = vadd.f32 %v823, %v994
  %v996 = vpop.f32.mrb[0].mxu0
  %v997 = vadd.f32 %v827, %v996
  %v998 = vpop.f32.mrb[0].mxu0
  %v999 = vadd.f32 %v823, %v998
  %v1000 = vpop.f32.mrb[0].mxu0
  %v1001 = vadd.f32 %v827, %v1000
  %1002 = vmatprep.mubr.bf16.mxu0 0
  %1003 = vmatmul.mubr.bf16.gmra.mrb[0].mxu0 %v812
  %v1004 = vpop.f32.mrb[0].mxu0
  %v1005 = vadd.f32 %v823, %v1004
  %v1006 = vpop.f32.mrb[0].mxu0
  %v1007 = vadd.f32 %v827, %v1006
  %v1008 = vpop.f32.mrb[0].mxu0
  %v1009 = vadd.f32 %v823, %v1008
  %v1010 = vpop.f32.mrb[0].mxu0
  %v1011 = vadd.f32 %v827, %v1010
  %1012 = vmatprep.mubr.bf16.mxu0 0
  %1013 = vmatmul.mubr.bf16.gmra.mrb[0].mxu0 %v813
  %v1014 = vpop.f32.mrb[0].mxu0
  %v1015 = vadd.f32 %v823, %v1014
  %v1016 = vpop.f32.mrb[0].mxu0
  %v1017 = vadd.f32 %v827, %v1016
  %v1018 = vpop.f32.mrb[0].mxu0
  %v1019 = vadd.f32 %v823, %v1018
  %v1020 = vpop.f32.mrb[0].mxu0
  %v1021 = vadd.f32 %v827, %v1020
  %1022 = vmatprep.mubr.bf16.mxu0 0
  %1023 = vmatmul.mubr.bf16.gmra.mrb[0].mxu0 %v814
  %v1024 = vpop.f32.mrb[0].mxu0
  %v1025 = vadd.f32 %v823, %v1024
  %v1026 = vpop.f32.mrb[0].mxu0
  %v1027 = vadd.f32 %v827, %v1026
  %v1028 = vpop.f32.mrb[0].mxu0
  %v1029 = vadd.f32 %v823, %v1028
  %v1030 = vpop.f32.mrb[0].mxu0
  %v1031 = vadd.f32 %v827, %v1030
  %1032 = vmatprep.mubr.bf16.mxu0 0
  %1033 = vmatmul.mubr.bf16.gmra.mrb[0].mxu0 %v815
  %v1034 = vpop.f32.mrb[0].mxu0
  %v1035 = vadd.f32 %v823, %v1034
  %v1036 = vpop.f32.mrb[0].mxu0
  %v1037 = vadd.f32 %v827, %v1036
  %v1038 = vpop.f32.mrb[0].mxu0
  %v1039 = vadd.f32 %v823, %v1038
  %v1040 = vpop.f32.mrb[0].mxu0
  %v1041 = vadd.f32 %v827, %v1040
  %1042 = vmatprep.mubr.bf16.mxu0 0
  %1043 = vmatmul.mubr.bf16.gmra.mrb[0].mxu0 %v816
  %v1044 = vpop.f32.mrb[0].mxu0
  %v1045 = vadd.f32 %v823, %v1044
  %v1046 = vpop.f32.mrb[0].mxu0
  %v1047 = vadd.f32 %v827, %v1046
  %v1048 = vpop.f32.mrb[0].mxu0
  %v1049 = vadd.f32 %v823, %v1048
  %v1050 = vpop.f32.mrb[0].mxu0
  %v1051 = vadd.f32 %v827, %v1050
  %1052 = vmatprep.mubr.bf16.mxu0 0
  %1053 = vmatmul.mubr.bf16.gmra.mrb[0].mxu0 %v817
  %v1054 = vpop.f32.mrb[0].mxu0
  %v1055 = vadd.f32 %v823, %v1054
  %v1056 = vpop.f32.mrb[0].mxu0
  %v1057 = vadd.f32 %v827, %v1056
  %v1058 = vpop.f32.mrb[0].mxu0
  %v1059 = vadd.f32 %v823, %v1058
  %v1060 = vpop.f32.mrb[0].mxu0
  %v1061 = vadd.f32 %v827, %v1060
  %1062 = vmatprep.mubr.bf16.mxu0 0
  %1063 = vmatmul.mubr.bf16.gmra.mrb[0].mxu0 %v818
  %v1064 = vpop.f32.mrb[0].mxu0
  %v1065 = vadd.f32 %v823, %v1064
  %v1066 = vpop.f32.mrb[0].mxu0
  %v1067 = vadd.f32 %v827, %v1066
  %v1068 = vpop.f32.mrb[0].mxu0
  %v1069 = vadd.f32 %v823, %v1068
  %v1070 = vpop.f32.mrb[0].mxu0
  %v1071 = vadd.f32 %v827, %v1070
  %1072 = vdwg.mxu0
  %v1073 = vmax.f32 %v945, 0.0
  %v1074 = vmax.f32 %v947, 0.0
  %v1075 = vmax.f32 %v949, 0.0
  %v1076 = vmax.f32 %v951, 0.0
  %v1077 = vmax.f32 %v955, 0.0
  %v1078 = vmax.f32 %v957, 0.0
  %v1079 = vmax.f32 %v959, 0.0
  %v1080 = vmax.f32 %v961, 0.0
  %v1081 = vmax.f32 %v965, 0.0
  %v1082 = vmax.f32 %v967, 0.0
  %v1083 = vmax.f32 %v969, 0.0
  %v1084 = vmax.f32 %v971, 0.0
  %v1085 = vmax.f32 %v975, 0.0
  %v1086 = vmax.f32 %v977, 0.0
  %v1087 = vmax.f32 %v979, 0.0
  %v1088 = vmax.f32 %v981, 0.0
  %v1089 = vmax.f32 %v985, 0.0
  %v1090 = vmax.f32 %v987, 0.0
  %v1091 = vmax.f32 %v989, 0.0
  %v1092 = vmax.f32 %v991, 0.0
  %v1093 = vmax.f32 %v995, 0.0
  %v1094 = vmax.f32 %v997, 0.0
  %v1095 = vmax.f32 %v999, 0.0
  %v1096 = vmax.f32 %v1001, 0.0
  %v1097 = vmax.f32 %v1005, 0.0
  %v1098 = vmax.f32 %v1007, 0.0
  %v1099 = vmax.f32 %v1009, 0.0
  %v1100 = vmax.f32 %v1011, 0.0
  %v1101 = vmax.f32 %v1015, 0.0
  %v1102 = vmax.f32 %v1017, 0.0
  %v1103 = vmax.f32 %v1019, 0.0
  %v1104 = vmax.f32 %v1021, 0.0
  %v1105 = vmax.f32 %v1025, 0.0
  %v1106 = vmax.f32 %v1027, 0.0
  %v1107 = vmax.f32 %v1029, 0.0
  %v1108 = vmax.f32 %v1031, 0.0
  %v1109 = vmax.f32 %v1035, 0.0
  %v1110 = vmax.f32 %v1037, 0.0
  %v1111 = vmax.f32 %v1039, 0.0
  %v1112 = vmax.f32 %v1041, 0.0
  %v1113 = vmax.f32 %v1045, 0.0
  %v1114 = vmax.f32 %v1047, 0.0
  %v1115 = vmax.f32 %v1049, 0.0
  %v1116 = vmax.f32 %v1051, 0.0
  %v1117 = vmax.f32 %v1055, 0.0
  %v1118 = vmax.f32 %v1057, 0.0
  %v1119 = vmax.f32 %v1059, 0.0
  %v1120 = vmax.f32 %v1061, 0.0
  %v1121 = vmax.f32 %v1065, 0.0
  %v1122 = vmax.f32 %v1067, 0.0
  %v1123 = vmax.f32 %v1069, 0.0
  %v1124 = vmax.f32 %v1071, 0.0
  %v1125 = vld [vmem:[%s8] sm:$0xff]
  %v1126 = vld [vmem:[%s8 + $0x8] sm:$0xff]
  %v1127 = vld [vmem:[%s8 + $0x10] sm:$0xff]
  %v1128 = vld [vmem:[%s8 + $0x18] sm:$0xff]
  %v1129 = vld [vmem:[%s8 + $0x20] sm:$0xff]
  %v1130 = vld [vmem:[%s8 + $0x28] sm:$0xff]
  %v1131 = vld [vmem:[%s8 + $0x30] sm:$0xff]
  %v1132 = vld [vmem:[%s8 + $0x38] sm:$0xff]
  %v1133 = vld [vmem:[%s8 + $0x40] sm:$0xff]
  %v1134 = vld [vmem:[%s8 + $0x48] sm:$0xff]
  %v1135 = vld [vmem:[%s8 + $0x50] sm:$0xff]
  %v1136 = vld [vmem:[%s8 + $0x58] sm:$0xff]
  %v1137 = vld [vmem:[%s8 + $0x60] sm:$0xff]
  %v1138 = vld [vmem:[%s8 + $0x68] sm:$0xff]
  %v1139 = vld [vmem:[%s8 + $0x70] sm:$0xff]
  %v1140 = vld [vmem:[%s8 + $0x78] sm:$0xff]
  %v1141 = vld [vmem:[%s8 + $0x80] sm:$0xff]
  %v1142 = vld [vmem:[%s8 + $0x88] sm:$0xff]
  %v1143 = vld [vmem:[%s8 + $0x90] sm:$0xff]
  %v1144 = vld [vmem:[%s8 + $0x98] sm:$0xff]
  %v1145 = vld [vmem:[%s8 + $0xa0] sm:$0xff]
  %v1146 = vld [vmem:[%s8 + $0xa8] sm:$0xff]
  %v1147 = vld [vmem:[%s8 + $0xb0] sm:$0xff]
  %v1148 = vld [vmem:[%s8 + $0xb8] sm:$0xff]
  %v1149 = vld [vmem:[%s8 + $0xc0] sm:$0xff]
  %v1150 = vld [vmem:[%s8 + $0xc8] sm:$0xff]
  %v1151 = vld [vmem:[%s8 + $0xd0] sm:$0xff]
  %v1152 = vld [vmem:[%s8 + $0xd8] sm:$0xff]
  %v1153 = vld [vmem:[%s8 + $0xe0] sm:$0xff]
  %v1154 = vld [vmem:[%s8 + $0xe8] sm:$0xff]
  %v1155 = vld [vmem:[%s8 + $0xf0] sm:$0xff]
  %v1156 = vld [vmem:[%s8 + $0xf8] sm:$0xff]
  %v1157 = vld [vmem:[%s8 + $0x100] sm:$0xff]
  %v1158 = vld [vmem:[%s8 + $0x108] sm:$0xff]
  %v1159 = vld [vmem:[%s8 + $0x110] sm:$0xff]
  %v1160 = vld [vmem:[%s8 + $0x118] sm:$0xff]
  %v1161 = vld [vmem:[%s8 + $0x120] sm:$0xff]
  %v1162 = vld [vmem:[%s8 + $0x128] sm:$0xff]
  %v1163 = vld [vmem:[%s8 + $0x130] sm:$0xff]
  %v1164 = vld [vmem:[%s8 + $0x138] sm:$0xff]
  %v1165 = vld [vmem:[%s8 + $0x140] sm:$0xff]
  %v1166 = vld [vmem:[%s8 + $0x148] sm:$0xff]
  %v1167 = vld [vmem:[%s8 + $0x150] sm:$0xff]
  %v1168 = vld [vmem:[%s8 + $0x158] sm:$0xff]
  %v1169 = vld [vmem:[%s8 + $0x160] sm:$0xff]
  %v1170 = vld [vmem:[%s8 + $0x168] sm:$0xff]
  %v1171 = vld [vmem:[%s8 + $0x170] sm:$0xff]
  %v1172 = vld [vmem:[%s8 + $0x178] sm:$0xff]
  %v1173 = vld [vmem:[%s8 + $0x180] sm:$0xff]
  %v1174 = vld [vmem:[%s8 + $0x188] sm:$0xff]
  %v1175 = vld [vmem:[%s8 + $0x190] sm:$0xff]
  %v1176 = vld [vmem:[%s8 + $0x198] sm:$0xff]
  %v1177 = vld [vmem:[%s8 + $0x1a0] sm:$0xff]
  %v1178 = vld [vmem:[%s8 + $0x1a8] sm:$0xff]
  %v1179 = vld [vmem:[%s8 + $0x1b0] sm:$0xff]
  %v1180 = vld [vmem:[%s8 + $0x1b8] sm:$0xff]
  %v1181 = vld [vmem:[%s8 + $0x1c0] sm:$0xff]
  %v1182 = vld [vmem:[%s8 + $0x1c8] sm:$0xff]
  %v1183 = vld [vmem:[%s8 + $0x1d0] sm:$0xff]
  %v1184 = vld [vmem:[%s8 + $0x1d8] sm:$0xff]
  %v1185 = vld [vmem:[%s8 + $0x1e0] sm:$0xff]
  %v1186 = vld [vmem:[%s8 + $0x1e8] sm:$0xff]
  %v1187 = vld [vmem:[%s8 + $0x1f0] sm:$0xff]
  %v1188 = vld [vmem:[%s8 + $0x1f8] sm:$0xff]
  %v1189 = vld [vmem:[%s9] sm:$0xf]
  %v1190 = vpack.c.bf16 %v1075, %v1073
  %v1191 = vpack.c.bf16 %v1076, %v1074
  %v1192 = vpack.c.bf16 %v1079, %v1077
  %v1193 = vpack.c.bf16 %v1080, %v1078
  %v1194 = vpack.c.bf16 %v1083, %v1081
  %v1195 = vpack.c.bf16 %v1084, %v1082
  %v1196 = vpack.c.bf16 %v1087, %v1085
  %v1197 = vpack.c.bf16 %v1088, %v1086
  %v1198 = vpack.c.bf16 %v1091, %v1089
  %v1199 = vpack.c.bf16 %v1092, %v1090
  %v1200 = vpack.c.bf16 %v1095, %v1093
  %v1201 = vpack.c.bf16 %v1096, %v1094
  %v1202 = vpack.c.bf16 %v1099, %v1097
  %v1203 = vpack.c.bf16 %v1100, %v1098
  %v1204 = vpack.c.bf16 %v1103, %v1101
  %v1205 = vpack.c.bf16 %v1104, %v1102
  %v1206 = vpack.c.bf16 %v1107, %v1105
  %v1207 = vpack.c.bf16 %v1108, %v1106
  %v1208 = vpack.c.bf16 %v1111, %v1109
  %v1209 = vpack.c.bf16 %v1112, %v1110
  %v1210 = vpack.c.bf16 %v1115, %v1113
  %v1211 = vpack.c.bf16 %v1116, %v1114
  %v1212 = vpack.c.bf16 %v1119, %v1117
  %v1213 = vpack.c.bf16 %v1120, %v1118
  %v1214 = vpack.c.bf16 %v1123, %v1121
  %v1215 = vpack.c.bf16 %v1124, %v1122
  %v1217 = vlaneseq
  %v1218 = vshrl.u32 %v1217, 7
  %v1219 = vsub.s32 0, %v1218
  %v1220 = vrot.slane %v1189, %v1219
  %v1221 = vlaneseq
  %v1222 = vshrl.u32 %v1221, 7
  %v1223 = vsub.s32 1, %v1222
  %v1224 = vrot.slane %v1189, %v1223
  %v1225 = vlaneseq
  %v1226 = vshrl.u32 %v1225, 7
  %v1227 = vsub.s32 2, %v1226
  %v1228 = vrot.slane %v1189, %v1227
  %v1229 = vlaneseq
  %v1230 = vshrl.u32 %v1229, 7
  %v1231 = vsub.s32 3, %v1230
  %v1232 = vrot.slane %v1189, %v1231
  %v1301 = vunpack.c.l.b16 %v1125
  %v1302 = vunpack.c.h.b16 %v1125
  %v1303 = vunpack.c.l.b16 %v1126
  %v1304 = vunpack.c.h.b16 %v1126
  %v1305 = vunpack.c.l.b16 %v1127
  %v1306 = vunpack.c.h.b16 %v1127
  %v1307 = vunpack.c.l.b16 %v1128
  %v1308 = vunpack.c.h.b16 %v1128
  %v1309 = vunpack.c.l.b16 %v1129
  %v1310 = vunpack.c.h.b16 %v1129
  %v1311 = vunpack.c.l.b16 %v1130
  %v1312 = vunpack.c.h.b16 %v1130
  %v1313 = vunpack.c.l.b16 %v1131
  %v1314 = vunpack.c.h.b16 %v1131
  %v1315 = vunpack.c.l.b16 %v1132
  %v1316 = vunpack.c.h.b16 %v1132
  %v1317 = vunpack.c.l.b16 %v1133
  %v1318 = vunpack.c.h.b16 %v1133
  %v1319 = vunpack.c.l.b16 %v1134
  %v1320 = vunpack.c.h.b16 %v1134
  %v1321 = vunpack.c.l.b16 %v1135
  %v1322 = vunpack.c.h.b16 %v1135
  %v1323 = vunpack.c.l.b16 %v1136
  %v1324 = vunpack.c.h.b16 %v1136
  %v1325 = vunpack.c.l.b16 %v1137
  %v1326 = vunpack.c.h.b16 %v1137
  %v1327 = vunpack.c.l.b16 %v1138
  %v1328 = vunpack.c.h.b16 %v1138
  %v1329 = vunpack.c.l.b16 %v1139
  %v1330 = vunpack.c.h.b16 %v1139
  %v1331 = vunpack.c.l.b16 %v1140
  %v1332 = vunpack.c.h.b16 %v1140
  %v1333 = vunpack.c.l.b16 %v1141
  %v1334 = vunpack.c.h.b16 %v1141
  %v1335 = vunpack.c.l.b16 %v1142
  %v1336 = vunpack.c.h.b16 %v1142
  %v1337 = vunpack.c.l.b16 %v1143
  %v1338 = vunpack.c.h.b16 %v1143
  %v1339 = vunpack.c.l.b16 %v1144
  %v1340 = vunpack.c.h.b16 %v1144
  %v1341 = vunpack.c.l.b16 %v1145
  %v1342 = vunpack.c.h.b16 %v1145
  %v1343 = vunpack.c.l.b16 %v1146
  %v1344 = vunpack.c.h.b16 %v1146
  %v1345 = vunpack.c.l.b16 %v1147
  %v1346 = vunpack.c.h.b16 %v1147
  %v1347 = vunpack.c.l.b16 %v1148
  %v1348 = vunpack.c.h.b16 %v1148
  %v1349 = vunpack.c.l.b16 %v1149
  %v1350 = vunpack.c.h.b16 %v1149
  %v1351 = vunpack.c.l.b16 %v1150
  %v1352 = vunpack.c.h.b16 %v1150
  %v1353 = vunpack.c.l.b16 %v1151
  %v1354 = vunpack.c.h.b16 %v1151
  %v1355 = vunpack.c.l.b16 %v1152
  %v1356 = vunpack.c.h.b16 %v1152
  %v1357 = vunpack.c.l.b16 %v1153
  %v1358 = vunpack.c.h.b16 %v1153
  %v1359 = vunpack.c.l.b16 %v1154
  %v1360 = vunpack.c.h.b16 %v1154
  %v1361 = vunpack.c.l.b16 %v1155
  %v1362 = vunpack.c.h.b16 %v1155
  %v1363 = vunpack.c.l.b16 %v1156
  %v1364 = vunpack.c.h.b16 %v1156
  %v1365 = vunpack.c.l.b16 %v1157
  %v1366 = vunpack.c.h.b16 %v1157
  %v1367 = vunpack.c.l.b16 %v1158
  %v1368 = vunpack.c.h.b16 %v1158
  %v1369 = vunpack.c.l.b16 %v1159
  %v1370 = vunpack.c.h.b16 %v1159
  %v1371 = vunpack.c.l.b16 %v1160
  %v1372 = vunpack.c.h.b16 %v1160
  %v1373 = vunpack.c.l.b16 %v1161
  %v1374 = vunpack.c.h.b16 %v1161
  %v1375 = vunpack.c.l.b16 %v1162
  %v1376 = vunpack.c.h.b16 %v1162
  %v1377 = vunpack.c.l.b16 %v1163
  %v1378 = vunpack.c.h.b16 %v1163
  %v1379 = vunpack.c.l.b16 %v1164
  %v1380 = vunpack.c.h.b16 %v1164
  %v1381 = vunpack.c.l.b16 %v1165
  %v1382 = vunpack.c.h.b16 %v1165
  %v1383 = vunpack.c.l.b16 %v1166
  %v1384 = vunpack.c.h.b16 %v1166
  %v1385 = vunpack.c.l.b16 %v1167
  %v1386 = vunpack.c.h.b16 %v1167
  %v1387 = vunpack.c.l.b16 %v1168
  %v1388 = vunpack.c.h.b16 %v1168
  %v1389 = vunpack.c.l.b16 %v1169
  %v1390 = vunpack.c.h.b16 %v1169
  %v1391 = vunpack.c.l.b16 %v1170
  %v1392 = vunpack.c.h.b16 %v1170
  %v1393 = vunpack.c.l.b16 %v1171
  %v1394 = vunpack.c.h.b16 %v1171
  %v1395 = vunpack.c.l.b16 %v1172
  %v1396 = vunpack.c.h.b16 %v1172
  %v1397 = vunpack.c.l.b16 %v1173
  %v1398 = vunpack.c.h.b16 %v1173
  %v1399 = vunpack.c.l.b16 %v1174
  %v1400 = vunpack.c.h.b16 %v1174
  %v1401 = vunpack.c.l.b16 %v1175
  %v1402 = vunpack.c.h.b16 %v1175
  %v1403 = vunpack.c.l.b16 %v1176
  %v1404 = vunpack.c.h.b16 %v1176
  %v1405 = vunpack.c.l.b16 %v1177
  %v1406 = vunpack.c.h.b16 %v1177
  %v1407 = vunpack.c.l.b16 %v1178
  %v1408 = vunpack.c.h.b16 %v1178
  %v1409 = vunpack.c.l.b16 %v1179
  %v1410 = vunpack.c.h.b16 %v1179
  %v1411 = vunpack.c.l.b16 %v1180
  %v1412 = vunpack.c.h.b16 %v1180
  %v1413 = vunpack.c.l.b16 %v1181
  %v1414 = vunpack.c.h.b16 %v1181
  %v1415 = vunpack.c.l.b16 %v1182
  %v1416 = vunpack.c.h.b16 %v1182
  %v1417 = vunpack.c.l.b16 %v1183
  %v1418 = vunpack.c.h.b16 %v1183
  %v1419 = vunpack.c.l.b16 %v1184
  %v1420 = vunpack.c.h.b16 %v1184
  %v1421 = vunpack.c.l.b16 %v1185
  %v1422 = vunpack.c.h.b16 %v1185
  %v1423 = vunpack.c.l.b16 %v1186
  %v1424 = vunpack.c.h.b16 %v1186
  %v1425 = vunpack.c.l.b16 %v1187
  %v1426 = vunpack.c.h.b16 %v1187
  %v1427 = vunpack.c.l.b16 %v1188
  %v1428 = vunpack.c.h.b16 %v1188
  %v1429 = vpack.c.b16 %v1305, %v1301
  %v1430 = vpack.c.b16 %v1306, %v1302
  %v1431 = vpack.c.b16 %v1307, %v1303
  %v1432 = vpack.c.b16 %v1308, %v1304
  %v1433 = vpack.c.b16 %v1313, %v1309
  %v1434 = vpack.c.b16 %v1314, %v1310
  %v1435 = vpack.c.b16 %v1315, %v1311
  %v1436 = vpack.c.b16 %v1316, %v1312
  %v1437 = vpack.c.b16 %v1321, %v1317
  %v1438 = vpack.c.b16 %v1322, %v1318
  %v1439 = vpack.c.b16 %v1323, %v1319
  %v1440 = vpack.c.b16 %v1324, %v1320
  %v1441 = vpack.c.b16 %v1329, %v1325
  %v1442 = vpack.c.b16 %v1330, %v1326
  %v1443 = vpack.c.b16 %v1331, %v1327
  %v1444 = vpack.c.b16 %v1332, %v1328
  %v1445 = vpack.c.b16 %v1337, %v1333
  %v1446 = vpack.c.b16 %v1338, %v1334
  %v1447 = vpack.c.b16 %v1339, %v1335
  %v1448 = vpack.c.b16 %v1340, %v1336
  %v1449 = vpack.c.b16 %v1345, %v1341
  %v1450 = vpack.c.b16 %v1346, %v1342
  %v1451 = vpack.c.b16 %v1347, %v1343
  %v1452 = vpack.c.b16 %v1348, %v1344
  %v1453 = vpack.c.b16 %v1353, %v1349
  %v1454 = vpack.c.b16 %v1354, %v1350
  %v1455 = vpack.c.b16 %v1355, %v1351
  %v1456 = vpack.c.b16 %v1356, %v1352
  %v1457 = vpack.c.b16 %v1361, %v1357
  %v1458 = vpack.c.b16 %v1362, %v1358
  %v1459 = vpack.c.b16 %v1363, %v1359
  %v1460 = vpack.c.b16 %v1364, %v1360
  %v1461 = vpack.c.b16 %v1369, %v1365
  %v1462 = vpack.c.b16 %v1370, %v1366
  %v1463 = vpack.c.b16 %v1371, %v1367
  %v1464 = vpack.c.b16 %v1372, %v1368
  %v1465 = vpack.c.b16 %v1377, %v1373
  %v1466 = vpack.c.b16 %v1378, %v1374
  %v1467 = vpack.c.b16 %v1379, %v1375
  %v1468 = vpack.c.b16 %v1380, %v1376
  %v1469 = vpack.c.b16 %v1385, %v1381
  %v1470 = vpack.c.b16 %v1386, %v1382
  %v1471 = vpack.c.b16 %v1387, %v1383
  %v1472 = vpack.c.b16 %v1388, %v1384
  %v1473 = vpack.c.b16 %v1393, %v1389
  %v1474 = vpack.c.b16 %v1394, %v1390
  %v1475 = vpack.c.b16 %v1395, %v1391
  %v1476 = vpack.c.b16 %v1396, %v1392
  %v1477 = vpack.c.b16 %v1401, %v1397
  %v1478 = vpack.c.b16 %v1402, %v1398
  %v1479 = vpack.c.b16 %v1403, %v1399
  %v1480 = vpack.c.b16 %v1404, %v1400
  %v1481 = vpack.c.b16 %v1409, %v1405
  %v1482 = vpack.c.b16 %v1410, %v1406
  %v1483 = vpack.c.b16 %v1411, %v1407
  %v1484 = vpack.c.b16 %v1412, %v1408
  %v1485 = vpack.c.b16 %v1417, %v1413
  %v1486 = vpack.c.b16 %v1418, %v1414
  %v1487 = vpack.c.b16 %v1419, %v1415
  %v1488 = vpack.c.b16 %v1420, %v1416
  %v1489 = vpack.c.b16 %v1425, %v1421
  %v1490 = vpack.c.b16 %v1426, %v1422
  %v1491 = vpack.c.b16 %v1427, %v1423
  %v1492 = vpack.c.b16 %v1428, %v1424
  %1557 = vmatprep.subr.bf16.mxu0 %v1430
  %1558 = vmatpush1.bf16.msra.mxu0 %v1429
  %1559 = vmatprep.subr.bf16.mxu0 %v1434
  %1560 = vmatpush1.bf16.msra.mxu0 %v1433
  %1561 = vmatprep.subr.bf16.mxu0 %v1438
  %1562 = vmatpush1.bf16.msra.mxu0 %v1437
  %1563 = vmatprep.subr.bf16.mxu0 %v1442
  %1564 = vmatpush1.bf16.msra.mxu0 %v1441
  %1565 = vmatprep.subr.bf16.mxu0 %v1446
  %1566 = vmatpush1.bf16.msra.mxu0 %v1445
  %1567 = vmatprep.subr.bf16.mxu0 %v1450
  %1568 = vmatpush1.bf16.msra.mxu0 %v1449
  %1569 = vmatprep.subr.bf16.mxu0 %v1454
  %1570 = vmatpush1.bf16.msra.mxu0 %v1453
  %1571 = vmatprep.subr.bf16.mxu0 %v1458
  %1572 = vmatpush1.bf16.msra.mxu0 %v1457
  %1573 = vmatprep.subr.bf16.mxu0 %v1462
  %1574 = vmatpush1.bf16.msra.mxu0 %v1461
  %1575 = vmatprep.subr.bf16.mxu0 %v1466
  %1576 = vmatpush1.bf16.msra.mxu0 %v1465
  %1577 = vmatprep.subr.bf16.mxu0 %v1470
  %1578 = vmatpush1.bf16.msra.mxu0 %v1469
  %1579 = vmatprep.subr.bf16.mxu0 %v1474
  %1580 = vmatpush1.bf16.msra.mxu0 %v1473
  %1581 = vmatprep.subr.bf16.mxu0 %v1478
  %1582 = vmatpush1.bf16.msra.mxu0 %v1477
  %1583 = vmatprep.subr.bf16.mxu0 %v1482
  %1584 = vmatpush1.bf16.msra.mxu0 %v1481
  %1585 = vmatprep.subr.bf16.mxu0 %v1486
  %1586 = vmatpush1.bf16.msra.mxu0 %v1485
  %1587 = vmatprep.subr.bf16.mxu0 %v1490
  %1588 = vmatpush1.bf16.msra.mxu0 %v1489
  %1589 = vmatprep.mubr.bf16.mxu0 %v1191
  %1590 = vmatmul.mubr.bf16.gmra.mrb[0].mxu0 %v1190
  %v1591 = vpop.f32.mrb[0].mxu0
  %v1592 = vadd.f32 %v1220, %v1591
  %v1593 = vpop.f32.mrb[0].mxu0
  %v1594 = vadd.f32 %v1224, %v1593
  %v1595 = vpop.f32.mrb[0].mxu0
  %v1596 = vadd.f32 %v1220, %v1595
  %v1597 = vpop.f32.mrb[0].mxu0
  %v1598 = vadd.f32 %v1224, %v1597
  %1599 = vmatprep.mubr.bf16.mxu0 %v1193
  %1600 = vmatmul.mubr.bf16.gmra.mrb[0].mxu0 %v1192
  %v1601 = vpop.f32.mrb[0].mxu0
  %v1602 = vadd.f32 %v1220, %v1601
  %v1603 = vpop.f32.mrb[0].mxu0
  %v1604 = vadd.f32 %v1224, %v1603
  %v1605 = vpop.f32.mrb[0].mxu0
  %v1606 = vadd.f32 %v1220, %v1605
  %v1607 = vpop.f32.mrb[0].mxu0
  %v1608 = vadd.f32 %v1224, %v1607
  %1609 = vmatprep.mubr.bf16.mxu0 %v1195
  %1610 = vmatmul.mubr.bf16.gmra.mrb[0].mxu0 %v1194
  %v1611 = vpop.f32.mrb[0].mxu0
  %v1612 = vadd.f32 %v1220, %v1611
  %v1613 = vpop.f32.mrb[0].mxu0
  %v1614 = vadd.f32 %v1224, %v1613
  %v1615 = vpop.f32.mrb[0].mxu0
  %v1616 = vadd.f32 %v1220, %v1615
  %v1617 = vpop.f32.mrb[0].mxu0
  %v1618 = vadd.f32 %v1224, %v1617
  %1619 = vmatprep.mubr.bf16.mxu0 %v1197
  %1620 = vmatmul.mubr.bf16.gmra.mrb[0].mxu0 %v1196
  %v1621 = vpop.f32.mrb[0].mxu0
  %v1622 = vadd.f32 %v1220, %v1621
  %v1623 = vpop.f32.mrb[0].mxu0
  %v1624 = vadd.f32 %v1224, %v1623
  %v1625 = vpop.f32.mrb[0].mxu0
  %v1626 = vadd.f32 %v1220, %v1625
  %v1627 = vpop.f32.mrb[0].mxu0
  %v1628 = vadd.f32 %v1224, %v1627
  %1629 = vmatprep.mubr.bf16.mxu0 %v1199
  %1630 = vmatmul.mubr.bf16.gmra.mrb[0].mxu0 %v1198
  %v1631 = vpop.f32.mrb[0].mxu0
  %v1632 = vadd.f32 %v1220, %v1631
  %v1633 = vpop.f32.mrb[0].mxu0
  %v1634 = vadd.f32 %v1224, %v1633
  %v1635 = vpop.f32.mrb[0].mxu0
  %v1636 = vadd.f32 %v1220, %v1635
  %v1637 = vpop.f32.mrb[0].mxu0
  %v1638 = vadd.f32 %v1224, %v1637
  %1639 = vmatprep.mubr.bf16.mxu0 %v1201
  %1640 = vmatmul.mubr.bf16.gmra.mrb[0].mxu0 %v1200
  %v1641 = vpop.f32.mrb[0].mxu0
  %v1642 = vadd.f32 %v1220, %v1641
  %v1643 = vpop.f32.mrb[0].mxu0
  %v1644 = vadd.f32 %v1224, %v1643
  %v1645 = vpop.f32.mrb[0].mxu0
  %v1646 = vadd.f32 %v1220, %v1645
  %v1647 = vpop.f32.mrb[0].mxu0
  %v1648 = vadd.f32 %v1224, %v1647
  %1649 = vmatprep.mubr.bf16.mxu0 %v1203
  %1650 = vmatmul.mubr.bf16.gmra.mrb[0].mxu0 %v1202
  %v1651 = vpop.f32.mrb[0].mxu0
  %v1652 = vadd.f32 %v1220, %v1651
  %v1653 = vpop.f32.mrb[0].mxu0
  %v1654 = vadd.f32 %v1224, %v1653
  %v1655 = vpop.f32.mrb[0].mxu0
  %v1656 = vadd.f32 %v1220, %v1655
  %v1657 = vpop.f32.mrb[0].mxu0
  %v1658 = vadd.f32 %v1224, %v1657
  %1659 = vmatprep.mubr.bf16.mxu0 %v1205
  %1660 = vmatmul.mubr.bf16.gmra.mrb[0].mxu0 %v1204
  %v1661 = vpop.f32.mrb[0].mxu0
  %v1662 = vadd.f32 %v1220, %v1661
  %v1663 = vpop.f32.mrb[0].mxu0
  %v1664 = vadd.f32 %v1224, %v1663
  %v1665 = vpop.f32.mrb[0].mxu0
  %v1666 = vadd.f32 %v1220, %v1665
  %v1667 = vpop.f32.mrb[0].mxu0
  %v1668 = vadd.f32 %v1224, %v1667
  %1669 = vmatprep.mubr.bf16.mxu0 %v1207
  %1670 = vmatmul.mubr.bf16.gmra.mrb[0].mxu0 %v1206
  %v1671 = vpop.f32.mrb[0].mxu0
  %v1672 = vadd.f32 %v1220, %v1671
  %v1673 = vpop.f32.mrb[0].mxu0
  %v1674 = vadd.f32 %v1224, %v1673
  %v1675 = vpop.f32.mrb[0].mxu0
  %v1676 = vadd.f32 %v1220, %v1675
  %v1677 = vpop.f32.mrb[0].mxu0
  %v1678 = vadd.f32 %v1224, %v1677
  %1679 = vmatprep.mubr.bf16.mxu0 %v1209
  %1680 = vmatmul.mubr.bf16.gmra.mrb[0].mxu0 %v1208
  %v1681 = vpop.f32.mrb[0].mxu0
  %v1682 = vadd.f32 %v1220, %v1681
  %v1683 = vpop.f32.mrb[0].mxu0
  %v1684 = vadd.f32 %v1224, %v1683
  %v1685 = vpop.f32.mrb[0].mxu0
  %v1686 = vadd.f32 %v1220, %v1685
  %v1687 = vpop.f32.mrb[0].mxu0
  %v1688 = vadd.f32 %v1224, %v1687
  %1689 = vmatprep.mubr.bf16.mxu0 %v1211
  %1690 = vmatmul.mubr.bf16.gmra.mrb[0].mxu0 %v1210
  %v1691 = vpop.f32.mrb[0].mxu0
  %v1692 = vadd.f32 %v1220, %v1691
  %v1693 = vpop.f32.mrb[0].mxu0
  %v1694 = vadd.f32 %v1224, %v1693
  %v1695 = vpop.f32.mrb[0].mxu0
  %v1696 = vadd.f32 %v1220, %v1695
  %v1697 = vpop.f32.mrb[0].mxu0
  %v1698 = vadd.f32 %v1224, %v1697
  %1699 = vmatprep.mubr.bf16.mxu0 %v1213
  %1700 = vmatmul.mubr.bf16.gmra.mrb[0].mxu0 %v1212
  %v1701 = vpop.f32.mrb[0].mxu0
  %v1702 = vadd.f32 %v1220, %v1701
  %v1703 = vpop.f32.mrb[0].mxu0
  %v1704 = vadd.f32 %v1224, %v1703
  %v1705 = vpop.f32.mrb[0].mxu0
  %v1706 = vadd.f32 %v1220, %v1705
  %v1707 = vpop.f32.mrb[0].mxu0
  %v1708 = vadd.f32 %v1224, %v1707
  %1709 = vmatprep.mubr.bf16.mxu0 %v1215
  %1710 = vmatmul.mubr.bf16.gmra.mrb[0].mxu0 %v1214
  %v1711 = vpop.f32.mrb[0].mxu0
  %v1712 = vadd.f32 %v1220, %v1711
  %v1713 = vpop.f32.mrb[0].mxu0
  %v1714 = vadd.f32 %v1224, %v1713
  %v1715 = vpop.f32.mrb[0].mxu0
  %v1716 = vadd.f32 %v1220, %v1715
  %v1717 = vpop.f32.mrb[0].mxu0
  %v1718 = vadd.f32 %v1224, %v1717
  %1719 = vdwg.mxu0
  %1720 = vmatprep.subr.bf16.mxu0 %v1432
  %1721 = vmatpush1.bf16.msra.mxu0 %v1431
  %1722 = vmatprep.subr.bf16.mxu0 %v1436
  %1723 = vmatpush1.bf16.msra.mxu0 %v1435
  %1724 = vmatprep.subr.bf16.mxu0 %v1440
  %1725 = vmatpush1.bf16.msra.mxu0 %v1439
  %1726 = vmatprep.subr.bf16.mxu0 %v1444
  %1727 = vmatpush1.bf16.msra.mxu0 %v1443
  %1728 = vmatprep.subr.bf16.mxu0 %v1448
  %1729 = vmatpush1.bf16.msra.mxu0 %v1447
  %1730 = vmatprep.subr.bf16.mxu0 %v1452
  %1731 = vmatpush1.bf16.msra.mxu0 %v1451
  %1732 = vmatprep.subr.bf16.mxu0 %v1456
  %1733 = vmatpush1.bf16.msra.mxu0 %v1455
  %1734 = vmatprep.subr.bf16.mxu0 %v1460
  %1735 = vmatpush1.bf16.msra.mxu0 %v1459
  %1736 = vmatprep.subr.bf16.mxu0 %v1464
  %1737 = vmatpush1.bf16.msra.mxu0 %v1463
  %1738 = vmatprep.subr.bf16.mxu0 %v1468
  %1739 = vmatpush1.bf16.msra.mxu0 %v1467
  %1740 = vmatprep.subr.bf16.mxu0 %v1472
  %1741 = vmatpush1.bf16.msra.mxu0 %v1471
  %1742 = vmatprep.subr.bf16.mxu0 %v1476
  %1743 = vmatpush1.bf16.msra.mxu0 %v1475
  %1744 = vmatprep.subr.bf16.mxu0 %v1480
  %1745 = vmatpush1.bf16.msra.mxu0 %v1479
  %1746 = vmatprep.subr.bf16.mxu0 %v1484
  %1747 = vmatpush1.bf16.msra.mxu0 %v1483
  %1748 = vmatprep.subr.bf16.mxu0 %v1488
  %1749 = vmatpush1.bf16.msra.mxu0 %v1487
  %1750 = vmatprep.subr.bf16.mxu0 %v1492
  %1751 = vmatpush1.bf16.msra.mxu0 %v1491
  %1752 = vmatprep.mubr.bf16.mxu0 %v1191
  %1753 = vmatmul.mubr.bf16.gmra.mrb[0].mxu0 %v1190
  %v1754 = vpop.f32.mrb[0].mxu0
  %v1755 = vadd.f32 %v1228, %v1754
  %v1756 = vpop.f32.mrb[0].mxu0
  %v1757 = vadd.f32 %v1232, %v1756
  %v1758 = vpop.f32.mrb[0].mxu0
  %v1759 = vadd.f32 %v1228, %v1758
  %v1760 = vpop.f32.mrb[0].mxu0
  %v1761 = vadd.f32 %v1232, %v1760
  %1762 = vmatprep.mubr.bf16.mxu0 %v1193
  %1763 = vmatmul.mubr.bf16.gmra.mrb[0].mxu0 %v1192
  %v1764 = vpop.f32.mrb[0].mxu0
  %v1765 = vadd.f32 %v1228, %v1764
  %v1766 = vpop.f32.mrb[0].mxu0
  %v1767 = vadd.f32 %v1232, %v1766
  %v1768 = vpop.f32.mrb[0].mxu0
  %v1769 = vadd.f32 %v1228, %v1768
  %v1770 = vpop.f32.mrb[0].mxu0
  %v1771 = vadd.f32 %v1232, %v1770
  %1772 = vmatprep.mubr.bf16.mxu0 %v1195
  %1773 = vmatmul.mubr.bf16.gmra.mrb[0].mxu0 %v1194
  %v1774 = vpop.f32.mrb[0].mxu0
  %v1775 = vadd.f32 %v1228, %v1774
  %v1776 = vpop.f32.mrb[0].mxu0
  %v1777 = vadd.f32 %v1232, %v1776
  %v1778 = vpop.f32.mrb[0].mxu0
  %v1779 = vadd.f32 %v1228, %v1778
  %v1780 = vpop.f32.mrb[0].mxu0
  %v1781 = vadd.f32 %v1232, %v1780
  %1782 = vmatprep.mubr.bf16.mxu0 %v1197
  %1783 = vmatmul.mubr.bf16.gmra.mrb[0].mxu0 %v1196
  %v1784 = vpop.f32.mrb[0].mxu0
  %v1785 = vadd.f32 %v1228, %v1784
  %v1786 = vpop.f32.mrb[0].mxu0
  %v1787 = vadd.f32 %v1232, %v1786
  %v1788 = vpop.f32.mrb[0].mxu0
  %v1789 = vadd.f32 %v1228, %v1788
  %v1790 = vpop.f32.mrb[0].mxu0
  %v1791 = vadd.f32 %v1232, %v1790
  %1792 = vmatprep.mubr.bf16.mxu0 %v1199
  %1793 = vmatmul.mubr.bf16.gmra.mrb[0].mxu0 %v1198
  %v1794 = vpop.f32.mrb[0].mxu0
  %v1795 = vadd.f32 %v1228, %v1794
  %v1796 = vpop.f32.mrb[0].mxu0
  %v1797 = vadd.f32 %v1232, %v1796
  %v1798 = vpop.f32.mrb[0].mxu0
  %v1799 = vadd.f32 %v1228, %v1798
  %v1800 = vpop.f32.mrb[0].mxu0
  %v1801 = vadd.f32 %v1232, %v1800
  %1802 = vmatprep.mubr.bf16.mxu0 %v1201
  %1803 = vmatmul.mubr.bf16.gmra.mrb[0].mxu0 %v1200
  %v1804 = vpop.f32.mrb[0].mxu0
  %v1805 = vadd.f32 %v1228, %v1804
  %v1806 = vpop.f32.mrb[0].mxu0
  %v1807 = vadd.f32 %v1232, %v1806
  %v1808 = vpop.f32.mrb[0].mxu0
  %v1809 = vadd.f32 %v1228, %v1808
  %v1810 = vpop.f32.mrb[0].mxu0
  %v1811 = vadd.f32 %v1232, %v1810
  %1812 = vmatprep.mubr.bf16.mxu0 %v1203
  %1813 = vmatmul.mubr.bf16.gmra.mrb[0].mxu0 %v1202
  %v1814 = vpop.f32.mrb[0].mxu0
  %v1815 = vadd.f32 %v1228, %v1814
  %v1816 = vpop.f32.mrb[0].mxu0
  %v1817 = vadd.f32 %v1232, %v1816
  %v1818 = vpop.f32.mrb[0].mxu0
  %v1819 = vadd.f32 %v1228, %v1818
  %v1820 = vpop.f32.mrb[0].mxu0
  %v1821 = vadd.f32 %v1232, %v1820
  %1822 = vmatprep.mubr.bf16.mxu0 %v1205
  %1823 = vmatmul.mubr.bf16.gmra.mrb[0].mxu0 %v1204
  %v1824 = vpop.f32.mrb[0].mxu0
  %v1825 = vadd.f32 %v1228, %v1824
  %v1826 = vpop.f32.mrb[0].mxu0
  %v1827 = vadd.f32 %v1232, %v1826
  %v1828 = vpop.f32.mrb[0].mxu0
  %v1829 = vadd.f32 %v1228, %v1828
  %v1830 = vpop.f32.mrb[0].mxu0
  %v1831 = vadd.f32 %v1232, %v1830
  %1832 = vmatprep.mubr.bf16.mxu0 %v1207
  %1833 = vmatmul.mubr.bf16.gmra.mrb[0].mxu0 %v1206
  %v1834 = vpop.f32.mrb[0].mxu0
  %v1835 = vadd.f32 %v1228, %v1834
  %v1836 = vpop.f32.mrb[0].mxu0
  %v1837 = vadd.f32 %v1232, %v1836
  %v1838 = vpop.f32.mrb[0].mxu0
  %v1839 = vadd.f32 %v1228, %v1838
  %v1840 = vpop.f32.mrb[0].mxu0
  %v1841 = vadd.f32 %v1232, %v1840
  %1842 = vmatprep.mubr.bf16.mxu0 %v1209
  %1843 = vmatmul.mubr.bf16.gmra.mrb[0].mxu0 %v1208
  %v1844 = vpop.f32.mrb[0].mxu0
  %v1845 = vadd.f32 %v1228, %v1844
  %v1846 = vpop.f32.mrb[0].mxu0
  %v1847 = vadd.f32 %v1232, %v1846
  %v1848 = vpop.f32.mrb[0].mxu0
  %v1849 = vadd.f32 %v1228, %v1848
  %v1850 = vpop.f32.mrb[0].mxu0
  %v1851 = vadd.f32 %v1232, %v1850
  %1852 = vmatprep.mubr.bf16.mxu0 %v1211
  %1853 = vmatmul.mubr.bf16.gmra.mrb[0].mxu0 %v1210
  %v1854 = vpop.f32.mrb[0].mxu0
  %v1855 = vadd.f32 %v1228, %v1854
  %v1856 = vpop.f32.mrb[0].mxu0
  %v1857 = vadd.f32 %v1232, %v1856
  %v1858 = vpop.f32.mrb[0].mxu0
  %v1859 = vadd.f32 %v1228, %v1858
  %v1860 = vpop.f32.mrb[0].mxu0
  %v1861 = vadd.f32 %v1232, %v1860
  %1862 = vmatprep.mubr.bf16.mxu0 %v1213
  %1863 = vmatmul.mubr.bf16.gmra.mrb[0].mxu0 %v1212
  %v1864 = vpop.f32.mrb[0].mxu0
  %v1865 = vadd.f32 %v1228, %v1864
  %v1866 = vpop.f32.mrb[0].mxu0
  %v1867 = vadd.f32 %v1232, %v1866
  %v1868 = vpop.f32.mrb[0].mxu0
  %v1869 = vadd.f32 %v1228, %v1868
  %v1870 = vpop.f32.mrb[0].mxu0
  %v1871 = vadd.f32 %v1232, %v1870
  %1872 = vmatprep.mubr.bf16.mxu0 %v1215
  %1873 = vmatmul.mubr.bf16.gmra.mrb[0].mxu0 %v1214
  %v1874 = vpop.f32.mrb[0].mxu0
  %v1875 = vadd.f32 %v1228, %v1874
  %v1876 = vpop.f32.mrb[0].mxu0
  %v1877 = vadd.f32 %v1232, %v1876
  %v1878 = vpop.f32.mrb[0].mxu0
  %v1879 = vadd.f32 %v1228, %v1878
  %v1880 = vpop.f32.mrb[0].mxu0
  %v1881 = vadd.f32 %v1232, %v1880
  %1882 = vdwg.mxu0
  %v1883 = vmul.f32 %v1592, %v1592
  %v1884 = vmul.f32 %v1594, %v1594
  %v1885 = vmul.f32 %v1755, %v1755
  %v1886 = vmul.f32 %v1757, %v1757
  %v1887 = vmul.f32 %v1596, %v1596
  %v1888 = vmul.f32 %v1598, %v1598
  %v1889 = vmul.f32 %v1759, %v1759
  %v1890 = vmul.f32 %v1761, %v1761
  %v1891 = vmul.f32 %v1602, %v1602
  %v1892 = vmul.f32 %v1604, %v1604
  %v1893 = vmul.f32 %v1765, %v1765
  %v1894 = vmul.f32 %v1767, %v1767
  %v1895 = vmul.f32 %v1606, %v1606
  %v1896 = vmul.f32 %v1608, %v1608
  %v1897 = vmul.f32 %v1769, %v1769
  %v1898 = vmul.f32 %v1771, %v1771
  %v1899 = vmul.f32 %v1612, %v1612
  %v1900 = vmul.f32 %v1614, %v1614
  %v1901 = vmul.f32 %v1775, %v1775
  %v1902 = vmul.f32 %v1777, %v1777
  %v1903 = vmul.f32 %v1616, %v1616
  %v1904 = vmul.f32 %v1618, %v1618
  %v1905 = vmul.f32 %v1779, %v1779
  %v1906 = vmul.f32 %v1781, %v1781
  %v1907 = vmul.f32 %v1622, %v1622
  %v1908 = vmul.f32 %v1624, %v1624
  %v1909 = vmul.f32 %v1785, %v1785
  %v1910 = vmul.f32 %v1787, %v1787
  %v1911 = vmul.f32 %v1626, %v1626
  %v1912 = vmul.f32 %v1628, %v1628
  %v1913 = vmul.f32 %v1789, %v1789
  %v1914 = vmul.f32 %v1791, %v1791
  %v1915 = vmul.f32 %v1632, %v1632
  %v1916 = vmul.f32 %v1634, %v1634
  %v1917 = vmul.f32 %v1795, %v1795
  %v1918 = vmul.f32 %v1797, %v1797
  %v1919 = vmul.f32 %v1636, %v1636
  %v1920 = vmul.f32 %v1638, %v1638
  %v1921 = vmul.f32 %v1799, %v1799
  %v1922 = vmul.f32 %v1801, %v1801
  %v1923 = vmul.f32 %v1642, %v1642
  %v1924 = vmul.f32 %v1644, %v1644
  %v1925 = vmul.f32 %v1805, %v1805
  %v1926 = vmul.f32 %v1807, %v1807
  %v1927 = vmul.f32 %v1646, %v1646
  %v1928 = vmul.f32 %v1648, %v1648
  %v1929 = vmul.f32 %v1809, %v1809
  %v1930 = vmul.f32 %v1811, %v1811
  %v1931 = vmul.f32 %v1652, %v1652
  %v1932 = vmul.f32 %v1654, %v1654
  %v1933 = vmul.f32 %v1815, %v1815
  %v1934 = vmul.f32 %v1817, %v1817
  %v1935 = vmul.f32 %v1656, %v1656
  %v1936 = vmul.f32 %v1658, %v1658
  %v1937 = vmul.f32 %v1819, %v1819
  %v1938 = vmul.f32 %v1821, %v1821
  %v1939 = vmul.f32 %v1662, %v1662
  %v1940 = vmul.f32 %v1664, %v1664
  %v1941 = vmul.f32 %v1825, %v1825
  %v1942 = vmul.f32 %v1827, %v1827
  %v1943 = vmul.f32 %v1666, %v1666
  %v1944 = vmul.f32 %v1668, %v1668
  %v1945 = vmul.f32 %v1829, %v1829
  %v1946 = vmul.f32 %v1831, %v1831
  %v1947 = vmul.f32 %v1672, %v1672
  %v1948 = vmul.f32 %v1674, %v1674
  %v1949 = vmul.f32 %v1835, %v1835
  %v1950 = vmul.f32 %v1837, %v1837
  %v1951 = vmul.f32 %v1676, %v1676
  %v1952 = vmul.f32 %v1678, %v1678
  %v1953 = vmul.f32 %v1839, %v1839
  %v1954 = vmul.f32 %v1841, %v1841
  %v1955 = vmul.f32 %v1682, %v1682
  %v1956 = vmul.f32 %v1684, %v1684
  %v1957 = vmul.f32 %v1845, %v1845
  %v1958 = vmul.f32 %v1847, %v1847
  %v1959 = vmul.f32 %v1686, %v1686
  %v1960 = vmul.f32 %v1688, %v1688
  %v1961 = vmul.f32 %v1849, %v1849
  %v1962 = vmul.f32 %v1851, %v1851
  %v1963 = vmul.f32 %v1692, %v1692
  %v1964 = vmul.f32 %v1694, %v1694
  %v1965 = vmul.f32 %v1855, %v1855
  %v1966 = vmul.f32 %v1857, %v1857
  %v1967 = vmul.f32 %v1696, %v1696
  %v1968 = vmul.f32 %v1698, %v1698
  %v1969 = vmul.f32 %v1859, %v1859
  %v1970 = vmul.f32 %v1861, %v1861
  %v1971 = vmul.f32 %v1702, %v1702
  %v1972 = vmul.f32 %v1704, %v1704
  %v1973 = vmul.f32 %v1865, %v1865
  %v1974 = vmul.f32 %v1867, %v1867
  %v1975 = vmul.f32 %v1706, %v1706
  %v1976 = vmul.f32 %v1708, %v1708
  %v1977 = vmul.f32 %v1869, %v1869
  %v1978 = vmul.f32 %v1871, %v1871
  %v1979 = vmul.f32 %v1712, %v1712
  %v1980 = vmul.f32 %v1714, %v1714
  %v1981 = vmul.f32 %v1875, %v1875
  %v1982 = vmul.f32 %v1877, %v1877
  %v1983 = vmul.f32 %v1716, %v1716
  %v1984 = vmul.f32 %v1718, %v1718
  %v1985 = vmul.f32 %v1879, %v1879
  %v1986 = vmul.f32 %v1881, %v1881
  %v1987 = vadd.f32 %v1883, %v1884
  %v1988 = vadd.f32 %v1987, %v1885
  %v1989 = vadd.f32 %v1988, %v1886
  %1990 = vadd.xlane.f32.xlu0 %v1989
  %v1991 = vpop.xlane.xlu0 %1990
  %v1992 = vadd.f32 %v1887, %v1888
  %v1993 = vadd.f32 %v1992, %v1889
  %v1994 = vadd.f32 %v1993, %v1890
  %1995 = vadd.xlane.f32.xlu0 %v1994
  %v1996 = vpop.xlane.xlu0 %1995
  %v1997 = vadd.f32 %v1891, %v1892
  %v1998 = vadd.f32 %v1997, %v1893
  %v1999 = vadd.f32 %v1998, %v1894
  %2000 = vadd.xlane.f32.xlu0 %v1999
  %v2001 = vpop.xlane.xlu0 %2000
  %v2002 = vadd.f32 %v1895, %v1896
  %v2003 = vadd.f32 %v2002, %v1897
  %v2004 = vadd.f32 %v2003, %v1898
  %2005 = vadd.xlane.f32.xlu0 %v2004
  %v2006 = vpop.xlane.xlu0 %2005
  %v2007 = vadd.f32 %v1899, %v1900
  %v2008 = vadd.f32 %v2007, %v1901
  %v2009 = vadd.f32 %v2008, %v1902
  %2010 = vadd.xlane.f32.xlu0 %v2009
  %v2011 = vpop.xlane.xlu0 %2010
  %v2012 = vadd.f32 %v1903, %v1904
  %v2013 = vadd.f32 %v2012, %v1905
  %v2014 = vadd.f32 %v2013, %v1906
  %2015 = vadd.xlane.f32.xlu0 %v2014
  %v2016 = vpop.xlane.xlu0 %2015
  %v2017 = vadd.f32 %v1907, %v1908
  %v2018 = vadd.f32 %v2017, %v1909
  %v2019 = vadd.f32 %v2018, %v1910
  %2020 = vadd.xlane.f32.xlu0 %v2019
  %v2021 = vpop.xlane.xlu0 %2020
  %v2022 = vadd.f32 %v1911, %v1912
  %v2023 = vadd.f32 %v2022, %v1913
  %v2024 = vadd.f32 %v2023, %v1914
  %2025 = vadd.xlane.f32.xlu0 %v2024
  %v2026 = vpop.xlane.xlu0 %2025
  %v2027 = vadd.f32 %v1915, %v1916
  %v2028 = vadd.f32 %v2027, %v1917
  %v2029 = vadd.f32 %v2028, %v1918
  %2030 = vadd.xlane.f32.xlu0 %v2029
  %v2031 = vpop.xlane.xlu0 %2030
  %v2032 = vadd.f32 %v1919, %v1920
  %v2033 = vadd.f32 %v2032, %v1921
  %v2034 = vadd.f32 %v2033, %v1922
  %2035 = vadd.xlane.f32.xlu0 %v2034
  %v2036 = vpop.xlane.xlu0 %2035
  %v2037 = vadd.f32 %v1923, %v1924
  %v2038 = vadd.f32 %v2037, %v1925
  %v2039 = vadd.f32 %v2038, %v1926
  %2040 = vadd.xlane.f32.xlu0 %v2039
  %v2041 = vpop.xlane.xlu0 %2040
  %v2042 = vadd.f32 %v1927, %v1928
  %v2043 = vadd.f32 %v2042, %v1929
  %v2044 = vadd.f32 %v2043, %v1930
  %2045 = vadd.xlane.f32.xlu0 %v2044
  %v2046 = vpop.xlane.xlu0 %2045
  %v2047 = vadd.f32 %v1931, %v1932
  %v2048 = vadd.f32 %v2047, %v1933
  %v2049 = vadd.f32 %v2048, %v1934
  %2050 = vadd.xlane.f32.xlu0 %v2049
  %v2051 = vpop.xlane.xlu0 %2050
  %v2052 = vadd.f32 %v1935, %v1936
  %v2053 = vadd.f32 %v2052, %v1937
  %v2054 = vadd.f32 %v2053, %v1938
  %2055 = vadd.xlane.f32.xlu0 %v2054
  %v2056 = vpop.xlane.xlu0 %2055
  %v2057 = vadd.f32 %v1939, %v1940
  %v2058 = vadd.f32 %v2057, %v1941
  %v2059 = vadd.f32 %v2058, %v1942
  %2060 = vadd.xlane.f32.xlu0 %v2059
  %v2061 = vpop.xlane.xlu0 %2060
  %v2062 = vadd.f32 %v1943, %v1944
  %v2063 = vadd.f32 %v2062, %v1945
  %v2064 = vadd.f32 %v2063, %v1946
  %2065 = vadd.xlane.f32.xlu0 %v2064
  %v2066 = vpop.xlane.xlu0 %2065
  %v2067 = vadd.f32 %v1947, %v1948
  %v2068 = vadd.f32 %v2067, %v1949
  %v2069 = vadd.f32 %v2068, %v1950
  %2070 = vadd.xlane.f32.xlu0 %v2069
  %v2071 = vpop.xlane.xlu0 %2070
  %v2072 = vadd.f32 %v1951, %v1952
  %v2073 = vadd.f32 %v2072, %v1953
  %v2074 = vadd.f32 %v2073, %v1954
  %2075 = vadd.xlane.f32.xlu0 %v2074
  %v2076 = vpop.xlane.xlu0 %2075
  %v2077 = vadd.f32 %v1955, %v1956
  %v2078 = vadd.f32 %v2077, %v1957
  %v2079 = vadd.f32 %v2078, %v1958
  %2080 = vadd.xlane.f32.xlu0 %v2079
  %v2081 = vpop.xlane.xlu0 %2080
  %v2082 = vadd.f32 %v1959, %v1960
  %v2083 = vadd.f32 %v2082, %v1961
  %v2084 = vadd.f32 %v2083, %v1962
  %2085 = vadd.xlane.f32.xlu0 %v2084
  %v2086 = vpop.xlane.xlu0 %2085
  %v2087 = vadd.f32 %v1963, %v1964
  %v2088 = vadd.f32 %v2087, %v1965
  %v2089 = vadd.f32 %v2088, %v1966
  %2090 = vadd.xlane.f32.xlu0 %v2089
  %v2091 = vpop.xlane.xlu0 %2090
  %v2092 = vadd.f32 %v1967, %v1968
  %v2093 = vadd.f32 %v2092, %v1969
  %v2094 = vadd.f32 %v2093, %v1970
  %2095 = vadd.xlane.f32.xlu0 %v2094
  %v2096 = vpop.xlane.xlu0 %2095
  %v2097 = vadd.f32 %v1971, %v1972
  %v2098 = vadd.f32 %v2097, %v1973
  %v2099 = vadd.f32 %v2098, %v1974
  %2100 = vadd.xlane.f32.xlu0 %v2099
  %v2101 = vpop.xlane.xlu0 %2100
  %v2102 = vadd.f32 %v1975, %v1976
  %v2103 = vadd.f32 %v2102, %v1977
  %v2104 = vadd.f32 %v2103, %v1978
  %2105 = vadd.xlane.f32.xlu0 %v2104
  %v2106 = vpop.xlane.xlu0 %2105
  %v2107 = vadd.f32 %v1979, %v1980
  %v2108 = vadd.f32 %v2107, %v1981
  %v2109 = vadd.f32 %v2108, %v1982
  %2110 = vadd.xlane.f32.xlu0 %v2109
  %v2111 = vpop.xlane.xlu0 %2110
  %v2112 = vadd.f32 %v1983, %v1984
  %v2113 = vadd.f32 %v2112, %v1985
  %v2114 = vadd.f32 %v2113, %v1986
  %2115 = vadd.xlane.f32.xlu0 %v2114
  %v2116 = vpop.xlane.xlu0 %2115
  %v2117 = vmax.f32 %v1991, 1e-24
  %v2118 = vmax.f32 %v1996, 1e-24
  %v2119 = vmax.f32 %v2001, 1e-24
  %v2120 = vmax.f32 %v2006, 1e-24
  %v2121 = vmax.f32 %v2011, 1e-24
  %v2122 = vmax.f32 %v2016, 1e-24
  %v2123 = vmax.f32 %v2021, 1e-24
  %v2124 = vmax.f32 %v2026, 1e-24
  %v2125 = vmax.f32 %v2031, 1e-24
  %v2126 = vmax.f32 %v2036, 1e-24
  %v2127 = vmax.f32 %v2041, 1e-24
  %v2128 = vmax.f32 %v2046, 1e-24
  %v2129 = vmax.f32 %v2051, 1e-24
  %v2130 = vmax.f32 %v2056, 1e-24
  %v2131 = vmax.f32 %v2061, 1e-24
  %v2132 = vmax.f32 %v2066, 1e-24
  %v2133 = vmax.f32 %v2071, 1e-24
  %v2134 = vmax.f32 %v2076, 1e-24
  %v2135 = vmax.f32 %v2081, 1e-24
  %v2136 = vmax.f32 %v2086, 1e-24
  %v2137 = vmax.f32 %v2091, 1e-24
  %v2138 = vmax.f32 %v2096, 1e-24
  %v2139 = vmax.f32 %v2101, 1e-24
  %v2140 = vmax.f32 %v2106, 1e-24
  %v2141 = vmax.f32 %v2111, 1e-24
  %v2142 = vmax.f32 %v2116, 1e-24
  %v2143 = vrsqrt.pop %v2117
  %v2144 = vrsqrt.pop %v2118
  %v2145 = vrsqrt.pop %v2119
  %v2146 = vrsqrt.pop %v2120
  %v2147 = vrsqrt.pop %v2121
  %v2148 = vrsqrt.pop %v2122
  %v2149 = vrsqrt.pop %v2123
  %v2150 = vrsqrt.pop %v2124
  %v2151 = vrsqrt.pop %v2125
  %v2152 = vrsqrt.pop %v2126
  %v2153 = vrsqrt.pop %v2127
  %v2154 = vrsqrt.pop %v2128
  %v2155 = vrsqrt.pop %v2129
  %v2156 = vrsqrt.pop %v2130
  %v2157 = vrsqrt.pop %v2131
  %v2158 = vrsqrt.pop %v2132
  %v2159 = vrsqrt.pop %v2133
  %v2160 = vrsqrt.pop %v2134
  %v2161 = vrsqrt.pop %v2135
  %v2162 = vrsqrt.pop %v2136
  %v2163 = vrsqrt.pop %v2137
  %v2164 = vrsqrt.pop %v2138
  %v2165 = vrsqrt.pop %v2139
  %v2166 = vrsqrt.pop %v2140
  %v2167 = vrsqrt.pop %v2141
  %v2168 = vrsqrt.pop %v2142
  %v2169 = vmul.f32 %v1592, %v2143
  %v2170 = vmul.f32 %v1594, %v2143
  %v2171 = vmul.f32 %v1755, %v2143
  %v2172 = vmul.f32 %v1757, %v2143
  %v2173 = vmul.f32 %v1596, %v2144
  %v2174 = vmul.f32 %v1598, %v2144
  %v2175 = vmul.f32 %v1759, %v2144
  %v2176 = vmul.f32 %v1761, %v2144
  %v2177 = vmul.f32 %v1602, %v2145
  %v2178 = vmul.f32 %v1604, %v2145
  %v2179 = vmul.f32 %v1765, %v2145
  %v2180 = vmul.f32 %v1767, %v2145
  %v2181 = vmul.f32 %v1606, %v2146
  %v2182 = vmul.f32 %v1608, %v2146
  %v2183 = vmul.f32 %v1769, %v2146
  %v2184 = vmul.f32 %v1771, %v2146
  %v2185 = vmul.f32 %v1612, %v2147
  %v2186 = vmul.f32 %v1614, %v2147
  %v2187 = vmul.f32 %v1775, %v2147
  %v2188 = vmul.f32 %v1777, %v2147
  %v2189 = vmul.f32 %v1616, %v2148
  %v2190 = vmul.f32 %v1618, %v2148
  %v2191 = vmul.f32 %v1779, %v2148
  %v2192 = vmul.f32 %v1781, %v2148
  %v2193 = vmul.f32 %v1622, %v2149
  %v2194 = vmul.f32 %v1624, %v2149
  %v2195 = vmul.f32 %v1785, %v2149
  %v2196 = vmul.f32 %v1787, %v2149
  %v2197 = vmul.f32 %v1626, %v2150
  %v2198 = vmul.f32 %v1628, %v2150
  %v2199 = vmul.f32 %v1789, %v2150
  %v2200 = vmul.f32 %v1791, %v2150
  %v2201 = vmul.f32 %v1632, %v2151
  %v2202 = vmul.f32 %v1634, %v2151
  %v2203 = vmul.f32 %v1795, %v2151
  %v2204 = vmul.f32 %v1797, %v2151
  %v2205 = vmul.f32 %v1636, %v2152
  %v2206 = vmul.f32 %v1638, %v2152
  %v2207 = vmul.f32 %v1799, %v2152
  %v2208 = vmul.f32 %v1801, %v2152
  %v2209 = vmul.f32 %v1642, %v2153
  %v2210 = vmul.f32 %v1644, %v2153
  %v2211 = vmul.f32 %v1805, %v2153
  %v2212 = vmul.f32 %v1807, %v2153
  %v2213 = vmul.f32 %v1646, %v2154
  %v2214 = vmul.f32 %v1648, %v2154
  %v2215 = vmul.f32 %v1809, %v2154
  %v2216 = vmul.f32 %v1811, %v2154
  %v2217 = vmul.f32 %v1652, %v2155
  %v2218 = vmul.f32 %v1654, %v2155
  %v2219 = vmul.f32 %v1815, %v2155
  %v2220 = vmul.f32 %v1817, %v2155
  %v2221 = vmul.f32 %v1656, %v2156
  %v2222 = vmul.f32 %v1658, %v2156
  %v2223 = vmul.f32 %v1819, %v2156
  %v2224 = vmul.f32 %v1821, %v2156
  %v2225 = vmul.f32 %v1662, %v2157
  %v2226 = vmul.f32 %v1664, %v2157
  %v2227 = vmul.f32 %v1825, %v2157
  %v2228 = vmul.f32 %v1827, %v2157
  %v2229 = vmul.f32 %v1666, %v2158
  %v2230 = vmul.f32 %v1668, %v2158
  %v2231 = vmul.f32 %v1829, %v2158
  %v2232 = vmul.f32 %v1831, %v2158
  %v2233 = vmul.f32 %v1672, %v2159
  %v2234 = vmul.f32 %v1674, %v2159
  %v2235 = vmul.f32 %v1835, %v2159
  %v2236 = vmul.f32 %v1837, %v2159
  %v2237 = vmul.f32 %v1676, %v2160
  %v2238 = vmul.f32 %v1678, %v2160
  %v2239 = vmul.f32 %v1839, %v2160
  %v2240 = vmul.f32 %v1841, %v2160
  %v2241 = vmul.f32 %v1682, %v2161
  %v2242 = vmul.f32 %v1684, %v2161
  %v2243 = vmul.f32 %v1845, %v2161
  %v2244 = vmul.f32 %v1847, %v2161
  %v2245 = vmul.f32 %v1686, %v2162
  %v2246 = vmul.f32 %v1688, %v2162
  %v2247 = vmul.f32 %v1849, %v2162
  %v2248 = vmul.f32 %v1851, %v2162
  %v2249 = vmul.f32 %v1692, %v2163
  %v2250 = vmul.f32 %v1694, %v2163
  %v2251 = vmul.f32 %v1855, %v2163
  %v2252 = vmul.f32 %v1857, %v2163
  %v2253 = vmul.f32 %v1696, %v2164
  %v2254 = vmul.f32 %v1698, %v2164
  %v2255 = vmul.f32 %v1859, %v2164
  %v2256 = vmul.f32 %v1861, %v2164
  %v2257 = vmul.f32 %v1702, %v2165
  %v2258 = vmul.f32 %v1704, %v2165
  %v2259 = vmul.f32 %v1865, %v2165
  %v2260 = vmul.f32 %v1867, %v2165
  %v2261 = vmul.f32 %v1706, %v2166
  %v2262 = vmul.f32 %v1708, %v2166
  %v2263 = vmul.f32 %v1869, %v2166
  %v2264 = vmul.f32 %v1871, %v2166
  %v2265 = vmul.f32 %v1712, %v2167
  %v2266 = vmul.f32 %v1714, %v2167
  %v2267 = vmul.f32 %v1875, %v2167
  %v2268 = vmul.f32 %v1877, %v2167
  %v2269 = vmul.f32 %v1716, %v2168
  %v2270 = vmul.f32 %v1718, %v2168
  %v2271 = vmul.f32 %v1879, %v2168
  %v2272 = vmul.f32 %v1881, %v2168
  %2273 = vst [vmem:[%s10] sm:$0xff] %v2169
  %2274 = vst [vmem:[%s10 + $0x8] sm:$0xff] %v2170
  %2275 = vst [vmem:[%s10 + $0x10] sm:$0xff] %v2171
  %2276 = vst [vmem:[%s10 + $0x18] sm:$0xff] %v2172
  %2277 = vst [vmem:[%s10 + $0x20] sm:$0xff] %v2173
  %2278 = vst [vmem:[%s10 + $0x28] sm:$0xff] %v2174
  %2279 = vst [vmem:[%s10 + $0x30] sm:$0xff] %v2175
  %2280 = vst [vmem:[%s10 + $0x38] sm:$0xff] %v2176
  %2281 = vst [vmem:[%s10 + $0x40] sm:$0xff] %v2177
  %2282 = vst [vmem:[%s10 + $0x48] sm:$0xff] %v2178
  %2283 = vst [vmem:[%s10 + $0x50] sm:$0xff] %v2179
  %2284 = vst [vmem:[%s10 + $0x58] sm:$0xff] %v2180
  %2285 = vst [vmem:[%s10 + $0x60] sm:$0xff] %v2181
  %2286 = vst [vmem:[%s10 + $0x68] sm:$0xff] %v2182
  %2287 = vst [vmem:[%s10 + $0x70] sm:$0xff] %v2183
  %2288 = vst [vmem:[%s10 + $0x78] sm:$0xff] %v2184
  %2289 = vst [vmem:[%s10 + $0x80] sm:$0xff] %v2185
  %2290 = vst [vmem:[%s10 + $0x88] sm:$0xff] %v2186
  %2291 = vst [vmem:[%s10 + $0x90] sm:$0xff] %v2187
  %2292 = vst [vmem:[%s10 + $0x98] sm:$0xff] %v2188
  %2293 = vst [vmem:[%s10 + $0xa0] sm:$0xff] %v2189
  %2294 = vst [vmem:[%s10 + $0xa8] sm:$0xff] %v2190
  %2295 = vst [vmem:[%s10 + $0xb0] sm:$0xff] %v2191
  %2296 = vst [vmem:[%s10 + $0xb8] sm:$0xff] %v2192
  %2297 = vst [vmem:[%s10 + $0xc0] sm:$0xff] %v2193
  %2298 = vst [vmem:[%s10 + $0xc8] sm:$0xff] %v2194
  %2299 = vst [vmem:[%s10 + $0xd0] sm:$0xff] %v2195
  %2300 = vst [vmem:[%s10 + $0xd8] sm:$0xff] %v2196
  %2301 = vst [vmem:[%s10 + $0xe0] sm:$0xff] %v2197
  %2302 = vst [vmem:[%s10 + $0xe8] sm:$0xff] %v2198
  %2303 = vst [vmem:[%s10 + $0xf0] sm:$0xff] %v2199
  %2304 = vst [vmem:[%s10 + $0xf8] sm:$0xff] %v2200
  %2305 = vst [vmem:[%s10 + $0x100] sm:$0xff] %v2201
  %2306 = vst [vmem:[%s10 + $0x108] sm:$0xff] %v2202
  %2307 = vst [vmem:[%s10 + $0x110] sm:$0xff] %v2203
  %2308 = vst [vmem:[%s10 + $0x118] sm:$0xff] %v2204
  %2309 = vst [vmem:[%s10 + $0x120] sm:$0xff] %v2205
  %2310 = vst [vmem:[%s10 + $0x128] sm:$0xff] %v2206
  %2311 = vst [vmem:[%s10 + $0x130] sm:$0xff] %v2207
  %2312 = vst [vmem:[%s10 + $0x138] sm:$0xff] %v2208
  %2313 = vst [vmem:[%s10 + $0x140] sm:$0xff] %v2209
  %2314 = vst [vmem:[%s10 + $0x148] sm:$0xff] %v2210
  %2315 = vst [vmem:[%s10 + $0x150] sm:$0xff] %v2211
  %2316 = vst [vmem:[%s10 + $0x158] sm:$0xff] %v2212
  %2317 = vst [vmem:[%s10 + $0x160] sm:$0xff] %v2213
  %2318 = vst [vmem:[%s10 + $0x168] sm:$0xff] %v2214
  %2319 = vst [vmem:[%s10 + $0x170] sm:$0xff] %v2215
  %2320 = vst [vmem:[%s10 + $0x178] sm:$0xff] %v2216
  %2321 = vst [vmem:[%s10 + $0x180] sm:$0xff] %v2217
  %2322 = vst [vmem:[%s10 + $0x188] sm:$0xff] %v2218
  %2323 = vst [vmem:[%s10 + $0x190] sm:$0xff] %v2219
  %2324 = vst [vmem:[%s10 + $0x198] sm:$0xff] %v2220
  %2325 = vst [vmem:[%s10 + $0x1a0] sm:$0xff] %v2221
  %2326 = vst [vmem:[%s10 + $0x1a8] sm:$0xff] %v2222
  %2327 = vst [vmem:[%s10 + $0x1b0] sm:$0xff] %v2223
  %2328 = vst [vmem:[%s10 + $0x1b8] sm:$0xff] %v2224
  %2329 = vst [vmem:[%s10 + $0x1c0] sm:$0xff] %v2225
  %2330 = vst [vmem:[%s10 + $0x1c8] sm:$0xff] %v2226
  %2331 = vst [vmem:[%s10 + $0x1d0] sm:$0xff] %v2227
  %2332 = vst [vmem:[%s10 + $0x1d8] sm:$0xff] %v2228
  %2333 = vst [vmem:[%s10 + $0x1e0] sm:$0xff] %v2229
  %2334 = vst [vmem:[%s10 + $0x1e8] sm:$0xff] %v2230
  %2335 = vst [vmem:[%s10 + $0x1f0] sm:$0xff] %v2231
  %2336 = vst [vmem:[%s10 + $0x1f8] sm:$0xff] %v2232
  %2337 = vst [vmem:[%s10 + $0x200] sm:$0xff] %v2233
  %2338 = vst [vmem:[%s10 + $0x208] sm:$0xff] %v2234
  %2339 = vst [vmem:[%s10 + $0x210] sm:$0xff] %v2235
  %2340 = vst [vmem:[%s10 + $0x218] sm:$0xff] %v2236
  %2341 = vst [vmem:[%s10 + $0x220] sm:$0xff] %v2237
  %2342 = vst [vmem:[%s10 + $0x228] sm:$0xff] %v2238
  %2343 = vst [vmem:[%s10 + $0x230] sm:$0xff] %v2239
  %2344 = vst [vmem:[%s10 + $0x238] sm:$0xff] %v2240
  %2345 = vst [vmem:[%s10 + $0x240] sm:$0xff] %v2241
  %2346 = vst [vmem:[%s10 + $0x248] sm:$0xff] %v2242
  %2347 = vst [vmem:[%s10 + $0x250] sm:$0xff] %v2243
  %2348 = vst [vmem:[%s10 + $0x258] sm:$0xff] %v2244
  %2349 = vst [vmem:[%s10 + $0x260] sm:$0xff] %v2245
  %2350 = vst [vmem:[%s10 + $0x268] sm:$0xff] %v2246
  %2351 = vst [vmem:[%s10 + $0x270] sm:$0xff] %v2247
  %2352 = vst [vmem:[%s10 + $0x278] sm:$0xff] %v2248
  %2353 = vst [vmem:[%s10 + $0x280] sm:$0xff] %v2249
  %2354 = vst [vmem:[%s10 + $0x288] sm:$0xff] %v2250
  %2355 = vst [vmem:[%s10 + $0x290] sm:$0xff] %v2251
  %2356 = vst [vmem:[%s10 + $0x298] sm:$0xff] %v2252
  %2357 = vst [vmem:[%s10 + $0x2a0] sm:$0xff] %v2253
  %2358 = vst [vmem:[%s10 + $0x2a8] sm:$0xff] %v2254
  %2359 = vst [vmem:[%s10 + $0x2b0] sm:$0xff] %v2255
  %2360 = vst [vmem:[%s10 + $0x2b8] sm:$0xff] %v2256
  %2361 = vst [vmem:[%s10 + $0x2c0] sm:$0xff] %v2257
  %2362 = vst [vmem:[%s10 + $0x2c8] sm:$0xff] %v2258
  %2363 = vst [vmem:[%s10 + $0x2d0] sm:$0xff] %v2259
  %2364 = vst [vmem:[%s10 + $0x2d8] sm:$0xff] %v2260
  %2365 = vst [vmem:[%s10 + $0x2e0] sm:$0xff] %v2261
  %2366 = vst [vmem:[%s10 + $0x2e8] sm:$0xff] %v2262
  %2367 = vst [vmem:[%s10 + $0x2f0] sm:$0xff] %v2263
  %2368 = vst [vmem:[%s10 + $0x2f8] sm:$0xff] %v2264
  %2369 = vst [vmem:[%s10 + $0x300] sm:$0xff] %v2265
  %2370 = vst [vmem:[%s10 + $0x308] sm:$0xff] %v2266
  %2371 = vst [vmem:[%s10 + $0x310] sm:$0xff] %v2267
  %2372 = vst [vmem:[%s10 + $0x318] sm:$0xff] %v2268
  %2373 = vst [vmem:[%s10 + $0x320] sm:$0xff] %v2269
  %2374 = vst [vmem:[%s10 + $0x328] sm:$0xff] %v2270
  %2375 = vst [vmem:[%s10 + $0x330] sm:$0xff] %v2271
  %2376 = vst [vmem:[%s10 + $0x338] sm:$0xff] %v2272
  // Predicated region
  $region42: #{autoencoder_forward.3} parent=0 // pred_check
    _
  $region43: #{autoencoder_forward.3} parent=0 // pred_check_branch
    %2378 = sbr.rel (0) target = $region45
  $region44: #{autoencoder_forward.3} parent=0 // pred_region
    _
  $region45: #{autoencoder_forward.3} parent=0 // pred_fallthru
    _
  // Predicated region
  $region46: #{autoencoder_forward.3} parent=0 // pred_check
    _
  $region47: #{autoencoder_forward.3} parent=0 // pred_check_branch
    %2380 = sbr.rel (0) target = $region49
  $region48: #{autoencoder_forward.3} parent=0 // pred_region
    _
  $region49: #{autoencoder_forward.3} parent=0 // pred_fallthru
    _

</llo_original>
